<compile_context>
chip_gen: v5e
topology: v5e:2x2
jax: 0.10.0
libtpu: 0.0.40
codegen_flags: <defaults>
</compile_context>

<pallas_src>
import jax
import jax.numpy as jnp
import numpy as np
from jax.experimental import pallas as pl
from jax.experimental.pallas import tpu as pltpu

EPS = 1e-5  # nn.InstanceNorm2d default eps (affine=False)


def _round_up(v, m):
    return ((v + m - 1) // m) * m


# ---------------------------------------------------------------------------
# Fused kernel (one grid step == one sample)
# ---------------------------------------------------------------------------
def _make_resblock_kernel(H, W, Wpad, Cp):
    L = H * Wpad                      # rows of the flattened (row, padded-col) domain
    inv_hw = 1.0 / float(H * W)

    def conv3x3(pad_ref, w_ref):
        """3x3 'same' conv over the reflect-padded (H+2, Wpad, Cp) f32 scratch.

        Valid output columns are 1..W of the (H, Wpad) domain; all other
        columns hold finite garbage that is excluded from the IN statistics.
        """
        accs = [None, None, None]                    # one f32 partial sum per kw
        for kh in range(3):
            # Aligned dim-0 slice; reshape is layout-preserving (Wpad % 8 == 0).
            slab = (pad_ref[kh:kh + H, :, :]
                    .reshape(L, Cp).astype(jnp.bfloat16))
            for kw in range(3):
                y = jnp.dot(slab, w_ref[kh * 3 + kw],
                            preferred_element_type=jnp.float32)
                accs[kw] = y if accs[kw] is None else accs[kw] + y
        # Width realignment: out[c] = acc0[c-1] + acc1[c] + acc2[c+1]
        # (rolls stay in [0, L); wrap-around only touches invalid columns).
        out = (pltpu.roll(accs[0], 1, axis=0)
               + accs[1]
               + pltpu.roll(accs[2], L - 1, axis=0))
        return out.reshape(H, Wpad, Cp)

    def instance_norm(acc, mask):
        # One-pass masked stats (E[x^2]-E[x]^2); fine at bf16-level tolerance.
        m = acc * mask
        s1 = jnp.sum(m, axis=(0, 1), keepdims=True)          # (1, 1, Cp)
        s2 = jnp.sum(m * acc, axis=(0, 1), keepdims=True)
        mean = s1 * inv_hw
        var = s2 * inv_hw - mean * mean                       # biased variance
        return (acc - mean) * jax.lax.rsqrt(var + EPS)

    def reflect_rows(ref):
        # Row halos copy fully-built interior rows (incl. their column halos),
        # which also produces correct corners.
        ref[0:1, :, :] = ref[2:3, :, :]
        ref[H + 1:H + 2, :, :] = ref[H - 1:H, :, :]

    def kernel(x_ref, w1_ref, w2_ref, o_ref, p1_ref, p2_ref):
        # x_ref : (H, W, Cp)       bf16  unpadded input tile
        # w*_ref: (9, Cp, Cp)      bf16  conv taps, [kh*3+kw][cin, cout]
        # o_ref : (H, Wpad, Cp)    bf16  width-padded output (valid cols 1..W)
        # p*_ref: (H+2, Wpad, Cp)  f32   reflect-padded scratches

        # valid-column mask, computed once and reused by both InstanceNorms
        col = jax.lax.broadcasted_iota(jnp.int32, (1, Wpad, Cp), 1)
        mask = ((col >= 1) & (col <= W)).astype(jnp.float32)

        # ---- build reflect-padded input in VMEM (no HBM pad pass) ----------
        x = x_ref[...].astype(jnp.float32)                     # (H, W, Cp)
        if Wpad > W + 2:   # keep the extra columns finite (never NaN)
            p1_ref[:, W + 2:Wpad, :] = jnp.zeros(
                (H + 2, Wpad - (W + 2), Cp), jnp.float32)
        p1_ref[1:H + 1, 1:W + 1, :] = x
        p1_ref[1:H + 1, 0:1, :] = x[:, 1:2, :]                 # left halo
        p1_ref[1:H + 1, W + 1:W + 2, :] = x[:, W - 2:W - 1, :]  # right halo
        reflect_rows(p1_ref)

        # ---- conv1 -> InstanceNorm -> ReLU ---------------------------------
        # (no conv bias: it cancels exactly under InstanceNorm(affine=False))
        y1 = jnp.maximum(instance_norm(conv3x3(p1_ref, w1_ref), mask), 0.0)

        # ---- reflect-pad intermediate into p2 (halos from register values) -
        p2_ref[1:H + 1, :, :] = y1                             # full width, aligned
        p2_ref[1:H + 1, 0:1, :] = y1[:, 2:3, :]
        p2_ref[1:H + 1, W + 1:W + 2, :] = y1[:, W - 1:W, :]
        reflect_rows(p2_ref)

        # ---- conv2 -> InstanceNorm -> residual add -------------------------
        y2 = instance_norm(conv3x3(p2_ref, w2_ref), mask)
        o_ref[...] = (p1_ref[1:H + 1, :, :] + y2).astype(o_ref.dtype)

    return kernel


# ---------------------------------------------------------------------------
# Wrapper (layout glue only; NCHW<->padded-NHWC conversion would amortize to
# one per network when chaining residual blocks — kept here for the test).
# ---------------------------------------------------------------------------
@jax.jit
def residual_block(x_nchw, w1, b1, w2, b2):
    """ResidualBlock forward. x: (N, C, H, W); w*: (C, C, 3, 3); b*: (C,)."""
    N, C, H, W = x_nchw.shape
    Cp = _round_up(C, 128)            # lane-dense channels
    Wpad = _round_up(W + 2, 8)        # sublane-aligned padded width (f32)

    # b1/b2 are intentionally unused: bias + InstanceNorm(affine=False) is a
    # mathematical no-op, so we never DMA or add them.
    del b1, b2

    x = jnp.transpose(x_nchw, (0, 2, 3, 1))                       # NHWC
    x = jnp.pad(x, ((0, 0), (0, 0), (0, 0), (0, Cp - C)))          # pad channels
    x = x.astype(jnp.bfloat16)

    def prep_w(w):   # (Cout, Cin, 3, 3) -> (9, Cp_in, Cp_out) bf16
        wp = jnp.pad(w.astype(jnp.float32),
                     ((0, Cp - C), (0, Cp - C), (0, 0), (0, 0)))
        return jnp.transpose(wp, (2, 3, 1, 0)).reshape(9, Cp, Cp).astype(jnp.bfloat16)

    kernel = _make_resblock_kernel(H, W, Wpad, Cp)
    out = pl.pallas_call(
        kernel,
        out_shape=jax.ShapeDtypeStruct((N, H, Wpad, Cp), jnp.bfloat16),
        grid=(N,),
        in_specs=[
            pl.BlockSpec((None, H, W, Cp), lambda n: (n, 0, 0, 0)),
            pl.BlockSpec((9, Cp, Cp), lambda n: (0, 0, 0)),   # grid-invariant
            pl.BlockSpec((9, Cp, Cp), lambda n: (0, 0, 0)),   # grid-invariant
        ],
        out_specs=pl.BlockSpec((None, H, Wpad, Cp), lambda n: (n, 0, 0, 0)),
        scratch_shapes=[pltpu.VMEM((H + 2, Wpad, Cp), jnp.float32),
                        pltpu.VMEM((H + 2, Wpad, Cp), jnp.float32)],
        compiler_params=pltpu.CompilerParams(
            dimension_semantics=("parallel",),
            vmem_limit_bytes=48 * 1024 * 1024),   # leaves headroom on v7x (64 MiB)
    )(x, prep_w(w1), prep_w(w2))

    # Network-boundary conversion (test harness): drop padded cols/channels.
    y = out[:, :, 1:W + 1, :C].astype(jnp.float32)
    return jnp.transpose(y, (0, 3, 1, 2))                      # back to NCHW


# ---------------------------------------------------------------------------
# Pure-JAX reference (mirrors the PyTorch module, f32 HIGHEST precision)
# ---------------------------------------------------------------------------
def ref_residual_block(x, w1, b1, w2, b2):
    def conv(a, w, b):
        ap = jnp.pad(a, ((0, 0), (0, 0), (1, 1), (1, 1)), mode="reflect")
        y = jax.lax.conv_general_dilated(
            ap, w, (1, 1), "VALID",
            dimension_numbers=("NCHW", "OIHW", "NCHW"),
            precision=jax.lax.Precision.HIGHEST)
        return y + b[None, :, None, None]

    def inorm(a):
        m = a.mean(axis=(2, 3), keepdims=True)
        v = ((a - m) ** 2).mean(axis=(2, 3), keepdims=True)
        return (a - m) / jnp.sqrt(v + EPS)

    y = jax.nn.relu(inorm(conv(x, w1, b1)))
    y = inorm(conv(y, w2, b2))
    return x + y


# ---------------------------------------------------------------------------
if __name__ == "__main__":
    N, C, H, W = 2, 4, 16, 16
    key = jax.random.PRNGKey(0)
    kx, k1, k2, k3, k4 = jax.random.split(key, 5)

    x = jax.random.normal(kx, (N, C, H, W), jnp.float32)
    w1 = jax.random.normal(k1, (C, C, 3, 3), jnp.float32) * 0.1
    b1 = jax.random.normal(k2, (C,), jnp.float32) * 0.1
    w2 = jax.random.normal(k3, (C, C, 3, 3), jnp.float32) * 0.1
    b2 = jax.random.normal(k4, (C,), jnp.float32) * 0.1

    out = jax.block_until_ready(residual_block(x, w1, b1, w2, b2))
    ref = jax.block_until_ready(ref_residual_block(x, w1, b1, w2, b2))

    # bf16 MXU path + bf16 output vs. f32-HIGHEST reference -> relaxed tol.
    np.testing.assert_allclose(np.asarray(out), np.asarray(ref),
                               rtol=5e-2, atol=5e-2)
    print("KERNEL_OK")
</pallas_src>

<mosaic_0001>
module attributes {stable_mosaic.version = 11 : i64} {
  func.func @kernel(%arg0: i32, %arg1: memref<1x16x16x128xbf16, #tpu.memory_space<vmem>>, %arg2: memref<9x128x128xbf16, #tpu.memory_space<vmem>>, %arg3: memref<9x128x128xbf16, #tpu.memory_space<vmem>>, %arg4: memref<1x16x24x128xbf16, #tpu.memory_space<vmem>>, %arg5: memref<18x24x128xf32, #tpu.memory_space<vmem>>, %arg6: memref<18x24x128xf32, #tpu.memory_space<vmem>>) attributes {dimension_semantics = [#tpu.dimension_semantics<parallel>], iteration_bounds = array<i64: 2>, scalar_prefetch = 0 : i64, scratch_operands = 2 : i64, tpu.core_type = #tpu.core_type<tc>, window_params = [{transform_indices = @transform_0, window_bounds = array<i64: 1, 16, 16, 128>}, {pipeline_mode = #tpu.pipeline_mode<synchronous>, transform_indices = @transform_1, window_bounds = array<i64: 9, 128, 128>}, {pipeline_mode = #tpu.pipeline_mode<synchronous>, transform_indices = @transform_2, window_bounds = array<i64: 9, 128, 128>}, {transform_indices = @transform_3, window_bounds = array<i64: 1, 16, 24, 128>}]} {
    %0 = tpu.iota {dimensions = array<i32: 1>} : vector<1x24x128xi32>
    %c1_i32 = arith.constant 1 : i32
    %1 = vector.broadcast %c1_i32 : i32 to vector<1x24x128xi32>
    %2 = arith.cmpi sge, %0, %1 : vector<1x24x128xi32>
    %c16_i32 = arith.constant 16 : i32
    %3 = vector.broadcast %c16_i32 : i32 to vector<1x24x128xi32>
    %4 = arith.cmpi sle, %0, %3 : vector<1x24x128xi32>
    %5 = arith.andi %2, %4 : vector<1x24x128xi1>
    %6 = arith.extui %5 : vector<1x24x128xi1> to vector<1x24x128xi32>
    %7 = arith.sitofp %6 : vector<1x24x128xi32> to vector<1x24x128xf32>
    %c0 = arith.constant 0 : index
    %c0_0 = arith.constant 0 : index
    %c0_1 = arith.constant 0 : index
    %c0_2 = arith.constant 0 : index
    %8 = vector.load %arg1[%c0, %c0_0, %c0_1, %c0_2] : memref<1x16x16x128xbf16, #tpu.memory_space<vmem>>, vector<1x16x16x128xbf16>
    %9 = vector.shape_cast %8 : vector<1x16x16x128xbf16> to vector<16x16x128xbf16>
    %10 = arith.extf %9 : vector<16x16x128xbf16> to vector<16x16x128xf32>
    %cst = arith.constant 0.000000e+00 : f32
    %11 = vector.broadcast %cst : f32 to vector<18x6x128xf32>
    %c0_3 = arith.constant 0 : index
    %c18 = arith.constant 18 : index
    %c0_4 = arith.constant 0 : index
    %12 = vector.load %arg5[%c0_3, %c18, %c0_4] : memref<18x24x128xf32, #tpu.memory_space<vmem>>, vector<18x6x128xf32>
    tpu.vector_store %arg5[%c0_3, %c18, %c0_4], %11 {strides = array<i32>} : memref<18x24x128xf32, #tpu.memory_space<vmem>>, vector<18x6x128xf32>,
    %c1 = arith.constant 1 : index
    %c1_5 = arith.constant 1 : index
    %c0_6 = arith.constant 0 : index
    %13 = vector.load %arg5[%c1, %c1_5, %c0_6] : memref<18x24x128xf32, #tpu.memory_space<vmem>>, vector<16x16x128xf32>
    tpu.vector_store %arg5[%c1, %c1_5, %c0_6], %10 {strides = array<i32>} : memref<18x24x128xf32, #tpu.memory_space<vmem>>, vector<16x16x128xf32>,
    %14 = vector.extract_strided_slice %10 {offsets = [0, 1, 0], sizes = [16, 1, 128], strides = [1, 1, 1]} : vector<16x16x128xf32> to vector<16x1x128xf32>
    %c1_7 = arith.constant 1 : index
    %c0_8 = arith.constant 0 : index
    %c0_9 = arith.constant 0 : index
    %15 = vector.load %arg5[%c1_7, %c0_8, %c0_9] : memref<18x24x128xf32, #tpu.memory_space<vmem>>, vector<16x1x128xf32>
    tpu.vector_store %arg5[%c1_7, %c0_8, %c0_9], %14 {strides = array<i32>} : memref<18x24x128xf32, #tpu.memory_space<vmem>>, vector<16x1x128xf32>,
    %16 = vector.extract_strided_slice %10 {offsets = [0, 14, 0], sizes = [16, 1, 128], strides = [1, 1, 1]} : vector<16x16x128xf32> to vector<16x1x128xf32>
    %c1_10 = arith.constant 1 : index
    %c17 = arith.constant 17 : index
    %c0_11 = arith.constant 0 : index
    %17 = vector.load %arg5[%c1_10, %c17, %c0_11] : memref<18x24x128xf32, #tpu.memory_space<vmem>>, vector<16x1x128xf32>
    tpu.vector_store %arg5[%c1_10, %c17, %c0_11], %16 {strides = array<i32>} : memref<18x24x128xf32, #tpu.memory_space<vmem>>, vector<16x1x128xf32>,
    %c2 = arith.constant 2 : index
    %c0_12 = arith.constant 0 : index
    %c0_13 = arith.constant 0 : index
    %18 = vector.load %arg5[%c2, %c0_12, %c0_13] : memref<18x24x128xf32, #tpu.memory_space<vmem>>, vector<1x24x128xf32>
    %c0_14 = arith.constant 0 : index
    %c0_15 = arith.constant 0 : index
    %c0_16 = arith.constant 0 : index
    %19 = vector.load %arg5[%c0_14, %c0_15, %c0_16] : memref<18x24x128xf32, #tpu.memory_space<vmem>>, vector<1x24x128xf32>
    tpu.vector_store %arg5[%c0_14, %c0_15, %c0_16], %18 {strides = array<i32>} : memref<18x24x128xf32, #tpu.memory_space<vmem>>, vector<1x24x128xf32>,
    %c15 = arith.constant 15 : index
    %c0_17 = arith.constant 0 : index
    %c0_18 = arith.constant 0 : index
    %20 = vector.load %arg5[%c15, %c0_17, %c0_18] : memref<18x24x128xf32, #tpu.memory_space<vmem>>, vector<1x24x128xf32>
    %c17_19 = arith.constant 17 : index
    %c0_20 = arith.constant 0 : index
    %c0_21 = arith.constant 0 : index
    %21 = vector.load %arg5[%c17_19, %c0_20, %c0_21] : memref<18x24x128xf32, #tpu.memory_space<vmem>>, vector<1x24x128xf32>
    tpu.vector_store %arg5[%c17_19, %c0_20, %c0_21], %20 {strides = array<i32>} : memref<18x24x128xf32, #tpu.memory_space<vmem>>, vector<1x24x128xf32>,
    %c0_22 = arith.constant 0 : index
    %c0_23 = arith.constant 0 : index
    %c0_24 = arith.constant 0 : index
    %22 = vector.load %arg5[%c0_22, %c0_23, %c0_24] : memref<18x24x128xf32, #tpu.memory_space<vmem>>, vector<16x24x128xf32>
    %23 = vector.shape_cast %22 : vector<16x24x128xf32> to vector<384x128xf32>
    %24 = arith.truncf %23 : vector<384x128xf32> to vector<384x128xbf16>
    %c0_25 = arith.constant 0 : index
    %c0_26 = arith.constant 0 : index
    %c0_27 = arith.constant 0 : index
    %25 = vector.load %arg2[%c0_25, %c0_26, %c0_27] : memref<9x128x128xbf16, #tpu.memory_space<vmem>>, vector<1x128x128xbf16>
    %26 = vector.shape_cast %25 : vector<1x128x128xbf16> to vector<128x128xbf16>
    %cst_28 = arith.constant dense<0.000000e+00> : vector<384x128xf32>
    %27 = tpu.matmul %24, %26, %cst_28 {dimension_numbers = #tpu.dot_dimension_numbers<[1], [0], [0], [1], [0, 0, 1, 1], [], []>} : vector<384x128xbf16>, vector<128x128xbf16>, vector<384x128xf32> -> vector<384x128xf32>
    %c1_29 = arith.constant 1 : index
    %c0_30 = arith.constant 0 : index
    %c0_31 = arith.constant 0 : index
    %28 = vector.load %arg2[%c1_29, %c0_30, %c0_31] : memref<9x128x128xbf16, #tpu.memory_space<vmem>>, vector<1x128x128xbf16>
    %29 = vector.shape_cast %28 : vector<1x128x128xbf16> to vector<128x128xbf16>
    %cst_32 = arith.constant dense<0.000000e+00> : vector<384x128xf32>
    %30 = tpu.matmul %24, %29, %cst_32 {dimension_numbers = #tpu.dot_dimension_numbers<[1], [0], [0], [1], [0, 0, 1, 1], [], []>} : vector<384x128xbf16>, vector<128x128xbf16>, vector<384x128xf32> -> vector<384x128xf32>
    %c2_33 = arith.constant 2 : index
    %c0_34 = arith.constant 0 : index
    %c0_35 = arith.constant 0 : index
    %31 = vector.load %arg2[%c2_33, %c0_34, %c0_35] : memref<9x128x128xbf16, #tpu.memory_space<vmem>>, vector<1x128x128xbf16>
    %32 = vector.shape_cast %31 : vector<1x128x128xbf16> to vector<128x128xbf16>
    %cst_36 = arith.constant dense<0.000000e+00> : vector<384x128xf32>
    %33 = tpu.matmul %24, %32, %cst_36 {dimension_numbers = #tpu.dot_dimension_numbers<[1], [0], [0], [1], [0, 0, 1, 1], [], []>} : vector<384x128xbf16>, vector<128x128xbf16>, vector<384x128xf32> -> vector<384x128xf32>
    %c1_37 = arith.constant 1 : index
    %c0_38 = arith.constant 0 : index
    %c0_39 = arith.constant 0 : index
    %34 = vector.load %arg5[%c1_37, %c0_38, %c0_39] : memref<18x24x128xf32, #tpu.memory_space<vmem>>, vector<16x24x128xf32>
    %35 = vector.shape_cast %34 : vector<16x24x128xf32> to vector<384x128xf32>
    %36 = arith.truncf %35 : vector<384x128xf32> to vector<384x128xbf16>
    %c3 = arith.constant 3 : index
    %c0_40 = arith.constant 0 : index
    %c0_41 = arith.constant 0 : index
    %37 = vector.load %arg2[%c3, %c0_40, %c0_41] : memref<9x128x128xbf16, #tpu.memory_space<vmem>>, vector<1x128x128xbf16>
    %38 = vector.shape_cast %37 : vector<1x128x128xbf16> to vector<128x128xbf16>
    %cst_42 = arith.constant dense<0.000000e+00> : vector<384x128xf32>
    %39 = tpu.matmul %36, %38, %cst_42 {dimension_numbers = #tpu.dot_dimension_numbers<[1], [0], [0], [1], [0, 0, 1, 1], [], []>} : vector<384x128xbf16>, vector<128x128xbf16>, vector<384x128xf32> -> vector<384x128xf32>
    %40 = arith.addf %27, %39 : vector<384x128xf32>
    %c4 = arith.constant 4 : index
    %c0_43 = arith.constant 0 : index
    %c0_44 = arith.constant 0 : index
    %41 = vector.load %arg2[%c4, %c0_43, %c0_44] : memref<9x128x128xbf16, #tpu.memory_space<vmem>>, vector<1x128x128xbf16>
    %42 = vector.shape_cast %41 : vector<1x128x128xbf16> to vector<128x128xbf16>
    %cst_45 = arith.constant dense<0.000000e+00> : vector<384x128xf32>
    %43 = tpu.matmul %36, %42, %cst_45 {dimension_numbers = #tpu.dot_dimension_numbers<[1], [0], [0], [1], [0, 0, 1, 1], [], []>} : vector<384x128xbf16>, vector<128x128xbf16>, vector<384x128xf32> -> vector<384x128xf32>
    %44 = arith.addf %30, %43 : vector<384x128xf32>
    %c5 = arith.constant 5 : index
    %c0_46 = arith.constant 0 : index
    %c0_47 = arith.constant 0 : index
    %45 = vector.load %arg2[%c5, %c0_46, %c0_47] : memref<9x128x128xbf16, #tpu.memory_space<vmem>>, vector<1x128x128xbf16>
    %46 = vector.shape_cast %45 : vector<1x128x128xbf16> to vector<128x128xbf16>
    %cst_48 = arith.constant dense<0.000000e+00> : vector<384x128xf32>
    %47 = tpu.matmul %36, %46, %cst_48 {dimension_numbers = #tpu.dot_dimension_numbers<[1], [0], [0], [1], [0, 0, 1, 1], [], []>} : vector<384x128xbf16>, vector<128x128xbf16>, vector<384x128xf32> -> vector<384x128xf32>
    %48 = arith.addf %33, %47 : vector<384x128xf32>
    %c2_49 = arith.constant 2 : index
    %c0_50 = arith.constant 0 : index
    %c0_51 = arith.constant 0 : index
    %49 = vector.load %arg5[%c2_49, %c0_50, %c0_51] : memref<18x24x128xf32, #tpu.memory_space<vmem>>, vector<16x24x128xf32>
    %50 = vector.shape_cast %49 : vector<16x24x128xf32> to vector<384x128xf32>
    %51 = arith.truncf %50 : vector<384x128xf32> to vector<384x128xbf16>
    %c6 = arith.constant 6 : index
    %c0_52 = arith.constant 0 : index
    %c0_53 = arith.constant 0 : index
    %52 = vector.load %arg2[%c6, %c0_52, %c0_53] : memref<9x128x128xbf16, #tpu.memory_space<vmem>>, vector<1x128x128xbf16>
    %53 = vector.shape_cast %52 : vector<1x128x128xbf16> to vector<128x128xbf16>
    %cst_54 = arith.constant dense<0.000000e+00> : vector<384x128xf32>
    %54 = tpu.matmul %51, %53, %cst_54 {dimension_numbers = #tpu.dot_dimension_numbers<[1], [0], [0], [1], [0, 0, 1, 1], [], []>} : vector<384x128xbf16>, vector<128x128xbf16>, vector<384x128xf32> -> vector<384x128xf32>
    %55 = arith.addf %40, %54 : vector<384x128xf32>
    %c7 = arith.constant 7 : index
    %c0_55 = arith.constant 0 : index
    %c0_56 = arith.constant 0 : index
    %56 = vector.load %arg2[%c7, %c0_55, %c0_56] : memref<9x128x128xbf16, #tpu.memory_space<vmem>>, vector<1x128x128xbf16>
    %57 = vector.shape_cast %56 : vector<1x128x128xbf16> to vector<128x128xbf16>
    %cst_57 = arith.constant dense<0.000000e+00> : vector<384x128xf32>
    %58 = tpu.matmul %51, %57, %cst_57 {dimension_numbers = #tpu.dot_dimension_numbers<[1], [0], [0], [1], [0, 0, 1, 1], [], []>} : vector<384x128xbf16>, vector<128x128xbf16>, vector<384x128xf32> -> vector<384x128xf32>
    %59 = arith.addf %44, %58 : vector<384x128xf32>
    %c8 = arith.constant 8 : index
    %c0_58 = arith.constant 0 : index
    %c0_59 = arith.constant 0 : index
    %60 = vector.load %arg2[%c8, %c0_58, %c0_59] : memref<9x128x128xbf16, #tpu.memory_space<vmem>>, vector<1x128x128xbf16>
    %61 = vector.shape_cast %60 : vector<1x128x128xbf16> to vector<128x128xbf16>
    %cst_60 = arith.constant dense<0.000000e+00> : vector<384x128xf32>
    %62 = tpu.matmul %51, %61, %cst_60 {dimension_numbers = #tpu.dot_dimension_numbers<[1], [0], [0], [1], [0, 0, 1, 1], [], []>} : vector<384x128xbf16>, vector<128x128xbf16>, vector<384x128xf32> -> vector<384x128xf32>
    %63 = arith.addf %48, %62 : vector<384x128xf32>
    %c1_i32_61 = arith.constant 1 : i32
    %64 = tpu.dynamic_rotate %55 by %c1_i32_61 dim 0 : vector<384x128xf32>, i32 -> vector<384x128xf32>
    %65 = arith.addf %64, %59 : vector<384x128xf32>
    %c383_i32 = arith.constant 383 : i32
    %66 = tpu.dynamic_rotate %63 by %c383_i32 dim 0 : vector<384x128xf32>, i32 -> vector<384x128xf32>
    %67 = arith.addf %65, %66 : vector<384x128xf32>
    %68 = vector.shape_cast %67 : vector<384x128xf32> to vector<16x24x128xf32>
    %69 = vector.broadcast %7 : vector<1x24x128xf32> to vector<16x24x128xf32>
    %70 = arith.mulf %68, %69 : vector<16x24x128xf32>
    %cst_62 = arith.constant dense<0.000000e+00> : vector<128xf32>
    %71 = vector.multi_reduction <add>, %70, %cst_62 [0, 1] : vector<16x24x128xf32> to vector<128xf32>
    %72 = vector.shape_cast %71 : vector<128xf32> to vector<1x1x128xf32>
    %73 = arith.mulf %70, %68 : vector<16x24x128xf32>
    %cst_63 = arith.constant dense<0.000000e+00> : vector<128xf32>
    %74 = vector.multi_reduction <add>, %73, %cst_63 [0, 1] : vector<16x24x128xf32> to vector<128xf32>
    %75 = vector.shape_cast %74 : vector<128xf32> to vector<1x1x128xf32>
    %cst_64 = arith.constant 3.906250e-03 : f32
    %76 = vector.broadcast %cst_64 : f32 to vector<1x1x128xf32>
    %77 = arith.mulf %72, %76 : vector<1x1x128xf32>
    %cst_65 = arith.constant 3.906250e-03 : f32
    %78 = vector.broadcast %cst_65 : f32 to vector<1x1x128xf32>
    %79 = arith.mulf %75, %78 : vector<1x1x128xf32>
    %80 = arith.mulf %77, %77 : vector<1x1x128xf32>
    %81 = arith.subf %79, %80 : vector<1x1x128xf32>
    %82 = vector.broadcast %77 : vector<1x1x128xf32> to vector<16x24x128xf32>
    %83 = arith.subf %68, %82 : vector<16x24x128xf32>
    %cst_66 = arith.constant 9.99999974E-6 : f32
    %84 = vector.broadcast %cst_66 : f32 to vector<1x1x128xf32>
    %85 = arith.addf %81, %84 : vector<1x1x128xf32>
    %86 = math.rsqrt %85 : vector<1x1x128xf32>
    %87 = vector.broadcast %86 : vector<1x1x128xf32> to vector<16x24x128xf32>
    %88 = arith.mulf %83, %87 : vector<16x24x128xf32>
    %cst_67 = arith.constant 0.000000e+00 : f32
    %89 = vector.broadcast %cst_67 : f32 to vector<16x24x128xf32>
    %90 = arith.maximumf %88, %89 : vector<16x24x128xf32>
    %c1_68 = arith.constant 1 : index
    %c0_69 = arith.constant 0 : index
    %c0_70 = arith.constant 0 : index
    %91 = vector.load %arg6[%c1_68, %c0_69, %c0_70] : memref<18x24x128xf32, #tpu.memory_space<vmem>>, vector<16x24x128xf32>
    tpu.vector_store %arg6[%c1_68, %c0_69, %c0_70], %90 {strides = array<i32>} : memref<18x24x128xf32, #tpu.memory_space<vmem>>, vector<16x24x128xf32>,
    %92 = vector.extract_strided_slice %90 {offsets = [0, 2, 0], sizes = [16, 1, 128], strides = [1, 1, 1]} : vector<16x24x128xf32> to vector<16x1x128xf32>
    %c1_71 = arith.constant 1 : index
    %c0_72 = arith.constant 0 : index
    %c0_73 = arith.constant 0 : index
    %93 = vector.load %arg6[%c1_71, %c0_72, %c0_73] : memref<18x24x128xf32, #tpu.memory_space<vmem>>, vector<16x1x128xf32>
    tpu.vector_store %arg6[%c1_71, %c0_72, %c0_73], %92 {strides = array<i32>} : memref<18x24x128xf32, #tpu.memory_space<vmem>>, vector<16x1x128xf32>,
    %94 = vector.extract_strided_slice %90 {offsets = [0, 15, 0], sizes = [16, 1, 128], strides = [1, 1, 1]} : vector<16x24x128xf32> to vector<16x1x128xf32>
    %c1_74 = arith.constant 1 : index
    %c17_75 = arith.constant 17 : index
    %c0_76 = arith.constant 0 : index
    %95 = vector.load %arg6[%c1_74, %c17_75, %c0_76] : memref<18x24x128xf32, #tpu.memory_space<vmem>>, vector<16x1x128xf32>
    tpu.vector_store %arg6[%c1_74, %c17_75, %c0_76], %94 {strides = array<i32>} : memref<18x24x128xf32, #tpu.memory_space<vmem>>, vector<16x1x128xf32>,
    %c2_77 = arith.constant 2 : index
    %c0_78 = arith.constant 0 : index
    %c0_79 = arith.constant 0 : index
    %96 = vector.load %arg6[%c2_77, %c0_78, %c0_79] : memref<18x24x128xf32, #tpu.memory_space<vmem>>, vector<1x24x128xf32>
    %c0_80 = arith.constant 0 : index
    %c0_81 = arith.constant 0 : index
    %c0_82 = arith.constant 0 : index
    %97 = vector.load %arg6[%c0_80, %c0_81, %c0_82] : memref<18x24x128xf32, #tpu.memory_space<vmem>>, vector<1x24x128xf32>
    tpu.vector_store %arg6[%c0_80, %c0_81, %c0_82], %96 {strides = array<i32>} : memref<18x24x128xf32, #tpu.memory_space<vmem>>, vector<1x24x128xf32>,
    %c15_83 = arith.constant 15 : index
    %c0_84 = arith.constant 0 : index
    %c0_85 = arith.constant 0 : index
    %98 = vector.load %arg6[%c15_83, %c0_84, %c0_85] : memref<18x24x128xf32, #tpu.memory_space<vmem>>, vector<1x24x128xf32>
    %c17_86 = arith.constant 17 : index
    %c0_87 = arith.constant 0 : index
    %c0_88 = arith.constant 0 : index
    %99 = vector.load %arg6[%c17_86, %c0_87, %c0_88] : memref<18x24x128xf32, #tpu.memory_space<vmem>>, vector<1x24x128xf32>
    tpu.vector_store %arg6[%c17_86, %c0_87, %c0_88], %98 {strides = array<i32>} : memref<18x24x128xf32, #tpu.memory_space<vmem>>, vector<1x24x128xf32>,
    %c0_89 = arith.constant 0 : index
    %c0_90 = arith.constant 0 : index
    %c0_91 = arith.constant 0 : index
    %100 = vector.load %arg6[%c0_89, %c0_90, %c0_91] : memref<18x24x128xf32, #tpu.memory_space<vmem>>, vector<16x24x128xf32>
    %101 = vector.shape_cast %100 : vector<16x24x128xf32> to vector<384x128xf32>
    %102 = arith.truncf %101 : vector<384x128xf32> to vector<384x128xbf16>
    %c0_92 = arith.constant 0 : index
    %c0_93 = arith.constant 0 : index
    %c0_94 = arith.constant 0 : index
    %103 = vector.load %arg3[%c0_92, %c0_93, %c0_94] : memref<9x128x128xbf16, #tpu.memory_space<vmem>>, vector<1x128x128xbf16>
    %104 = vector.shape_cast %103 : vector<1x128x128xbf16> to vector<128x128xbf16>
    %cst_95 = arith.constant dense<0.000000e+00> : vector<384x128xf32>
    %105 = tpu.matmul %102, %104, %cst_95 {dimension_numbers = #tpu.dot_dimension_numbers<[1], [0], [0], [1], [0, 0, 1, 1], [], []>} : vector<384x128xbf16>, vector<128x128xbf16>, vector<384x128xf32> -> vector<384x128xf32>
    %c1_96 = arith.constant 1 : index
    %c0_97 = arith.constant 0 : index
    %c0_98 = arith.constant 0 : index
    %106 = vector.load %arg3[%c1_96, %c0_97, %c0_98] : memref<9x128x128xbf16, #tpu.memory_space<vmem>>, vector<1x128x128xbf16>
    %107 = vector.shape_cast %106 : vector<1x128x128xbf16> to vector<128x128xbf16>
    %cst_99 = arith.constant dense<0.000000e+00> : vector<384x128xf32>
    %108 = tpu.matmul %102, %107, %cst_99 {dimension_numbers = #tpu.dot_dimension_numbers<[1], [0], [0], [1], [0, 0, 1, 1], [], []>} : vector<384x128xbf16>, vector<128x128xbf16>, vector<384x128xf32> -> vector<384x128xf32>
    %c2_100 = arith.constant 2 : index
    %c0_101 = arith.constant 0 : index
    %c0_102 = arith.constant 0 : index
    %109 = vector.load %arg3[%c2_100, %c0_101, %c0_102] : memref<9x128x128xbf16, #tpu.memory_space<vmem>>, vector<1x128x128xbf16>
    %110 = vector.shape_cast %109 : vector<1x128x128xbf16> to vector<128x128xbf16>
    %cst_103 = arith.constant dense<0.000000e+00> : vector<384x128xf32>
    %111 = tpu.matmul %102, %110, %cst_103 {dimension_numbers = #tpu.dot_dimension_numbers<[1], [0], [0], [1], [0, 0, 1, 1], [], []>} : vector<384x128xbf16>, vector<128x128xbf16>, vector<384x128xf32> -> vector<384x128xf32>
    %c1_104 = arith.constant 1 : index
    %c0_105 = arith.constant 0 : index
    %c0_106 = arith.constant 0 : index
    %112 = vector.load %arg6[%c1_104, %c0_105, %c0_106] : memref<18x24x128xf32, #tpu.memory_space<vmem>>, vector<16x24x128xf32>
    %113 = vector.shape_cast %112 : vector<16x24x128xf32> to vector<384x128xf32>
    %114 = arith.truncf %113 : vector<384x128xf32> to vector<384x128xbf16>
    %c3_107 = arith.constant 3 : index
    %c0_108 = arith.constant 0 : index
    %c0_109 = arith.constant 0 : index
    %115 = vector.load %arg3[%c3_107, %c0_108, %c0_109] : memref<9x128x128xbf16, #tpu.memory_space<vmem>>, vector<1x128x128xbf16>
    %116 = vector.shape_cast %115 : vector<1x128x128xbf16> to vector<128x128xbf16>
    %cst_110 = arith.constant dense<0.000000e+00> : vector<384x128xf32>
    %117 = tpu.matmul %114, %116, %cst_110 {dimension_numbers = #tpu.dot_dimension_numbers<[1], [0], [0], [1], [0, 0, 1, 1], [], []>} : vector<384x128xbf16>, vector<128x128xbf16>, vector<384x128xf32> -> vector<384x128xf32>
    %118 = arith.addf %105, %117 : vector<384x128xf32>
    %c4_111 = arith.constant 4 : index
    %c0_112 = arith.constant 0 : index
    %c0_113 = arith.constant 0 : index
    %119 = vector.load %arg3[%c4_111, %c0_112, %c0_113] : memref<9x128x128xbf16, #tpu.memory_space<vmem>>, vector<1x128x128xbf16>
    %120 = vector.shape_cast %119 : vector<1x128x128xbf16> to vector<128x128xbf16>
    %cst_114 = arith.constant dense<0.000000e+00> : vector<384x128xf32>
    %121 = tpu.matmul %114, %120, %cst_114 {dimension_numbers = #tpu.dot_dimension_numbers<[1], [0], [0], [1], [0, 0, 1, 1], [], []>} : vector<384x128xbf16>, vector<128x128xbf16>, vector<384x128xf32> -> vector<384x128xf32>
    %122 = arith.addf %108, %121 : vector<384x128xf32>
    %c5_115 = arith.constant 5 : index
    %c0_116 = arith.constant 0 : index
    %c0_117 = arith.constant 0 : index
    %123 = vector.load %arg3[%c5_115, %c0_116, %c0_117] : memref<9x128x128xbf16, #tpu.memory_space<vmem>>, vector<1x128x128xbf16>
    %124 = vector.shape_cast %123 : vector<1x128x128xbf16> to vector<128x128xbf16>
    %cst_118 = arith.constant dense<0.000000e+00> : vector<384x128xf32>
    %125 = tpu.matmul %114, %124, %cst_118 {dimension_numbers = #tpu.dot_dimension_numbers<[1], [0], [0], [1], [0, 0, 1, 1], [], []>} : vector<384x128xbf16>, vector<128x128xbf16>, vector<384x128xf32> -> vector<384x128xf32>
    %126 = arith.addf %111, %125 : vector<384x128xf32>
    %c2_119 = arith.constant 2 : index
    %c0_120 = arith.constant 0 : index
    %c0_121 = arith.constant 0 : index
    %127 = vector.load %arg6[%c2_119, %c0_120, %c0_121] : memref<18x24x128xf32, #tpu.memory_space<vmem>>, vector<16x24x128xf32>
    %128 = vector.shape_cast %127 : vector<16x24x128xf32> to vector<384x128xf32>
    %129 = arith.truncf %128 : vector<384x128xf32> to vector<384x128xbf16>
    %c6_122 = arith.constant 6 : index
    %c0_123 = arith.constant 0 : index
    %c0_124 = arith.constant 0 : index
    %130 = vector.load %arg3[%c6_122, %c0_123, %c0_124] : memref<9x128x128xbf16, #tpu.memory_space<vmem>>, vector<1x128x128xbf16>
    %131 = vector.shape_cast %130 : vector<1x128x128xbf16> to vector<128x128xbf16>
    %cst_125 = arith.constant dense<0.000000e+00> : vector<384x128xf32>
    %132 = tpu.matmul %129, %131, %cst_125 {dimension_numbers = #tpu.dot_dimension_numbers<[1], [0], [0], [1], [0, 0, 1, 1], [], []>} : vector<384x128xbf16>, vector<128x128xbf16>, vector<384x128xf32> -> vector<384x128xf32>
    %133 = arith.addf %118, %132 : vector<384x128xf32>
    %c7_126 = arith.constant 7 : index
    %c0_127 = arith.constant 0 : index
    %c0_128 = arith.constant 0 : index
    %134 = vector.load %arg3[%c7_126, %c0_127, %c0_128] : memref<9x128x128xbf16, #tpu.memory_space<vmem>>, vector<1x128x128xbf16>
    %135 = vector.shape_cast %134 : vector<1x128x128xbf16> to vector<128x128xbf16>
    %cst_129 = arith.constant dense<0.000000e+00> : vector<384x128xf32>
    %136 = tpu.matmul %129, %135, %cst_129 {dimension_numbers = #tpu.dot_dimension_numbers<[1], [0], [0], [1], [0, 0, 1, 1], [], []>} : vector<384x128xbf16>, vector<128x128xbf16>, vector<384x128xf32> -> vector<384x128xf32>
    %137 = arith.addf %122, %136 : vector<384x128xf32>
    %c8_130 = arith.constant 8 : index
    %c0_131 = arith.constant 0 : index
    %c0_132 = arith.constant 0 : index
    %138 = vector.load %arg3[%c8_130, %c0_131, %c0_132] : memref<9x128x128xbf16, #tpu.memory_space<vmem>>, vector<1x128x128xbf16>
    %139 = vector.shape_cast %138 : vector<1x128x128xbf16> to vector<128x128xbf16>
    %cst_133 = arith.constant dense<0.000000e+00> : vector<384x128xf32>
    %140 = tpu.matmul %129, %139, %cst_133 {dimension_numbers = #tpu.dot_dimension_numbers<[1], [0], [0], [1], [0, 0, 1, 1], [], []>} : vector<384x128xbf16>, vector<128x128xbf16>, vector<384x128xf32> -> vector<384x128xf32>
    %141 = arith.addf %126, %140 : vector<384x128xf32>
    %c1_i32_134 = arith.constant 1 : i32
    %142 = tpu.dynamic_rotate %133 by %c1_i32_134 dim 0 : vector<384x128xf32>, i32 -> vector<384x128xf32>
    %143 = arith.addf %142, %137 : vector<384x128xf32>
    %c383_i32_135 = arith.constant 383 : i32
    %144 = tpu.dynamic_rotate %141 by %c383_i32_135 dim 0 : vector<384x128xf32>, i32 -> vector<384x128xf32>
    %145 = arith.addf %143, %144 : vector<384x128xf32>
    %146 = vector.shape_cast %145 : vector<384x128xf32> to vector<16x24x128xf32>
    %147 = vector.broadcast %7 : vector<1x24x128xf32> to vector<16x24x128xf32>
    %148 = arith.mulf %146, %147 : vector<16x24x128xf32>
    %cst_136 = arith.constant dense<0.000000e+00> : vector<128xf32>
    %149 = vector.multi_reduction <add>, %148, %cst_136 [0, 1] : vector<16x24x128xf32> to vector<128xf32>
    %150 = vector.shape_cast %149 : vector<128xf32> to vector<1x1x128xf32>
    %151 = arith.mulf %148, %146 : vector<16x24x128xf32>
    %cst_137 = arith.constant dense<0.000000e+00> : vector<128xf32>
    %152 = vector.multi_reduction <add>, %151, %cst_137 [0, 1] : vector<16x24x128xf32> to vector<128xf32>
    %153 = vector.shape_cast %152 : vector<128xf32> to vector<1x1x128xf32>
    %cst_138 = arith.constant 3.906250e-03 : f32
    %154 = vector.broadcast %cst_138 : f32 to vector<1x1x128xf32>
    %155 = arith.mulf %150, %154 : vector<1x1x128xf32>
    %cst_139 = arith.constant 3.906250e-03 : f32
    %156 = vector.broadcast %cst_139 : f32 to vector<1x1x128xf32>
    %157 = arith.mulf %153, %156 : vector<1x1x128xf32>
    %158 = arith.mulf %155, %155 : vector<1x1x128xf32>
    %159 = arith.subf %157, %158 : vector<1x1x128xf32>
    %160 = vector.broadcast %155 : vector<1x1x128xf32> to vector<16x24x128xf32>
    %161 = arith.subf %146, %160 : vector<16x24x128xf32>
    %cst_140 = arith.constant 9.99999974E-6 : f32
    %162 = vector.broadcast %cst_140 : f32 to vector<1x1x128xf32>
    %163 = arith.addf %159, %162 : vector<1x1x128xf32>
    %164 = math.rsqrt %163 : vector<1x1x128xf32>
    %165 = vector.broadcast %164 : vector<1x1x128xf32> to vector<16x24x128xf32>
    %166 = arith.mulf %161, %165 : vector<16x24x128xf32>
    %c1_141 = arith.constant 1 : index
    %c0_142 = arith.constant 0 : index
    %c0_143 = arith.constant 0 : index
    %167 = vector.load %arg5[%c1_141, %c0_142, %c0_143] : memref<18x24x128xf32, #tpu.memory_space<vmem>>, vector<16x24x128xf32>
    %168 = arith.addf %167, %166 : vector<16x24x128xf32>
    %169 = arith.truncf %168 : vector<16x24x128xf32> to vector<16x24x128xbf16>
    %c0_144 = arith.constant 0 : index
    %c0_145 = arith.constant 0 : index
    %c0_146 = arith.constant 0 : index
    %c0_147 = arith.constant 0 : index
    %170 = vector.load %arg4[%c0_144, %c0_145, %c0_146, %c0_147] : memref<1x16x24x128xbf16, #tpu.memory_space<vmem>>, vector<1x16x24x128xbf16>
    %171 = vector.shape_cast %170 : vector<1x16x24x128xbf16> to vector<16x24x128xbf16>
    %172 = vector.shape_cast %169 : vector<16x24x128xbf16> to vector<1x16x24x128xbf16>
    tpu.vector_store %arg4[%c0_144, %c0_145, %c0_146, %c0_147], %172 {strides = array<i32>} : memref<1x16x24x128xbf16, #tpu.memory_space<vmem>>, vector<1x16x24x128xbf16>,
    return
  }
  func.func @transform_0(%arg0: i32) -> (i32, i32, i32, i32) {
    %c0_i32 = arith.constant 0 : i32
    %c0_i32_0 = arith.constant 0 : i32
    %c0_i32_1 = arith.constant 0 : i32
    %c0_i32_2 = arith.constant 0 : i32
    return %arg0, %c0_i32, %c0_i32_0, %c0_i32_1 : i32, i32, i32, i32
  }
  func.func @transform_1(%arg0: i32) -> (i32, i32, i32) {
    %c0_i32 = arith.constant 0 : i32
    %c0_i32_0 = arith.constant 0 : i32
    %c0_i32_1 = arith.constant 0 : i32
    %c0_i32_2 = arith.constant 0 : i32
    return %c0_i32, %c0_i32_0, %c0_i32_1 : i32, i32, i32
  }
  func.func @transform_2(%arg0: i32) -> (i32, i32, i32) {
    %c0_i32 = arith.constant 0 : i32
    %c0_i32_0 = arith.constant 0 : i32
    %c0_i32_1 = arith.constant 0 : i32
    %c0_i32_2 = arith.constant 0 : i32
    return %c0_i32, %c0_i32_0, %c0_i32_1 : i32, i32, i32
  }
  func.func @transform_3(%arg0: i32) -> (i32, i32, i32, i32) {
    %c0_i32 = arith.constant 0 : i32
    %c0_i32_0 = arith.constant 0 : i32
    %c0_i32_1 = arith.constant 0 : i32
    %c0_i32_2 = arith.constant 0 : i32
    return %arg0, %c0_i32, %c0_i32_0, %c0_i32_1 : i32, i32, i32, i32
  }
}

</mosaic_0001>

<llo_original>
// kernel: residual_block.1
$region0: #{residual_block.1}
  #allocation0 [shape = 'u32[]', space=smem, size = 0x4, offset = 0x4, fixed_abs, tag = 'smem constant byte address 0x4 - core index']
  #allocation1 [shape = 'u32[72,128]{1,0:T(1,128)}', space=vmem, size = 0x9000, scoped, tag = 'internal scratch']
  #allocation2 [shape = 'f32[18,24,128]{2,1,0:T(8,128)}', space=vmem, size = 0x36000, scoped, tag = 'scratch operand']
  #allocation3 [shape = 'f32[18,24,128]{2,1,0:T(8,128)}', space=vmem, size = 0x36000, scoped, tag = 'scratch operand']
  %s0 = inlined_call_operand.vmem [shape: bf16[2,16,16,128], index: 0, kind: input, shape index: {}]
  %s1 = inlined_call_operand.vmem [shape: bf16[9,128,128], index: 1, kind: input, shape index: {}]
  %s2 = inlined_call_operand.vmem [shape: bf16[9,128,128], index: 2, kind: input, shape index: {}]
  %s3 = inlined_call_operand.vmem [shape: bf16[2,16,24,128], index: 3, kind: output, shape index: {}]
  %s4 = sld [smem:[#allocation0]]
  $region45: #{residual_block.1} parent=0
    _
  %s6 = ssub.s32 1, %s4
  %s7 = scalar_select 0, %s6, %s4
  loop: start=0, step=1, limit=4
  $region2: #{residual_block.1} parent=0 // loop_pre_header
    _
  $region3: #{residual_block.1} parent=0 // loop_header
    %s9 = sphi 0, %s13
    %p10 = scmp.ge.s32.totalorder %s9, 4
    %s19 = sphi 0, %s21
    %s22 = sphi 0, %s19
    %s23 = sphi 0, %s22
    %s39 = sphi 0, %s23
    %s43 = sphi 0, %s43
    %s45 = sphi 0, %s43
    %s46 = sphi 0, %s45
    %s60 = sphi 0, %s46
    %s64 = sphi 0, %s64
    %s66 = sphi 0, %s64
    %s67 = sphi 0, %s66
    %s81 = sphi 0, %s67
    %s87 = sphi 0, %s89
    %s90 = sphi 0, %s87
    %s91 = sphi 0, %s90
    %s107 = sphi 0, %s91
  $region4: #{residual_block.1} parent=0 // loop_header_branch
    %12 = sbr.rel (%p10) target = $region8
  $region5: #{residual_block.1} parent=0 // loop_body
    %s14 = ssub.s32 %s9, 1
    %s15 = ssub.s32 %s9, 2
    %s16 = sadd.s32 %s9, 1
    %s17 = ssub.s32 %s9, %s16
    %p18 = scmp.eq.s32.totalorder %s17, 0
    %s20 = sadd.s32 %s19, 1
    %s21 = scalar_select %p18, %s19, %s20
    %p24 = pneg %p18
    %p25 = scmp.eq.s32.totalorder %s9, 1
    %p26 = por %p24, %p25
    %p27 = scmp.ne.s32.totalorder %s19, %s22
    %p28 = scmp.eq.s32.totalorder %s9, 0
    %p29 = por %p27, %p28
    %p30 = scmp.ne.s32.totalorder %s19, %s22
    %p31 = scmp.eq.s32.totalorder %s14, 1
    %p32 = por %p30, %p31
    %p33 = scmp.ne.s32.totalorder %s22, %s23
    %p34 = scmp.eq.s32.totalorder %s14, 0
    %p35 = por %p33, %p34
    %p36 = scmp.ne.s32.totalorder %s22, %s23
    %p37 = scmp.eq.s32.totalorder %s15, 1
    %p38 = por %p36, %p37
    %p40 = scmp.ne.s32.totalorder %s23, %s39
    %p41 = scmp.eq.s32.totalorder %s15, 0
    %p42 = por %p40, %p41
    %s44 = sadd.s32 %s43, 1
    %p47 = scmp.eq.s32.totalorder %s9, 1
    %p48 = scmp.ne.s32.totalorder %s43, %s45
    %p49 = scmp.eq.s32.totalorder %s9, 0
    %p50 = por %p48, %p49
    %p51 = scmp.ne.s32.totalorder %s43, %s45
    %p52 = scmp.eq.s32.totalorder %s14, 1
    %p53 = por %p51, %p52
    %p54 = scmp.ne.s32.totalorder %s45, %s46
    %p55 = scmp.eq.s32.totalorder %s14, 0
    %p56 = por %p54, %p55
    %p57 = scmp.ne.s32.totalorder %s45, %s46
    %p58 = scmp.eq.s32.totalorder %s15, 1
    %p59 = por %p57, %p58
    %p61 = scmp.ne.s32.totalorder %s46, %s60
    %p62 = scmp.eq.s32.totalorder %s15, 0
    %p63 = por %p61, %p62
    %s65 = sadd.s32 %s64, 1
    %p68 = scmp.eq.s32.totalorder %s9, 1
    %p69 = scmp.ne.s32.totalorder %s64, %s66
    %p70 = scmp.eq.s32.totalorder %s9, 0
    %p71 = por %p69, %p70
    %p72 = scmp.ne.s32.totalorder %s64, %s66
    %p73 = scmp.eq.s32.totalorder %s14, 1
    %p74 = por %p72, %p73
    %p75 = scmp.ne.s32.totalorder %s66, %s67
    %p76 = scmp.eq.s32.totalorder %s14, 0
    %p77 = por %p75, %p76
    %p78 = scmp.ne.s32.totalorder %s66, %s67
    %p79 = scmp.eq.s32.totalorder %s15, 1
    %p80 = por %p78, %p79
    %p82 = scmp.ne.s32.totalorder %s67, %s81
    %p83 = scmp.eq.s32.totalorder %s15, 0
    %p84 = por %p82, %p83
    %s85 = ssub.s32 %s9, %s16
    %p86 = scmp.eq.s32.totalorder %s85, 0
    %s88 = sadd.s32 %s87, 1
    %s89 = scalar_select %p86, %s87, %s88
    %p92 = pneg %p86
    %p93 = scmp.eq.s32.totalorder %s9, 1
    %p94 = por %p92, %p93
    %p95 = scmp.ne.s32.totalorder %s87, %s90
    %p96 = scmp.eq.s32.totalorder %s9, 0
    %p97 = por %p95, %p96
    %p98 = scmp.ne.s32.totalorder %s87, %s90
    %p99 = scmp.eq.s32.totalorder %s14, 1
    %p100 = por %p98, %p99
    %p101 = scmp.ne.s32.totalorder %s90, %s91
    %p102 = scmp.eq.s32.totalorder %s14, 0
    %p103 = por %p101, %p102
    %p104 = scmp.ne.s32.totalorder %s90, %s91
    %p105 = scmp.eq.s32.totalorder %s15, 1
    %p106 = por %p104, %p105
    %p108 = scmp.ne.s32.totalorder %s91, %s107
    %p109 = scmp.eq.s32.totalorder %s15, 0
    %p110 = por %p108, %p109
    %p111 = scmp.le.s32.totalorder 1, %s9
    %p112 = scmp.lt.s32.totalorder %s9, 3
    %p113 = pnand %p111, %p112
    %p114 = pneg %p113
    // Predicated region
    $region9: #{residual_block.1} parent=5 // pred_check
      _
    $region10: #{residual_block.1} parent=5 // pred_check_branch
      %116 = sbr.rel (%p113) target = $region12
    $region11: #{residual_block.1} parent=5 // pred_region
      %s117 = ssub.s32 %s9, 1
      // Predicated region
      $region13: #{residual_block.1} parent=11 // pred_check
        %p118 = pneg %p56
      $region14: #{residual_block.1} parent=11 // pred_check_branch
        %120 = sbr.rel (%p118) target = $region16
      $region15: #{residual_block.1} parent=11 // pred_region
        _
      $region16: #{residual_block.1} parent=11 // pred_fallthru
        _
      // Predicated region
      $region17: #{residual_block.1} parent=11 // pred_check
        %p121 = pneg %p77
      $region18: #{residual_block.1} parent=11 // pred_check_branch
        %123 = sbr.rel (%p121) target = $region20
      $region19: #{residual_block.1} parent=11 // pred_region
        _
      $region20: #{residual_block.1} parent=11 // pred_fallthru
        _
    $region12: #{residual_block.1} parent=5 // pred_fallthru
      _
    %p124 = scmp.lt.s32.totalorder %s9, 2
    // Predicated region
    $region21: #{residual_block.1} parent=5 // pred_check
      %p125 = pneg %p124
    $region22: #{residual_block.1} parent=5 // pred_check_branch
      %127 = sbr.rel (%p125) target = $region24
    $region23: #{residual_block.1} parent=5 // pred_region
      // Predicated region
      $region25: #{residual_block.1} parent=23 // pred_check
        %p128 = pneg %p29
      $region26: #{residual_block.1} parent=23 // pred_check_branch
        %130 = sbr.rel (%p128) target = $region28
      $region27: #{residual_block.1} parent=23 // pred_region
        %p131 = scmp.lt.s32.totalorder %s9, 1
        %s132 = scalar_select %p131, %s9, 1
        %s133 = smul.addr %s132, 32
        %s134 = smul.addr %s133, 4
        %s135 = scalar_lea.vmem %s0, %s134
      $region28: #{residual_block.1} parent=23 // pred_fallthru
        _
    $region24: #{residual_block.1} parent=5 // pred_fallthru
      _
    %p136 = scmp.le.s32.totalorder 1, %s9
    %p137 = scmp.lt.s32.totalorder %s9, 3
    %p138 = pnand %p136, %p137
    %p139 = pneg %p138
    // Predicated region
    $region29: #{residual_block.1} parent=5 // pred_check
      _
    $region30: #{residual_block.1} parent=5 // pred_check_branch
      %141 = sbr.rel (%p138) target = $region32
    $region31: #{residual_block.1} parent=5 // pred_region
      %s142 = ssub.s32 %s9, 1
      %p143 = scmp.lt.s32.totalorder %s14, 1
      %s144 = scalar_select %p143, %s14, 1
      %s145 = smul.addr %s144, 32
      %s146 = smul.addr %s145, 4
      %s147 = scalar_lea.vmem %s0, %s146
      %p148 = pneg %p35
      %p149 = pneg %p32
      %p150 = pneg %p56
      %p151 = pneg %p53
      %p152 = pneg %p77
      %p153 = pneg %p74
      %p154 = pneg %p103
      %p155 = pneg %p100
      %p156 = scmp.lt.s32.totalorder %s14, 1
      %s157 = scalar_select %p156, %s14, 1
      %s158 = smul.addr %s157, 48
      %s159 = smul.addr %s158, 4
      %s160 = scalar_lea.vmem %s3, %s159
      %p161 = scmp.lt.s32.totalorder %s14, 1
      %s162 = scalar_select %p161, %s14, 1
      %s163 = smul.addr %s162, 32
      %s164 = smul.addr %s163, 4
      %s165 = scalar_lea.vmem %s0, %s164
      %p166 = scmp.lt.s32.totalorder %s14, 1
      %s167 = scalar_select %p166, %s14, 1
      %s168 = smul.addr %s167, 48
      %s169 = smul.addr %s168, 4
      %s170 = scalar_lea.vmem %s3, %s169
      %v171 = vlaneseq
      %v172 = vshrl.u32 %v171, 7
      %v173 = vadd.s32 %v172, 8
      %v174 = vadd.s32 %v172, 16
      %vm175 = vcmp.ge.s32.totalorder %v172, 1
      %vm176 = vcmp.ge.s32.totalorder %v173, 1
      %vm177 = vcmp.ge.s32.totalorder %v174, 1
      %vm178 = vcmp.le.s32.totalorder %v172, 16
      %vm179 = vcmp.le.s32.totalorder %v173, 16
      %vm180 = vcmp.le.s32.totalorder %v174, 16
      %vm181 = vmand %vm175, %vm178
      %vm182 = vmand %vm176, %vm179
      %vm183 = vmand %vm177, %vm180
      %v184 = vsel %vm181, 1, 0
      %v185 = vsel %vm182, 1, 0
      %v186 = vsel %vm183, 1, 0
      %v187 = vcvt.s32.f32 %v184
      %v188 = vcvt.s32.f32 %v185
      %v189 = vcvt.s32.f32 %v186
      %v190 = vld [vmem:[%s165] sm:$0xf]
      %v191 = vld [vmem:[%s165 + $0x4] sm:$0xf]
      %v192 = vld [vmem:[%s165 + $0x8] sm:$0xf]
      %v193 = vld [vmem:[%s165 + $0xc] sm:$0xf]
      %v194 = vld [vmem:[%s165 + $0x10] sm:$0xf]
      %v195 = vld [vmem:[%s165 + $0x14] sm:$0xf]
      %v196 = vld [vmem:[%s165 + $0x18] sm:$0xf]
      %v197 = vld [vmem:[%s165 + $0x1c] sm:$0xf]
      %v198 = vld [vmem:[%s165 + $0x20] sm:$0xf]
      %v199 = vld [vmem:[%s165 + $0x24] sm:$0xf]
      %v200 = vld [vmem:[%s165 + $0x28] sm:$0xf]
      %v201 = vld [vmem:[%s165 + $0x2c] sm:$0xf]
      %v202 = vld [vmem:[%s165 + $0x30] sm:$0xf]
      %v203 = vld [vmem:[%s165 + $0x34] sm:$0xf]
      %v204 = vld [vmem:[%s165 + $0x38] sm:$0xf]
      %v205 = vld [vmem:[%s165 + $0x3c] sm:$0xf]
      %v206 = vld [vmem:[%s165 + $0x40] sm:$0xf]
      %v207 = vld [vmem:[%s165 + $0x44] sm:$0xf]
      %v208 = vld [vmem:[%s165 + $0x48] sm:$0xf]
      %v209 = vld [vmem:[%s165 + $0x4c] sm:$0xf]
      %v210 = vld [vmem:[%s165 + $0x50] sm:$0xf]
      %v211 = vld [vmem:[%s165 + $0x54] sm:$0xf]
      %v212 = vld [vmem:[%s165 + $0x58] sm:$0xf]
      %v213 = vld [vmem:[%s165 + $0x5c] sm:$0xf]
      %v214 = vld [vmem:[%s165 + $0x60] sm:$0xf]
      %v215 = vld [vmem:[%s165 + $0x64] sm:$0xf]
      %v216 = vld [vmem:[%s165 + $0x68] sm:$0xf]
      %v217 = vld [vmem:[%s165 + $0x6c] sm:$0xf]
      %v218 = vld [vmem:[%s165 + $0x70] sm:$0xf]
      %v219 = vld [vmem:[%s165 + $0x74] sm:$0xf]
      %v220 = vld [vmem:[%s165 + $0x78] sm:$0xf]
      %v221 = vld [vmem:[%s165 + $0x7c] sm:$0xf]
      %v222 = vunpack.c.l.bf16 %v190
      %v223 = vunpack.c.l.bf16 %v191
      %v224 = vunpack.c.l.bf16 %v192
      %v225 = vunpack.c.l.bf16 %v193
      %v226 = vunpack.c.l.bf16 %v194
      %v227 = vunpack.c.l.bf16 %v195
      %v228 = vunpack.c.l.bf16 %v196
      %v229 = vunpack.c.l.bf16 %v197
      %v230 = vunpack.c.l.bf16 %v198
      %v231 = vunpack.c.l.bf16 %v199
      %v232 = vunpack.c.l.bf16 %v200
      %v233 = vunpack.c.l.bf16 %v201
      %v234 = vunpack.c.l.bf16 %v202
      %v235 = vunpack.c.l.bf16 %v203
      %v236 = vunpack.c.l.bf16 %v204
      %v237 = vunpack.c.l.bf16 %v205
      %v238 = vunpack.c.l.bf16 %v206
      %v239 = vunpack.c.l.bf16 %v207
      %v240 = vunpack.c.l.bf16 %v208
      %v241 = vunpack.c.l.bf16 %v209
      %v242 = vunpack.c.l.bf16 %v210
      %v243 = vunpack.c.l.bf16 %v211
      %v244 = vunpack.c.l.bf16 %v212
      %v245 = vunpack.c.l.bf16 %v213
      %v246 = vunpack.c.l.bf16 %v214
      %v247 = vunpack.c.l.bf16 %v215
      %v248 = vunpack.c.l.bf16 %v216
      %v249 = vunpack.c.l.bf16 %v217
      %v250 = vunpack.c.l.bf16 %v218
      %v251 = vunpack.c.l.bf16 %v219
      %v252 = vunpack.c.l.bf16 %v220
      %v253 = vunpack.c.l.bf16 %v221
      %254 = vst [vmem:[#allocation2 + $0x12] sm:$0x3f] 0.0
      %255 = vst [vmem:[#allocation2 + $0x2a] sm:$0x3f] 0.0
      %256 = vst [vmem:[#allocation2 + $0x42] sm:$0x3f] 0.0
      %257 = vst [vmem:[#allocation2 + $0x5a] sm:$0x3f] 0.0
      %258 = vst [vmem:[#allocation2 + $0x72] sm:$0x3f] 0.0
      %259 = vst [vmem:[#allocation2 + $0x8a] sm:$0x3f] 0.0
      %260 = vst [vmem:[#allocation2 + $0xa2] sm:$0x3f] 0.0
      %261 = vst [vmem:[#allocation2 + $0xba] sm:$0x3f] 0.0
      %262 = vst [vmem:[#allocation2 + $0xd2] sm:$0x3f] 0.0
      %263 = vst [vmem:[#allocation2 + $0xea] sm:$0x3f] 0.0
      %264 = vst [vmem:[#allocation2 + $0x102] sm:$0x3f] 0.0
      %265 = vst [vmem:[#allocation2 + $0x11a] sm:$0x3f] 0.0
      %266 = vst [vmem:[#allocation2 + $0x132] sm:$0x3f] 0.0
      %267 = vst [vmem:[#allocation2 + $0x14a] sm:$0x3f] 0.0
      %268 = vst [vmem:[#allocation2 + $0x162] sm:$0x3f] 0.0
      %269 = vst [vmem:[#allocation2 + $0x17a] sm:$0x3f] 0.0
      %270 = vst [vmem:[#allocation2 + $0x192] sm:$0x3f] 0.0
      %271 = vst [vmem:[#allocation2 + $0x1aa] sm:$0x3f] 0.0
      %s272 = scalar_lea.vmem [#allocation2], 24
      %273 = vst [vmem:[%s272 + $0x1] sm:$0xff] %v222
      %274 = vst [vmem:[%s272 + $0x9] sm:$0xff] %v223
      %275 = vst [vmem:[%s272 + $0x19] sm:$0xff] %v224
      %276 = vst [vmem:[%s272 + $0x21] sm:$0xff] %v225
      %277 = vst [vmem:[%s272 + $0x31] sm:$0xff] %v226
      %278 = vst [vmem:[%s272 + $0x39] sm:$0xff] %v227
      %279 = vst [vmem:[%s272 + $0x49] sm:$0xff] %v228
      %280 = vst [vmem:[%s272 + $0x51] sm:$0xff] %v229
      %281 = vst [vmem:[%s272 + $0x61] sm:$0xff] %v230
      %282 = vst [vmem:[%s272 + $0x69] sm:$0xff] %v231
      %283 = vst [vmem:[%s272 + $0x79] sm:$0xff] %v232
      %284 = vst [vmem:[%s272 + $0x81] sm:$0xff] %v233
      %285 = vst [vmem:[%s272 + $0x91] sm:$0xff] %v234
      %286 = vst [vmem:[%s272 + $0x99] sm:$0xff] %v235
      %287 = vst [vmem:[%s272 + $0xa9] sm:$0xff] %v236
      %288 = vst [vmem:[%s272 + $0xb1] sm:$0xff] %v237
      %289 = vst [vmem:[%s272 + $0xc1] sm:$0xff] %v238
      %290 = vst [vmem:[%s272 + $0xc9] sm:$0xff] %v239
      %291 = vst [vmem:[%s272 + $0xd9] sm:$0xff] %v240
      %292 = vst [vmem:[%s272 + $0xe1] sm:$0xff] %v241
      %293 = vst [vmem:[%s272 + $0xf1] sm:$0xff] %v242
      %294 = vst [vmem:[%s272 + $0xf9] sm:$0xff] %v243
      %295 = vst [vmem:[%s272 + $0x109] sm:$0xff] %v244
      %296 = vst [vmem:[%s272 + $0x111] sm:$0xff] %v245
      %297 = vst [vmem:[%s272 + $0x121] sm:$0xff] %v246
      %298 = vst [vmem:[%s272 + $0x129] sm:$0xff] %v247
      %299 = vst [vmem:[%s272 + $0x139] sm:$0xff] %v248
      %300 = vst [vmem:[%s272 + $0x141] sm:$0xff] %v249
      %301 = vst [vmem:[%s272 + $0x151] sm:$0xff] %v250
      %302 = vst [vmem:[%s272 + $0x159] sm:$0xff] %v251
      %303 = vst [vmem:[%s272 + $0x169] sm:$0xff] %v252
      %304 = vst [vmem:[%s272 + $0x171] sm:$0xff] %v253
      %305 = vst [vmem:[%s272 - $0x1] sm:$0x2] %v222
      %306 = vst [vmem:[%s272 + $0x17] sm:$0x2] %v224
      %307 = vst [vmem:[%s272 + $0x2f] sm:$0x2] %v226
      %308 = vst [vmem:[%s272 + $0x47] sm:$0x2] %v228
      %309 = vst [vmem:[%s272 + $0x5f] sm:$0x2] %v230
      %310 = vst [vmem:[%s272 + $0x77] sm:$0x2] %v232
      %311 = vst [vmem:[%s272 + $0x8f] sm:$0x2] %v234
      %312 = vst [vmem:[%s272 + $0xa7] sm:$0x2] %v236
      %313 = vst [vmem:[%s272 + $0xbf] sm:$0x2] %v238
      %314 = vst [vmem:[%s272 + $0xd7] sm:$0x2] %v240
      %315 = vst [vmem:[%s272 + $0xef] sm:$0x2] %v242
      %316 = vst [vmem:[%s272 + $0x107] sm:$0x2] %v244
      %317 = vst [vmem:[%s272 + $0x11f] sm:$0x2] %v246
      %318 = vst [vmem:[%s272 + $0x137] sm:$0x2] %v248
      %319 = vst [vmem:[%s272 + $0x14f] sm:$0x2] %v250
      %320 = vst [vmem:[%s272 + $0x167] sm:$0x2] %v252
      %321 = vst [vmem:[%s272 + $0xb] sm:$0x40] %v223
      %322 = vst [vmem:[%s272 + $0x23] sm:$0x40] %v225
      %323 = vst [vmem:[%s272 + $0x3b] sm:$0x40] %v227
      %324 = vst [vmem:[%s272 + $0x53] sm:$0x40] %v229
      %325 = vst [vmem:[%s272 + $0x6b] sm:$0x40] %v231
      %326 = vst [vmem:[%s272 + $0x83] sm:$0x40] %v233
      %327 = vst [vmem:[%s272 + $0x9b] sm:$0x40] %v235
      %328 = vst [vmem:[%s272 + $0xb3] sm:$0x40] %v237
      %329 = vst [vmem:[%s272 + $0xcb] sm:$0x40] %v239
      %330 = vst [vmem:[%s272 + $0xe3] sm:$0x40] %v241
      %331 = vst [vmem:[%s272 + $0xfb] sm:$0x40] %v243
      %332 = vst [vmem:[%s272 + $0x113] sm:$0x40] %v245
      %333 = vst [vmem:[%s272 + $0x12b] sm:$0x40] %v247
      %334 = vst [vmem:[%s272 + $0x143] sm:$0x40] %v249
      %335 = vst [vmem:[%s272 + $0x15b] sm:$0x40] %v251
      %336 = vst [vmem:[%s272 + $0x173] sm:$0x40] %v253
      %s337 = scalar_lea.vmem [#allocation2], 48
      %v338 = vld [vmem:[%s337] sm:$0xff]
      %v339 = vld [vmem:[%s337 + $0x8] sm:$0xff]
      %v340 = vld [vmem:[%s337 + $0x10] sm:$0xff]
      %341 = vst [vmem:[#allocation2] sm:$0xff] %v338
      %342 = vst [vmem:[#allocation2 + $0x8] sm:$0xff] %v339
      %343 = vst [vmem:[#allocation2 + $0x10] sm:$0xff] %v340
      %s344 = scalar_lea.vmem [#allocation2], 360
      %v345 = vld [vmem:[%s344] sm:$0xff]
      %v346 = vld [vmem:[%s344 + $0x8] sm:$0xff]
      %v347 = vld [vmem:[%s344 + $0x10] sm:$0xff]
      %s348 = scalar_lea.vmem [#allocation2], 408
      %349 = vst [vmem:[%s348] sm:$0xff] %v345
      %350 = vst [vmem:[%s348 + $0x8] sm:$0xff] %v346
      %351 = vst [vmem:[%s348 + $0x10] sm:$0xff] %v347
      %v352 = vld [vmem:[#allocation2] sm:$0xff]
      %v353 = vld [vmem:[#allocation2 + $0x8] sm:$0xff]
      %v354 = vld [vmem:[#allocation2 + $0x10] sm:$0xff]
      %v355 = vld [vmem:[#allocation2 + $0x18] sm:$0xff]
      %v356 = vld [vmem:[#allocation2 + $0x20] sm:$0xff]
      %v357 = vld [vmem:[#allocation2 + $0x28] sm:$0xff]
      %v358 = vld [vmem:[#allocation2 + $0x30] sm:$0xff]
      %v359 = vld [vmem:[#allocation2 + $0x38] sm:$0xff]
      %v360 = vld [vmem:[#allocation2 + $0x40] sm:$0xff]
      %v361 = vld [vmem:[#allocation2 + $0x48] sm:$0xff]
      %v362 = vld [vmem:[#allocation2 + $0x50] sm:$0xff]
      %v363 = vld [vmem:[#allocation2 + $0x58] sm:$0xff]
      %v364 = vld [vmem:[#allocation2 + $0x60] sm:$0xff]
      %v365 = vld [vmem:[#allocation2 + $0x68] sm:$0xff]
      %v366 = vld [vmem:[#allocation2 + $0x70] sm:$0xff]
      %v367 = vld [vmem:[#allocation2 + $0x78] sm:$0xff]
      %v368 = vld [vmem:[#allocation2 + $0x80] sm:$0xff]
      %v369 = vld [vmem:[#allocation2 + $0x88] sm:$0xff]
      %v370 = vld [vmem:[#allocation2 + $0x90] sm:$0xff]
      %v371 = vld [vmem:[#allocation2 + $0x98] sm:$0xff]
      %v372 = vld [vmem:[#allocation2 + $0xa0] sm:$0xff]
      %v373 = vld [vmem:[#allocation2 + $0xa8] sm:$0xff]
      %v374 = vld [vmem:[#allocation2 + $0xb0] sm:$0xff]
      %v375 = vld [vmem:[#allocation2 + $0xb8] sm:$0xff]
      %v376 = vld [vmem:[#allocation2 + $0xc0] sm:$0xff]
      %v377 = vld [vmem:[#allocation2 + $0xc8] sm:$0xff]
      %v378 = vld [vmem:[#allocation2 + $0xd0] sm:$0xff]
      %v379 = vld [vmem:[#allocation2 + $0xd8] sm:$0xff]
      %v380 = vld [vmem:[#allocation2 + $0xe0] sm:$0xff]
      %v381 = vld [vmem:[#allocation2 + $0xe8] sm:$0xff]
      %v382 = vld [vmem:[#allocation2 + $0xf0] sm:$0xff]
      %v383 = vld [vmem:[#allocation2 + $0xf8] sm:$0xff]
      %v384 = vld [vmem:[#allocation2 + $0x100] sm:$0xff]
      %v385 = vld [vmem:[#allocation2 + $0x108] sm:$0xff]
      %v386 = vld [vmem:[#allocation2 + $0x110] sm:$0xff]
      %v387 = vld [vmem:[#allocation2 + $0x118] sm:$0xff]
      %v388 = vld [vmem:[#allocation2 + $0x120] sm:$0xff]
      %v389 = vld [vmem:[#allocation2 + $0x128] sm:$0xff]
      %v390 = vld [vmem:[#allocation2 + $0x130] sm:$0xff]
      %v391 = vld [vmem:[#allocation2 + $0x138] sm:$0xff]
      %v392 = vld [vmem:[#allocation2 + $0x140] sm:$0xff]
      %v393 = vld [vmem:[#allocation2 + $0x148] sm:$0xff]
      %v394 = vld [vmem:[#allocation2 + $0x150] sm:$0xff]
      %v395 = vld [vmem:[#allocation2 + $0x158] sm:$0xff]
      %v396 = vld [vmem:[#allocation2 + $0x160] sm:$0xff]
      %v397 = vld [vmem:[#allocation2 + $0x168] sm:$0xff]
      %v398 = vld [vmem:[#allocation2 + $0x170] sm:$0xff]
      %v399 = vld [vmem:[#allocation2 + $0x178] sm:$0xff]
      %v400 = vpack.c.bf16 %v353, %v352
      %v401 = vpack.c.bf16 %v355, %v354
      %v402 = vpack.c.bf16 %v357, %v356
      %v403 = vpack.c.bf16 %v359, %v358
      %v404 = vpack.c.bf16 %v361, %v360
      %v405 = vpack.c.bf16 %v363, %v362
      %v406 = vpack.c.bf16 %v365, %v364
      %v407 = vpack.c.bf16 %v367, %v366
      %v408 = vpack.c.bf16 %v369, %v368
      %v409 = vpack.c.bf16 %v371, %v370
      %v410 = vpack.c.bf16 %v373, %v372
      %v411 = vpack.c.bf16 %v375, %v374
      %v412 = vpack.c.bf16 %v377, %v376
      %v413 = vpack.c.bf16 %v379, %v378
      %v414 = vpack.c.bf16 %v381, %v380
      %v415 = vpack.c.bf16 %v383, %v382
      %v416 = vpack.c.bf16 %v385, %v384
      %v417 = vpack.c.bf16 %v387, %v386
      %v418 = vpack.c.bf16 %v389, %v388
      %v419 = vpack.c.bf16 %v391, %v390
      %v420 = vpack.c.bf16 %v393, %v392
      %v421 = vpack.c.bf16 %v395, %v394
      %v422 = vpack.c.bf16 %v397, %v396
      %v423 = vpack.c.bf16 %v399, %v398
      %v424 = vld [vmem:[%s1] sm:$0xf]
      %v425 = vld [vmem:[%s1 + $0x4] sm:$0xf]
      %v426 = vld [vmem:[%s1 + $0x8] sm:$0xf]
      %v427 = vld [vmem:[%s1 + $0xc] sm:$0xf]
      %v428 = vld [vmem:[%s1 + $0x10] sm:$0xf]
      %v429 = vld [vmem:[%s1 + $0x14] sm:$0xf]
      %v430 = vld [vmem:[%s1 + $0x18] sm:$0xf]
      %v431 = vld [vmem:[%s1 + $0x1c] sm:$0xf]
      %v432 = vld [vmem:[%s1 + $0x20] sm:$0xf]
      %v433 = vld [vmem:[%s1 + $0x24] sm:$0xf]
      %v434 = vld [vmem:[%s1 + $0x28] sm:$0xf]
      %v435 = vld [vmem:[%s1 + $0x2c] sm:$0xf]
      %v436 = vld [vmem:[%s1 + $0x30] sm:$0xf]
      %v437 = vld [vmem:[%s1 + $0x34] sm:$0xf]
      %v438 = vld [vmem:[%s1 + $0x38] sm:$0xf]
      %v439 = vld [vmem:[%s1 + $0x3c] sm:$0xf]
      %s440 = scalar_lea.vmem %s1, 64
      %v441 = vld [vmem:[%s440] sm:$0xf]
      %v442 = vld [vmem:[%s440 + $0x4] sm:$0xf]
      %v443 = vld [vmem:[%s440 + $0x8] sm:$0xf]
      %v444 = vld [vmem:[%s440 + $0xc] sm:$0xf]
      %v445 = vld [vmem:[%s440 + $0x10] sm:$0xf]
      %v446 = vld [vmem:[%s440 + $0x14] sm:$0xf]
      %v447 = vld [vmem:[%s440 + $0x18] sm:$0xf]
      %v448 = vld [vmem:[%s440 + $0x1c] sm:$0xf]
      %v449 = vld [vmem:[%s440 + $0x20] sm:$0xf]
      %v450 = vld [vmem:[%s440 + $0x24] sm:$0xf]
      %v451 = vld [vmem:[%s440 + $0x28] sm:$0xf]
      %v452 = vld [vmem:[%s440 + $0x2c] sm:$0xf]
      %v453 = vld [vmem:[%s440 + $0x30] sm:$0xf]
      %v454 = vld [vmem:[%s440 + $0x34] sm:$0xf]
      %v455 = vld [vmem:[%s440 + $0x38] sm:$0xf]
      %v456 = vld [vmem:[%s440 + $0x3c] sm:$0xf]
      %s457 = scalar_lea.vmem %s1, 128
      %v458 = vld [vmem:[%s457] sm:$0xf]
      %v459 = vld [vmem:[%s457 + $0x4] sm:$0xf]
      %v460 = vld [vmem:[%s457 + $0x8] sm:$0xf]
      %v461 = vld [vmem:[%s457 + $0xc] sm:$0xf]
      %v462 = vld [vmem:[%s457 + $0x10] sm:$0xf]
      %v463 = vld [vmem:[%s457 + $0x14] sm:$0xf]
      %v464 = vld [vmem:[%s457 + $0x18] sm:$0xf]
      %v465 = vld [vmem:[%s457 + $0x1c] sm:$0xf]
      %v466 = vld [vmem:[%s457 + $0x20] sm:$0xf]
      %v467 = vld [vmem:[%s457 + $0x24] sm:$0xf]
      %v468 = vld [vmem:[%s457 + $0x28] sm:$0xf]
      %v469 = vld [vmem:[%s457 + $0x2c] sm:$0xf]
      %v470 = vld [vmem:[%s457 + $0x30] sm:$0xf]
      %v471 = vld [vmem:[%s457 + $0x34] sm:$0xf]
      %v472 = vld [vmem:[%s457 + $0x38] sm:$0xf]
      %v473 = vld [vmem:[%s457 + $0x3c] sm:$0xf]
      %v474 = vld [vmem:[%s272] sm:$0xff]
      %v475 = vld [vmem:[%s272 + $0x8] sm:$0xff]
      %v476 = vld [vmem:[%s272 + $0x10] sm:$0xff]
      %v477 = vld [vmem:[%s272 + $0x18] sm:$0xff]
      %v478 = vld [vmem:[%s272 + $0x20] sm:$0xff]
      %v479 = vld [vmem:[%s272 + $0x28] sm:$0xff]
      %v480 = vld [vmem:[%s272 + $0x30] sm:$0xff]
      %v481 = vld [vmem:[%s272 + $0x38] sm:$0xff]
      %v482 = vld [vmem:[%s272 + $0x40] sm:$0xff]
      %v483 = vld [vmem:[%s272 + $0x48] sm:$0xff]
      %v484 = vld [vmem:[%s272 + $0x50] sm:$0xff]
      %v485 = vld [vmem:[%s272 + $0x58] sm:$0xff]
      %v486 = vld [vmem:[%s272 + $0x60] sm:$0xff]
      %v487 = vld [vmem:[%s272 + $0x68] sm:$0xff]
      %v488 = vld [vmem:[%s272 + $0x70] sm:$0xff]
      %v489 = vld [vmem:[%s272 + $0x78] sm:$0xff]
      %v490 = vld [vmem:[%s272 + $0x80] sm:$0xff]
      %v491 = vld [vmem:[%s272 + $0x88] sm:$0xff]
      %v492 = vld [vmem:[%s272 + $0x90] sm:$0xff]
      %v493 = vld [vmem:[%s272 + $0x98] sm:$0xff]
      %v494 = vld [vmem:[%s272 + $0xa0] sm:$0xff]
      %v495 = vld [vmem:[%s272 + $0xa8] sm:$0xff]
      %v496 = vld [vmem:[%s272 + $0xb0] sm:$0xff]
      %v497 = vld [vmem:[%s272 + $0xb8] sm:$0xff]
      %v498 = vld [vmem:[%s272 + $0xc0] sm:$0xff]
      %v499 = vld [vmem:[%s272 + $0xc8] sm:$0xff]
      %v500 = vld [vmem:[%s272 + $0xd0] sm:$0xff]
      %v501 = vld [vmem:[%s272 + $0xd8] sm:$0xff]
      %v502 = vld [vmem:[%s272 + $0xe0] sm:$0xff]
      %v503 = vld [vmem:[%s272 + $0xe8] sm:$0xff]
      %v504 = vld [vmem:[%s272 + $0xf0] sm:$0xff]
      %v505 = vld [vmem:[%s272 + $0xf8] sm:$0xff]
      %v506 = vld [vmem:[%s272 + $0x100] sm:$0xff]
      %v507 = vld [vmem:[%s272 + $0x108] sm:$0xff]
      %v508 = vld [vmem:[%s272 + $0x110] sm:$0xff]
      %v509 = vld [vmem:[%s272 + $0x118] sm:$0xff]
      %v510 = vld [vmem:[%s272 + $0x120] sm:$0xff]
      %v511 = vld [vmem:[%s272 + $0x128] sm:$0xff]
      %v512 = vld [vmem:[%s272 + $0x130] sm:$0xff]
      %v513 = vld [vmem:[%s272 + $0x138] sm:$0xff]
      %v514 = vld [vmem:[%s272 + $0x140] sm:$0xff]
      %v515 = vld [vmem:[%s272 + $0x148] sm:$0xff]
      %v516 = vld [vmem:[%s272 + $0x150] sm:$0xff]
      %v517 = vld [vmem:[%s272 + $0x158] sm:$0xff]
      %v518 = vld [vmem:[%s272 + $0x160] sm:$0xff]
      %v519 = vld [vmem:[%s272 + $0x168] sm:$0xff]
      %v520 = vld [vmem:[%s272 + $0x170] sm:$0xff]
      %v521 = vld [vmem:[%s272 + $0x178] sm:$0xff]
      %v522 = vpack.c.bf16 %v475, %v474
      %v523 = vpack.c.bf16 %v477, %v476
      %v524 = vpack.c.bf16 %v479, %v478
      %v525 = vpack.c.bf16 %v481, %v480
      %v526 = vpack.c.bf16 %v483, %v482
      %v527 = vpack.c.bf16 %v485, %v484
      %v528 = vpack.c.bf16 %v487, %v486
      %v529 = vpack.c.bf16 %v489, %v488
      %v530 = vpack.c.bf16 %v491, %v490
      %v531 = vpack.c.bf16 %v493, %v492
      %v532 = vpack.c.bf16 %v495, %v494
      %v533 = vpack.c.bf16 %v497, %v496
      %v534 = vpack.c.bf16 %v499, %v498
      %v535 = vpack.c.bf16 %v501, %v500
      %v536 = vpack.c.bf16 %v503, %v502
      %v537 = vpack.c.bf16 %v505, %v504
      %v538 = vpack.c.bf16 %v507, %v506
      %v539 = vpack.c.bf16 %v509, %v508
      %v540 = vpack.c.bf16 %v511, %v510
      %v541 = vpack.c.bf16 %v513, %v512
      %v542 = vpack.c.bf16 %v515, %v514
      %v543 = vpack.c.bf16 %v517, %v516
      %v544 = vpack.c.bf16 %v519, %v518
      %v545 = vpack.c.bf16 %v521, %v520
      %s546 = scalar_lea.vmem %s1, 192
      %v547 = vld [vmem:[%s546] sm:$0xf]
      %v548 = vld [vmem:[%s546 + $0x4] sm:$0xf]
      %v549 = vld [vmem:[%s546 + $0x8] sm:$0xf]
      %v550 = vld [vmem:[%s546 + $0xc] sm:$0xf]
      %v551 = vld [vmem:[%s546 + $0x10] sm:$0xf]
      %v552 = vld [vmem:[%s546 + $0x14] sm:$0xf]
      %v553 = vld [vmem:[%s546 + $0x18] sm:$0xf]
      %v554 = vld [vmem:[%s546 + $0x1c] sm:$0xf]
      %v555 = vld [vmem:[%s546 + $0x20] sm:$0xf]
      %v556 = vld [vmem:[%s546 + $0x24] sm:$0xf]
      %v557 = vld [vmem:[%s546 + $0x28] sm:$0xf]
      %v558 = vld [vmem:[%s546 + $0x2c] sm:$0xf]
      %v559 = vld [vmem:[%s546 + $0x30] sm:$0xf]
      %v560 = vld [vmem:[%s546 + $0x34] sm:$0xf]
      %v561 = vld [vmem:[%s546 + $0x38] sm:$0xf]
      %v562 = vld [vmem:[%s546 + $0x3c] sm:$0xf]
      %v579 = vunpack.c.l.b16 %v547
      %v580 = vunpack.c.l.b16 %v548
      %v581 = vunpack.c.l.b16 %v549
      %v582 = vunpack.c.l.b16 %v550
      %v583 = vunpack.c.l.b16 %v551
      %v584 = vunpack.c.l.b16 %v552
      %v585 = vunpack.c.l.b16 %v553
      %v586 = vunpack.c.l.b16 %v554
      %v587 = vunpack.c.l.b16 %v555
      %v588 = vunpack.c.l.b16 %v556
      %v589 = vunpack.c.l.b16 %v557
      %v590 = vunpack.c.l.b16 %v558
      %v591 = vunpack.c.l.b16 %v559
      %v592 = vunpack.c.l.b16 %v560
      %v593 = vunpack.c.l.b16 %v561
      %v594 = vunpack.c.l.b16 %v562
      %v595 = vpack.c.b16 %v580, %v579
      %v596 = vpack.c.b16 %v582, %v581
      %v597 = vpack.c.b16 %v584, %v583
      %v598 = vpack.c.b16 %v586, %v585
      %v599 = vpack.c.b16 %v588, %v587
      %v600 = vpack.c.b16 %v590, %v589
      %v601 = vpack.c.b16 %v592, %v591
      %v602 = vpack.c.b16 %v594, %v593
      %611 = vmatpush.bf16.msra.mxu0 %v602
      %612 = vmatpush.bf16.msra.mxu0 %v601
      %613 = vmatpush.bf16.msra.mxu0 %v600
      %614 = vmatpush.bf16.msra.mxu0 %v599
      %615 = vmatpush.bf16.msra.mxu0 %v598
      %616 = vmatpush.bf16.msra.mxu0 %v597
      %617 = vmatpush.bf16.msra.mxu0 %v596
      %618 = vmatpush.bf16.msra.mxu0 %v595
      %619 = vmatmul.bf16.gmra.mxu0 %v522
      %v620 = vpop.f32.mrf.mxu0
      %v621 = vadd.f32 0.0, %v620
      %v622 = vpop.f32.mrf.mxu0
      %v623 = vadd.f32 0.0, %v622
      %624 = vmatmul.bf16.gmra.mxu0 %v523
      %v625 = vpop.f32.mrf.mxu0
      %v626 = vadd.f32 0.0, %v625
      %v627 = vpop.f32.mrf.mxu0
      %v628 = vadd.f32 0.0, %v627
      %629 = vmatmul.bf16.gmra.mxu0 %v524
      %v630 = vpop.f32.mrf.mxu0
      %v631 = vadd.f32 0.0, %v630
      %v632 = vpop.f32.mrf.mxu0
      %v633 = vadd.f32 0.0, %v632
      %634 = vmatmul.bf16.gmra.mxu0 %v525
      %v635 = vpop.f32.mrf.mxu0
      %v636 = vadd.f32 0.0, %v635
      %v637 = vpop.f32.mrf.mxu0
      %v638 = vadd.f32 0.0, %v637
      %639 = vmatmul.bf16.gmra.mxu0 %v526
      %v640 = vpop.f32.mrf.mxu0
      %v641 = vadd.f32 0.0, %v640
      %v642 = vpop.f32.mrf.mxu0
      %v643 = vadd.f32 0.0, %v642
      %644 = vmatmul.bf16.gmra.mxu0 %v527
      %v645 = vpop.f32.mrf.mxu0
      %v646 = vadd.f32 0.0, %v645
      %v647 = vpop.f32.mrf.mxu0
      %v648 = vadd.f32 0.0, %v647
      %649 = vmatmul.bf16.gmra.mxu0 %v528
      %v650 = vpop.f32.mrf.mxu0
      %v651 = vadd.f32 0.0, %v650
      %v652 = vpop.f32.mrf.mxu0
      %v653 = vadd.f32 0.0, %v652
      %654 = vmatmul.bf16.gmra.mxu0 %v529
      %v655 = vpop.f32.mrf.mxu0
      %v656 = vadd.f32 0.0, %v655
      %v657 = vpop.f32.mrf.mxu0
      %v658 = vadd.f32 0.0, %v657
      %659 = vmatmul.bf16.gmra.mxu0 %v530
      %v660 = vpop.f32.mrf.mxu0
      %v661 = vadd.f32 0.0, %v660
      %v662 = vpop.f32.mrf.mxu0
      %v663 = vadd.f32 0.0, %v662
      %664 = vmatmul.bf16.gmra.mxu0 %v531
      %v665 = vpop.f32.mrf.mxu0
      %v666 = vadd.f32 0.0, %v665
      %v667 = vpop.f32.mrf.mxu0
      %v668 = vadd.f32 0.0, %v667
      %669 = vmatmul.bf16.gmra.mxu0 %v532
      %v670 = vpop.f32.mrf.mxu0
      %v671 = vadd.f32 0.0, %v670
      %v672 = vpop.f32.mrf.mxu0
      %v673 = vadd.f32 0.0, %v672
      %674 = vmatmul.bf16.gmra.mxu0 %v533
      %v675 = vpop.f32.mrf.mxu0
      %v676 = vadd.f32 0.0, %v675
      %v677 = vpop.f32.mrf.mxu0
      %v678 = vadd.f32 0.0, %v677
      %679 = vmatmul.bf16.gmra.mxu0 %v534
      %v680 = vpop.f32.mrf.mxu0
      %v681 = vadd.f32 0.0, %v680
      %v682 = vpop.f32.mrf.mxu0
      %v683 = vadd.f32 0.0, %v682
      %684 = vmatmul.bf16.gmra.mxu0 %v535
      %v685 = vpop.f32.mrf.mxu0
      %v686 = vadd.f32 0.0, %v685
      %v687 = vpop.f32.mrf.mxu0
      %v688 = vadd.f32 0.0, %v687
      %689 = vmatmul.bf16.gmra.mxu0 %v536
      %v690 = vpop.f32.mrf.mxu0
      %v691 = vadd.f32 0.0, %v690
      %v692 = vpop.f32.mrf.mxu0
      %v693 = vadd.f32 0.0, %v692
      %694 = vmatmul.bf16.gmra.mxu0 %v537
      %v695 = vpop.f32.mrf.mxu0
      %v696 = vadd.f32 0.0, %v695
      %v697 = vpop.f32.mrf.mxu0
      %v698 = vadd.f32 0.0, %v697
      %699 = vmatmul.bf16.gmra.mxu0 %v538
      %v700 = vpop.f32.mrf.mxu0
      %v701 = vadd.f32 0.0, %v700
      %v702 = vpop.f32.mrf.mxu0
      %v703 = vadd.f32 0.0, %v702
      %704 = vmatmul.bf16.gmra.mxu0 %v539
      %v705 = vpop.f32.mrf.mxu0
      %v706 = vadd.f32 0.0, %v705
      %v707 = vpop.f32.mrf.mxu0
      %v708 = vadd.f32 0.0, %v707
      %709 = vmatmul.bf16.gmra.mxu0 %v540
      %v710 = vpop.f32.mrf.mxu0
      %v711 = vadd.f32 0.0, %v710
      %v712 = vpop.f32.mrf.mxu0
      %v713 = vadd.f32 0.0, %v712
      %714 = vmatmul.bf16.gmra.mxu0 %v541
      %v715 = vpop.f32.mrf.mxu0
      %v716 = vadd.f32 0.0, %v715
      %v717 = vpop.f32.mrf.mxu0
      %v718 = vadd.f32 0.0, %v717
      %719 = vmatmul.bf16.gmra.mxu0 %v542
      %v720 = vpop.f32.mrf.mxu0
      %v721 = vadd.f32 0.0, %v720
      %v722 = vpop.f32.mrf.mxu0
      %v723 = vadd.f32 0.0, %v722
      %724 = vmatmul.bf16.gmra.mxu0 %v543
      %v725 = vpop.f32.mrf.mxu0
      %v726 = vadd.f32 0.0, %v725
      %v727 = vpop.f32.mrf.mxu0
      %v728 = vadd.f32 0.0, %v727
      %729 = vmatmul.bf16.gmra.mxu0 %v544
      %v730 = vpop.f32.mrf.mxu0
      %v731 = vadd.f32 0.0, %v730
      %v732 = vpop.f32.mrf.mxu0
      %v733 = vadd.f32 0.0, %v732
      %734 = vmatmul.bf16.gmra.mxu0 %v545
      %v735 = vpop.f32.mrf.mxu0
      %v736 = vadd.f32 0.0, %v735
      %v737 = vpop.f32.mrf.mxu0
      %v738 = vadd.f32 0.0, %v737
      %739 = vdwg.mxu0
      %v756 = vunpack.c.l.b16 %v424
      %v757 = vunpack.c.l.b16 %v425
      %v758 = vunpack.c.l.b16 %v426
      %v759 = vunpack.c.l.b16 %v427
      %v760 = vunpack.c.l.b16 %v428
      %v761 = vunpack.c.l.b16 %v429
      %v762 = vunpack.c.l.b16 %v430
      %v763 = vunpack.c.l.b16 %v431
      %v764 = vunpack.c.l.b16 %v432
      %v765 = vunpack.c.l.b16 %v433
      %v766 = vunpack.c.l.b16 %v434
      %v767 = vunpack.c.l.b16 %v435
      %v768 = vunpack.c.l.b16 %v436
      %v769 = vunpack.c.l.b16 %v437
      %v770 = vunpack.c.l.b16 %v438
      %v771 = vunpack.c.l.b16 %v439
      %v772 = vpack.c.b16 %v757, %v756
      %v773 = vpack.c.b16 %v759, %v758
      %v774 = vpack.c.b16 %v761, %v760
      %v775 = vpack.c.b16 %v763, %v762
      %v776 = vpack.c.b16 %v765, %v764
      %v777 = vpack.c.b16 %v767, %v766
      %v778 = vpack.c.b16 %v769, %v768
      %v779 = vpack.c.b16 %v771, %v770
      %788 = vmatpush.bf16.msra.mxu0 %v779
      %789 = vmatpush.bf16.msra.mxu0 %v778
      %790 = vmatpush.bf16.msra.mxu0 %v777
      %791 = vmatpush.bf16.msra.mxu0 %v776
      %792 = vmatpush.bf16.msra.mxu0 %v775
      %793 = vmatpush.bf16.msra.mxu0 %v774
      %794 = vmatpush.bf16.msra.mxu0 %v773
      %795 = vmatpush.bf16.msra.mxu0 %v772
      %796 = vmatmul.bf16.gmra.mxu0 %v400
      %v797 = vpop.f32.mrf.mxu0
      %v798 = vadd.f32 %v621, %v797
      %v799 = vpop.f32.mrf.mxu0
      %v800 = vadd.f32 %v623, %v799
      %801 = vmatmul.bf16.gmra.mxu0 %v401
      %v802 = vpop.f32.mrf.mxu0
      %v803 = vadd.f32 %v626, %v802
      %v804 = vpop.f32.mrf.mxu0
      %v805 = vadd.f32 %v628, %v804
      %806 = vmatmul.bf16.gmra.mxu0 %v402
      %v807 = vpop.f32.mrf.mxu0
      %v808 = vadd.f32 %v631, %v807
      %v809 = vpop.f32.mrf.mxu0
      %v810 = vadd.f32 %v633, %v809
      %811 = vmatmul.bf16.gmra.mxu0 %v403
      %v812 = vpop.f32.mrf.mxu0
      %v813 = vadd.f32 %v636, %v812
      %v814 = vpop.f32.mrf.mxu0
      %v815 = vadd.f32 %v638, %v814
      %816 = vmatmul.bf16.gmra.mxu0 %v404
      %v817 = vpop.f32.mrf.mxu0
      %v818 = vadd.f32 %v641, %v817
      %v819 = vpop.f32.mrf.mxu0
      %v820 = vadd.f32 %v643, %v819
      %821 = vmatmul.bf16.gmra.mxu0 %v405
      %v822 = vpop.f32.mrf.mxu0
      %v823 = vadd.f32 %v646, %v822
      %v824 = vpop.f32.mrf.mxu0
      %v825 = vadd.f32 %v648, %v824
      %826 = vmatmul.bf16.gmra.mxu0 %v406
      %v827 = vpop.f32.mrf.mxu0
      %v828 = vadd.f32 %v651, %v827
      %v829 = vpop.f32.mrf.mxu0
      %v830 = vadd.f32 %v653, %v829
      %831 = vmatmul.bf16.gmra.mxu0 %v407
      %v832 = vpop.f32.mrf.mxu0
      %v833 = vadd.f32 %v656, %v832
      %v834 = vpop.f32.mrf.mxu0
      %v835 = vadd.f32 %v658, %v834
      %836 = vmatmul.bf16.gmra.mxu0 %v408
      %v837 = vpop.f32.mrf.mxu0
      %v838 = vadd.f32 %v661, %v837
      %v839 = vpop.f32.mrf.mxu0
      %v840 = vadd.f32 %v663, %v839
      %841 = vmatmul.bf16.gmra.mxu0 %v409
      %v842 = vpop.f32.mrf.mxu0
      %v843 = vadd.f32 %v666, %v842
      %v844 = vpop.f32.mrf.mxu0
      %v845 = vadd.f32 %v668, %v844
      %846 = vmatmul.bf16.gmra.mxu0 %v410
      %v847 = vpop.f32.mrf.mxu0
      %v848 = vadd.f32 %v671, %v847
      %v849 = vpop.f32.mrf.mxu0
      %v850 = vadd.f32 %v673, %v849
      %851 = vmatmul.bf16.gmra.mxu0 %v411
      %v852 = vpop.f32.mrf.mxu0
      %v853 = vadd.f32 %v676, %v852
      %v854 = vpop.f32.mrf.mxu0
      %v855 = vadd.f32 %v678, %v854
      %856 = vmatmul.bf16.gmra.mxu0 %v412
      %v857 = vpop.f32.mrf.mxu0
      %v858 = vadd.f32 %v681, %v857
      %v859 = vpop.f32.mrf.mxu0
      %v860 = vadd.f32 %v683, %v859
      %861 = vmatmul.bf16.gmra.mxu0 %v413
      %v862 = vpop.f32.mrf.mxu0
      %v863 = vadd.f32 %v686, %v862
      %v864 = vpop.f32.mrf.mxu0
      %v865 = vadd.f32 %v688, %v864
      %866 = vmatmul.bf16.gmra.mxu0 %v414
      %v867 = vpop.f32.mrf.mxu0
      %v868 = vadd.f32 %v691, %v867
      %v869 = vpop.f32.mrf.mxu0
      %v870 = vadd.f32 %v693, %v869
      %871 = vmatmul.bf16.gmra.mxu0 %v415
      %v872 = vpop.f32.mrf.mxu0
      %v873 = vadd.f32 %v696, %v872
      %v874 = vpop.f32.mrf.mxu0
      %v875 = vadd.f32 %v698, %v874
      %876 = vmatmul.bf16.gmra.mxu0 %v416
      %v877 = vpop.f32.mrf.mxu0
      %v878 = vadd.f32 %v701, %v877
      %v879 = vpop.f32.mrf.mxu0
      %v880 = vadd.f32 %v703, %v879
      %881 = vmatmul.bf16.gmra.mxu0 %v417
      %v882 = vpop.f32.mrf.mxu0
      %v883 = vadd.f32 %v706, %v882
      %v884 = vpop.f32.mrf.mxu0
      %v885 = vadd.f32 %v708, %v884
      %886 = vmatmul.bf16.gmra.mxu0 %v418
      %v887 = vpop.f32.mrf.mxu0
      %v888 = vadd.f32 %v711, %v887
      %v889 = vpop.f32.mrf.mxu0
      %v890 = vadd.f32 %v713, %v889
      %891 = vmatmul.bf16.gmra.mxu0 %v419
      %v892 = vpop.f32.mrf.mxu0
      %v893 = vadd.f32 %v716, %v892
      %v894 = vpop.f32.mrf.mxu0
      %v895 = vadd.f32 %v718, %v894
      %896 = vmatmul.bf16.gmra.mxu0 %v420
      %v897 = vpop.f32.mrf.mxu0
      %v898 = vadd.f32 %v721, %v897
      %v899 = vpop.f32.mrf.mxu0
      %v900 = vadd.f32 %v723, %v899
      %901 = vmatmul.bf16.gmra.mxu0 %v421
      %v902 = vpop.f32.mrf.mxu0
      %v903 = vadd.f32 %v726, %v902
      %v904 = vpop.f32.mrf.mxu0
      %v905 = vadd.f32 %v728, %v904
      %906 = vmatmul.bf16.gmra.mxu0 %v422
      %v907 = vpop.f32.mrf.mxu0
      %v908 = vadd.f32 %v731, %v907
      %v909 = vpop.f32.mrf.mxu0
      %v910 = vadd.f32 %v733, %v909
      %911 = vmatmul.bf16.gmra.mxu0 %v423
      %v912 = vpop.f32.mrf.mxu0
      %v913 = vadd.f32 %v736, %v912
      %v914 = vpop.f32.mrf.mxu0
      %v915 = vadd.f32 %v738, %v914
      %916 = vdwg.mxu0
      %s917 = scalar_lea.vmem %s1, 256
      %v918 = vld [vmem:[%s917] sm:$0xf]
      %v919 = vld [vmem:[%s917 + $0x4] sm:$0xf]
      %v920 = vld [vmem:[%s917 + $0x8] sm:$0xf]
      %v921 = vld [vmem:[%s917 + $0xc] sm:$0xf]
      %v922 = vld [vmem:[%s917 + $0x10] sm:$0xf]
      %v923 = vld [vmem:[%s917 + $0x14] sm:$0xf]
      %v924 = vld [vmem:[%s917 + $0x18] sm:$0xf]
      %v925 = vld [vmem:[%s917 + $0x1c] sm:$0xf]
      %v926 = vld [vmem:[%s917 + $0x20] sm:$0xf]
      %v927 = vld [vmem:[%s917 + $0x24] sm:$0xf]
      %v928 = vld [vmem:[%s917 + $0x28] sm:$0xf]
      %v929 = vld [vmem:[%s917 + $0x2c] sm:$0xf]
      %v930 = vld [vmem:[%s917 + $0x30] sm:$0xf]
      %v931 = vld [vmem:[%s917 + $0x34] sm:$0xf]
      %v932 = vld [vmem:[%s917 + $0x38] sm:$0xf]
      %v933 = vld [vmem:[%s917 + $0x3c] sm:$0xf]
      %v950 = vunpack.c.l.b16 %v918
      %v951 = vunpack.c.l.b16 %v919
      %v952 = vunpack.c.l.b16 %v920
      %v953 = vunpack.c.l.b16 %v921
      %v954 = vunpack.c.l.b16 %v922
      %v955 = vunpack.c.l.b16 %v923
      %v956 = vunpack.c.l.b16 %v924
      %v957 = vunpack.c.l.b16 %v925
      %v958 = vunpack.c.l.b16 %v926
      %v959 = vunpack.c.l.b16 %v927
      %v960 = vunpack.c.l.b16 %v928
      %v961 = vunpack.c.l.b16 %v929
      %v962 = vunpack.c.l.b16 %v930
      %v963 = vunpack.c.l.b16 %v931
      %v964 = vunpack.c.l.b16 %v932
      %v965 = vunpack.c.l.b16 %v933
      %v966 = vpack.c.b16 %v951, %v950
      %v967 = vpack.c.b16 %v953, %v952
      %v968 = vpack.c.b16 %v955, %v954
      %v969 = vpack.c.b16 %v957, %v956
      %v970 = vpack.c.b16 %v959, %v958
      %v971 = vpack.c.b16 %v961, %v960
      %v972 = vpack.c.b16 %v963, %v962
      %v973 = vpack.c.b16 %v965, %v964
      %982 = vmatpush.bf16.msra.mxu0 %v973
      %983 = vmatpush.bf16.msra.mxu0 %v972
      %984 = vmatpush.bf16.msra.mxu0 %v971
      %985 = vmatpush.bf16.msra.mxu0 %v970
      %986 = vmatpush.bf16.msra.mxu0 %v969
      %987 = vmatpush.bf16.msra.mxu0 %v968
      %988 = vmatpush.bf16.msra.mxu0 %v967
      %989 = vmatpush.bf16.msra.mxu0 %v966
      %990 = vmatmul.bf16.gmra.mxu0 %v522
      %v991 = vpop.f32.mrf.mxu0
      %v992 = vadd.f32 0.0, %v991
      %v993 = vpop.f32.mrf.mxu0
      %v994 = vadd.f32 0.0, %v993
      %995 = vmatmul.bf16.gmra.mxu0 %v523
      %v996 = vpop.f32.mrf.mxu0
      %v997 = vadd.f32 0.0, %v996
      %v998 = vpop.f32.mrf.mxu0
      %v999 = vadd.f32 0.0, %v998
      %1000 = vmatmul.bf16.gmra.mxu0 %v524
      %v1001 = vpop.f32.mrf.mxu0
      %v1002 = vadd.f32 0.0, %v1001
      %v1003 = vpop.f32.mrf.mxu0
      %v1004 = vadd.f32 0.0, %v1003
      %1005 = vmatmul.bf16.gmra.mxu0 %v525
      %v1006 = vpop.f32.mrf.mxu0
      %v1007 = vadd.f32 0.0, %v1006
      %v1008 = vpop.f32.mrf.mxu0
      %v1009 = vadd.f32 0.0, %v1008
      %1010 = vmatmul.bf16.gmra.mxu0 %v526
      %v1011 = vpop.f32.mrf.mxu0
      %v1012 = vadd.f32 0.0, %v1011
      %v1013 = vpop.f32.mrf.mxu0
      %v1014 = vadd.f32 0.0, %v1013
      %1015 = vmatmul.bf16.gmra.mxu0 %v527
      %v1016 = vpop.f32.mrf.mxu0
      %v1017 = vadd.f32 0.0, %v1016
      %v1018 = vpop.f32.mrf.mxu0
      %v1019 = vadd.f32 0.0, %v1018
      %1020 = vmatmul.bf16.gmra.mxu0 %v528
      %v1021 = vpop.f32.mrf.mxu0
      %v1022 = vadd.f32 0.0, %v1021
      %v1023 = vpop.f32.mrf.mxu0
      %v1024 = vadd.f32 0.0, %v1023
      %1025 = vmatmul.bf16.gmra.mxu0 %v529
      %v1026 = vpop.f32.mrf.mxu0
      %v1027 = vadd.f32 0.0, %v1026
      %v1028 = vpop.f32.mrf.mxu0
      %v1029 = vadd.f32 0.0, %v1028
      %1030 = vmatmul.bf16.gmra.mxu0 %v530
      %v1031 = vpop.f32.mrf.mxu0
      %v1032 = vadd.f32 0.0, %v1031
      %v1033 = vpop.f32.mrf.mxu0
      %v1034 = vadd.f32 0.0, %v1033
      %1035 = vmatmul.bf16.gmra.mxu0 %v531
      %v1036 = vpop.f32.mrf.mxu0
      %v1037 = vadd.f32 0.0, %v1036
      %v1038 = vpop.f32.mrf.mxu0
      %v1039 = vadd.f32 0.0, %v1038
      %1040 = vmatmul.bf16.gmra.mxu0 %v532
      %v1041 = vpop.f32.mrf.mxu0
      %v1042 = vadd.f32 0.0, %v1041
      %v1043 = vpop.f32.mrf.mxu0
      %v1044 = vadd.f32 0.0, %v1043
      %1045 = vmatmul.bf16.gmra.mxu0 %v533
      %v1046 = vpop.f32.mrf.mxu0
      %v1047 = vadd.f32 0.0, %v1046
      %v1048 = vpop.f32.mrf.mxu0
      %v1049 = vadd.f32 0.0, %v1048
      %1050 = vmatmul.bf16.gmra.mxu0 %v534
      %v1051 = vpop.f32.mrf.mxu0
      %v1052 = vadd.f32 0.0, %v1051
      %v1053 = vpop.f32.mrf.mxu0
      %v1054 = vadd.f32 0.0, %v1053
      %1055 = vmatmul.bf16.gmra.mxu0 %v535
      %v1056 = vpop.f32.mrf.mxu0
      %v1057 = vadd.f32 0.0, %v1056
      %v1058 = vpop.f32.mrf.mxu0
      %v1059 = vadd.f32 0.0, %v1058
      %1060 = vmatmul.bf16.gmra.mxu0 %v536
      %v1061 = vpop.f32.mrf.mxu0
      %v1062 = vadd.f32 0.0, %v1061
      %v1063 = vpop.f32.mrf.mxu0
      %v1064 = vadd.f32 0.0, %v1063
      %1065 = vmatmul.bf16.gmra.mxu0 %v537
      %v1066 = vpop.f32.mrf.mxu0
      %v1067 = vadd.f32 0.0, %v1066
      %v1068 = vpop.f32.mrf.mxu0
      %v1069 = vadd.f32 0.0, %v1068
      %1070 = vmatmul.bf16.gmra.mxu0 %v538
      %v1071 = vpop.f32.mrf.mxu0
      %v1072 = vadd.f32 0.0, %v1071
      %v1073 = vpop.f32.mrf.mxu0
      %v1074 = vadd.f32 0.0, %v1073
      %1075 = vmatmul.bf16.gmra.mxu0 %v539
      %v1076 = vpop.f32.mrf.mxu0
      %v1077 = vadd.f32 0.0, %v1076
      %v1078 = vpop.f32.mrf.mxu0
      %v1079 = vadd.f32 0.0, %v1078
      %1080 = vmatmul.bf16.gmra.mxu0 %v540
      %v1081 = vpop.f32.mrf.mxu0
      %v1082 = vadd.f32 0.0, %v1081
      %v1083 = vpop.f32.mrf.mxu0
      %v1084 = vadd.f32 0.0, %v1083
      %1085 = vmatmul.bf16.gmra.mxu0 %v541
      %v1086 = vpop.f32.mrf.mxu0
      %v1087 = vadd.f32 0.0, %v1086
      %v1088 = vpop.f32.mrf.mxu0
      %v1089 = vadd.f32 0.0, %v1088
      %1090 = vmatmul.bf16.gmra.mxu0 %v542
      %v1091 = vpop.f32.mrf.mxu0
      %v1092 = vadd.f32 0.0, %v1091
      %v1093 = vpop.f32.mrf.mxu0
      %v1094 = vadd.f32 0.0, %v1093
      %1095 = vmatmul.bf16.gmra.mxu0 %v543
      %v1096 = vpop.f32.mrf.mxu0
      %v1097 = vadd.f32 0.0, %v1096
      %v1098 = vpop.f32.mrf.mxu0
      %v1099 = vadd.f32 0.0, %v1098
      %1100 = vmatmul.bf16.gmra.mxu0 %v544
      %v1101 = vpop.f32.mrf.mxu0
      %v1102 = vadd.f32 0.0, %v1101
      %v1103 = vpop.f32.mrf.mxu0
      %v1104 = vadd.f32 0.0, %v1103
      %1105 = vmatmul.bf16.gmra.mxu0 %v545
      %v1106 = vpop.f32.mrf.mxu0
      %v1107 = vadd.f32 0.0, %v1106
      %v1108 = vpop.f32.mrf.mxu0
      %v1109 = vadd.f32 0.0, %v1108
      %1110 = vdwg.mxu0
      %v1127 = vunpack.c.l.b16 %v441
      %v1128 = vunpack.c.l.b16 %v442
      %v1129 = vunpack.c.l.b16 %v443
      %v1130 = vunpack.c.l.b16 %v444
      %v1131 = vunpack.c.l.b16 %v445
      %v1132 = vunpack.c.l.b16 %v446
      %v1133 = vunpack.c.l.b16 %v447
      %v1134 = vunpack.c.l.b16 %v448
      %v1135 = vunpack.c.l.b16 %v449
      %v1136 = vunpack.c.l.b16 %v450
      %v1137 = vunpack.c.l.b16 %v451
      %v1138 = vunpack.c.l.b16 %v452
      %v1139 = vunpack.c.l.b16 %v453
      %v1140 = vunpack.c.l.b16 %v454
      %v1141 = vunpack.c.l.b16 %v455
      %v1142 = vunpack.c.l.b16 %v456
      %v1143 = vpack.c.b16 %v1128, %v1127
      %v1144 = vpack.c.b16 %v1130, %v1129
      %v1145 = vpack.c.b16 %v1132, %v1131
      %v1146 = vpack.c.b16 %v1134, %v1133
      %v1147 = vpack.c.b16 %v1136, %v1135
      %v1148 = vpack.c.b16 %v1138, %v1137
      %v1149 = vpack.c.b16 %v1140, %v1139
      %v1150 = vpack.c.b16 %v1142, %v1141
      %1159 = vmatpush.bf16.msra.mxu0 %v1150
      %1160 = vmatpush.bf16.msra.mxu0 %v1149
      %1161 = vmatpush.bf16.msra.mxu0 %v1148
      %1162 = vmatpush.bf16.msra.mxu0 %v1147
      %1163 = vmatpush.bf16.msra.mxu0 %v1146
      %1164 = vmatpush.bf16.msra.mxu0 %v1145
      %1165 = vmatpush.bf16.msra.mxu0 %v1144
      %1166 = vmatpush.bf16.msra.mxu0 %v1143
      %1167 = vmatmul.bf16.gmra.mxu0 %v400
      %v1168 = vpop.f32.mrf.mxu0
      %v1169 = vadd.f32 %v992, %v1168
      %v1170 = vpop.f32.mrf.mxu0
      %v1171 = vadd.f32 %v994, %v1170
      %1172 = vmatmul.bf16.gmra.mxu0 %v401
      %v1173 = vpop.f32.mrf.mxu0
      %v1174 = vadd.f32 %v997, %v1173
      %v1175 = vpop.f32.mrf.mxu0
      %v1176 = vadd.f32 %v999, %v1175
      %1177 = vmatmul.bf16.gmra.mxu0 %v402
      %v1178 = vpop.f32.mrf.mxu0
      %v1179 = vadd.f32 %v1002, %v1178
      %v1180 = vpop.f32.mrf.mxu0
      %v1181 = vadd.f32 %v1004, %v1180
      %1182 = vmatmul.bf16.gmra.mxu0 %v403
      %v1183 = vpop.f32.mrf.mxu0
      %v1184 = vadd.f32 %v1007, %v1183
      %v1185 = vpop.f32.mrf.mxu0
      %v1186 = vadd.f32 %v1009, %v1185
      %1187 = vmatmul.bf16.gmra.mxu0 %v404
      %v1188 = vpop.f32.mrf.mxu0
      %v1189 = vadd.f32 %v1012, %v1188
      %v1190 = vpop.f32.mrf.mxu0
      %v1191 = vadd.f32 %v1014, %v1190
      %1192 = vmatmul.bf16.gmra.mxu0 %v405
      %v1193 = vpop.f32.mrf.mxu0
      %v1194 = vadd.f32 %v1017, %v1193
      %v1195 = vpop.f32.mrf.mxu0
      %v1196 = vadd.f32 %v1019, %v1195
      %1197 = vmatmul.bf16.gmra.mxu0 %v406
      %v1198 = vpop.f32.mrf.mxu0
      %v1199 = vadd.f32 %v1022, %v1198
      %v1200 = vpop.f32.mrf.mxu0
      %v1201 = vadd.f32 %v1024, %v1200
      %1202 = vmatmul.bf16.gmra.mxu0 %v407
      %v1203 = vpop.f32.mrf.mxu0
      %v1204 = vadd.f32 %v1027, %v1203
      %v1205 = vpop.f32.mrf.mxu0
      %v1206 = vadd.f32 %v1029, %v1205
      %1207 = vmatmul.bf16.gmra.mxu0 %v408
      %v1208 = vpop.f32.mrf.mxu0
      %v1209 = vadd.f32 %v1032, %v1208
      %v1210 = vpop.f32.mrf.mxu0
      %v1211 = vadd.f32 %v1034, %v1210
      %1212 = vmatmul.bf16.gmra.mxu0 %v409
      %v1213 = vpop.f32.mrf.mxu0
      %v1214 = vadd.f32 %v1037, %v1213
      %v1215 = vpop.f32.mrf.mxu0
      %v1216 = vadd.f32 %v1039, %v1215
      %1217 = vmatmul.bf16.gmra.mxu0 %v410
      %v1218 = vpop.f32.mrf.mxu0
      %v1219 = vadd.f32 %v1042, %v1218
      %v1220 = vpop.f32.mrf.mxu0
      %v1221 = vadd.f32 %v1044, %v1220
      %1222 = vmatmul.bf16.gmra.mxu0 %v411
      %v1223 = vpop.f32.mrf.mxu0
      %v1224 = vadd.f32 %v1047, %v1223
      %v1225 = vpop.f32.mrf.mxu0
      %v1226 = vadd.f32 %v1049, %v1225
      %1227 = vmatmul.bf16.gmra.mxu0 %v412
      %v1228 = vpop.f32.mrf.mxu0
      %v1229 = vadd.f32 %v1052, %v1228
      %v1230 = vpop.f32.mrf.mxu0
      %v1231 = vadd.f32 %v1054, %v1230
      %1232 = vmatmul.bf16.gmra.mxu0 %v413
      %v1233 = vpop.f32.mrf.mxu0
      %v1234 = vadd.f32 %v1057, %v1233
      %v1235 = vpop.f32.mrf.mxu0
      %v1236 = vadd.f32 %v1059, %v1235
      %1237 = vmatmul.bf16.gmra.mxu0 %v414
      %v1238 = vpop.f32.mrf.mxu0
      %v1239 = vadd.f32 %v1062, %v1238
      %v1240 = vpop.f32.mrf.mxu0
      %v1241 = vadd.f32 %v1064, %v1240
      %1242 = vmatmul.bf16.gmra.mxu0 %v415
      %v1243 = vpop.f32.mrf.mxu0
      %v1244 = vadd.f32 %v1067, %v1243
      %v1245 = vpop.f32.mrf.mxu0
      %v1246 = vadd.f32 %v1069, %v1245
      %1247 = vmatmul.bf16.gmra.mxu0 %v416
      %v1248 = vpop.f32.mrf.mxu0
      %v1249 = vadd.f32 %v1072, %v1248
      %v1250 = vpop.f32.mrf.mxu0
      %v1251 = vadd.f32 %v1074, %v1250
      %1252 = vmatmul.bf16.gmra.mxu0 %v417
      %v1253 = vpop.f32.mrf.mxu0
      %v1254 = vadd.f32 %v1077, %v1253
      %v1255 = vpop.f32.mrf.mxu0
      %v1256 = vadd.f32 %v1079, %v1255
      %1257 = vmatmul.bf16.gmra.mxu0 %v418
      %v1258 = vpop.f32.mrf.mxu0
      %v1259 = vadd.f32 %v1082, %v1258
      %v1260 = vpop.f32.mrf.mxu0
      %v1261 = vadd.f32 %v1084, %v1260
      %1262 = vmatmul.bf16.gmra.mxu0 %v419
      %v1263 = vpop.f32.mrf.mxu0
      %v1264 = vadd.f32 %v1087, %v1263
      %v1265 = vpop.f32.mrf.mxu0
      %v1266 = vadd.f32 %v1089, %v1265
      %1267 = vmatmul.bf16.gmra.mxu0 %v420
      %v1268 = vpop.f32.mrf.mxu0
      %v1269 = vadd.f32 %v1092, %v1268
      %v1270 = vpop.f32.mrf.mxu0
      %v1271 = vadd.f32 %v1094, %v1270
      %1272 = vmatmul.bf16.gmra.mxu0 %v421
      %v1273 = vpop.f32.mrf.mxu0
      %v1274 = vadd.f32 %v1097, %v1273
      %v1275 = vpop.f32.mrf.mxu0
      %v1276 = vadd.f32 %v1099, %v1275
      %1277 = vmatmul.bf16.gmra.mxu0 %v422
      %v1278 = vpop.f32.mrf.mxu0
      %v1279 = vadd.f32 %v1102, %v1278
      %v1280 = vpop.f32.mrf.mxu0
      %v1281 = vadd.f32 %v1104, %v1280
      %1282 = vmatmul.bf16.gmra.mxu0 %v423
      %v1283 = vpop.f32.mrf.mxu0
      %v1284 = vadd.f32 %v1107, %v1283
      %v1285 = vpop.f32.mrf.mxu0
      %v1286 = vadd.f32 %v1109, %v1285
      %1287 = vdwg.mxu0
      %s1288 = scalar_lea.vmem %s1, 320
      %v1289 = vld [vmem:[%s1288] sm:$0xf]
      %v1290 = vld [vmem:[%s1288 + $0x4] sm:$0xf]
      %v1291 = vld [vmem:[%s1288 + $0x8] sm:$0xf]
      %v1292 = vld [vmem:[%s1288 + $0xc] sm:$0xf]
      %v1293 = vld [vmem:[%s1288 + $0x10] sm:$0xf]
      %v1294 = vld [vmem:[%s1288 + $0x14] sm:$0xf]
      %v1295 = vld [vmem:[%s1288 + $0x18] sm:$0xf]
      %v1296 = vld [vmem:[%s1288 + $0x1c] sm:$0xf]
      %v1297 = vld [vmem:[%s1288 + $0x20] sm:$0xf]
      %v1298 = vld [vmem:[%s1288 + $0x24] sm:$0xf]
      %v1299 = vld [vmem:[%s1288 + $0x28] sm:$0xf]
      %v1300 = vld [vmem:[%s1288 + $0x2c] sm:$0xf]
      %v1301 = vld [vmem:[%s1288 + $0x30] sm:$0xf]
      %v1302 = vld [vmem:[%s1288 + $0x34] sm:$0xf]
      %v1303 = vld [vmem:[%s1288 + $0x38] sm:$0xf]
      %v1304 = vld [vmem:[%s1288 + $0x3c] sm:$0xf]
      %v1321 = vunpack.c.l.b16 %v1289
      %v1322 = vunpack.c.l.b16 %v1290
      %v1323 = vunpack.c.l.b16 %v1291
      %v1324 = vunpack.c.l.b16 %v1292
      %v1325 = vunpack.c.l.b16 %v1293
      %v1326 = vunpack.c.l.b16 %v1294
      %v1327 = vunpack.c.l.b16 %v1295
      %v1328 = vunpack.c.l.b16 %v1296
      %v1329 = vunpack.c.l.b16 %v1297
      %v1330 = vunpack.c.l.b16 %v1298
      %v1331 = vunpack.c.l.b16 %v1299
      %v1332 = vunpack.c.l.b16 %v1300
      %v1333 = vunpack.c.l.b16 %v1301
      %v1334 = vunpack.c.l.b16 %v1302
      %v1335 = vunpack.c.l.b16 %v1303
      %v1336 = vunpack.c.l.b16 %v1304
      %v1337 = vpack.c.b16 %v1322, %v1321
      %v1338 = vpack.c.b16 %v1324, %v1323
      %v1339 = vpack.c.b16 %v1326, %v1325
      %v1340 = vpack.c.b16 %v1328, %v1327
      %v1341 = vpack.c.b16 %v1330, %v1329
      %v1342 = vpack.c.b16 %v1332, %v1331
      %v1343 = vpack.c.b16 %v1334, %v1333
      %v1344 = vpack.c.b16 %v1336, %v1335
      %1353 = vmatpush.bf16.msra.mxu0 %v1344
      %1354 = vmatpush.bf16.msra.mxu0 %v1343
      %1355 = vmatpush.bf16.msra.mxu0 %v1342
      %1356 = vmatpush.bf16.msra.mxu0 %v1341
      %1357 = vmatpush.bf16.msra.mxu0 %v1340
      %1358 = vmatpush.bf16.msra.mxu0 %v1339
      %1359 = vmatpush.bf16.msra.mxu0 %v1338
      %1360 = vmatpush.bf16.msra.mxu0 %v1337
      %1361 = vmatmul.bf16.gmra.mxu0 %v522
      %v1362 = vpop.f32.mrf.mxu0
      %v1363 = vadd.f32 0.0, %v1362
      %v1364 = vpop.f32.mrf.mxu0
      %v1365 = vadd.f32 0.0, %v1364
      %1366 = vmatmul.bf16.gmra.mxu0 %v523
      %v1367 = vpop.f32.mrf.mxu0
      %v1368 = vadd.f32 0.0, %v1367
      %v1369 = vpop.f32.mrf.mxu0
      %v1370 = vadd.f32 0.0, %v1369
      %1371 = vmatmul.bf16.gmra.mxu0 %v524
      %v1372 = vpop.f32.mrf.mxu0
      %v1373 = vadd.f32 0.0, %v1372
      %v1374 = vpop.f32.mrf.mxu0
      %v1375 = vadd.f32 0.0, %v1374
      %1376 = vmatmul.bf16.gmra.mxu0 %v525
      %v1377 = vpop.f32.mrf.mxu0
      %v1378 = vadd.f32 0.0, %v1377
      %v1379 = vpop.f32.mrf.mxu0
      %v1380 = vadd.f32 0.0, %v1379
      %1381 = vmatmul.bf16.gmra.mxu0 %v526
      %v1382 = vpop.f32.mrf.mxu0
      %v1383 = vadd.f32 0.0, %v1382
      %v1384 = vpop.f32.mrf.mxu0
      %v1385 = vadd.f32 0.0, %v1384
      %1386 = vmatmul.bf16.gmra.mxu0 %v527
      %v1387 = vpop.f32.mrf.mxu0
      %v1388 = vadd.f32 0.0, %v1387
      %v1389 = vpop.f32.mrf.mxu0
      %v1390 = vadd.f32 0.0, %v1389
      %1391 = vmatmul.bf16.gmra.mxu0 %v528
      %v1392 = vpop.f32.mrf.mxu0
      %v1393 = vadd.f32 0.0, %v1392
      %v1394 = vpop.f32.mrf.mxu0
      %v1395 = vadd.f32 0.0, %v1394
      %1396 = vmatmul.bf16.gmra.mxu0 %v529
      %v1397 = vpop.f32.mrf.mxu0
      %v1398 = vadd.f32 0.0, %v1397
      %v1399 = vpop.f32.mrf.mxu0
      %v1400 = vadd.f32 0.0, %v1399
      %1401 = vmatmul.bf16.gmra.mxu0 %v530
      %v1402 = vpop.f32.mrf.mxu0
      %v1403 = vadd.f32 0.0, %v1402
      %v1404 = vpop.f32.mrf.mxu0
      %v1405 = vadd.f32 0.0, %v1404
      %1406 = vmatmul.bf16.gmra.mxu0 %v531
      %v1407 = vpop.f32.mrf.mxu0
      %v1408 = vadd.f32 0.0, %v1407
      %v1409 = vpop.f32.mrf.mxu0
      %v1410 = vadd.f32 0.0, %v1409
      %1411 = vmatmul.bf16.gmra.mxu0 %v532
      %v1412 = vpop.f32.mrf.mxu0
      %v1413 = vadd.f32 0.0, %v1412
      %v1414 = vpop.f32.mrf.mxu0
      %v1415 = vadd.f32 0.0, %v1414
      %1416 = vmatmul.bf16.gmra.mxu0 %v533
      %v1417 = vpop.f32.mrf.mxu0
      %v1418 = vadd.f32 0.0, %v1417
      %v1419 = vpop.f32.mrf.mxu0
      %v1420 = vadd.f32 0.0, %v1419
      %1421 = vmatmul.bf16.gmra.mxu0 %v534
      %v1422 = vpop.f32.mrf.mxu0
      %v1423 = vadd.f32 0.0, %v1422
      %v1424 = vpop.f32.mrf.mxu0
      %v1425 = vadd.f32 0.0, %v1424
      %1426 = vmatmul.bf16.gmra.mxu0 %v535
      %v1427 = vpop.f32.mrf.mxu0
      %v1428 = vadd.f32 0.0, %v1427
      %v1429 = vpop.f32.mrf.mxu0
      %v1430 = vadd.f32 0.0, %v1429
      %1431 = vmatmul.bf16.gmra.mxu0 %v536
      %v1432 = vpop.f32.mrf.mxu0
      %v1433 = vadd.f32 0.0, %v1432
      %v1434 = vpop.f32.mrf.mxu0
      %v1435 = vadd.f32 0.0, %v1434
      %1436 = vmatmul.bf16.gmra.mxu0 %v537
      %v1437 = vpop.f32.mrf.mxu0
      %v1438 = vadd.f32 0.0, %v1437
      %v1439 = vpop.f32.mrf.mxu0
      %v1440 = vadd.f32 0.0, %v1439
      %1441 = vmatmul.bf16.gmra.mxu0 %v538
      %v1442 = vpop.f32.mrf.mxu0
      %v1443 = vadd.f32 0.0, %v1442
      %v1444 = vpop.f32.mrf.mxu0
      %v1445 = vadd.f32 0.0, %v1444
      %1446 = vmatmul.bf16.gmra.mxu0 %v539
      %v1447 = vpop.f32.mrf.mxu0
      %v1448 = vadd.f32 0.0, %v1447
      %v1449 = vpop.f32.mrf.mxu0
      %v1450 = vadd.f32 0.0, %v1449
      %1451 = vmatmul.bf16.gmra.mxu0 %v540
      %v1452 = vpop.f32.mrf.mxu0
      %v1453 = vadd.f32 0.0, %v1452
      %v1454 = vpop.f32.mrf.mxu0
      %v1455 = vadd.f32 0.0, %v1454
      %1456 = vmatmul.bf16.gmra.mxu0 %v541
      %v1457 = vpop.f32.mrf.mxu0
      %v1458 = vadd.f32 0.0, %v1457
      %v1459 = vpop.f32.mrf.mxu0
      %v1460 = vadd.f32 0.0, %v1459
      %1461 = vmatmul.bf16.gmra.mxu0 %v542
      %v1462 = vpop.f32.mrf.mxu0
      %v1463 = vadd.f32 0.0, %v1462
      %v1464 = vpop.f32.mrf.mxu0
      %v1465 = vadd.f32 0.0, %v1464
      %1466 = vmatmul.bf16.gmra.mxu0 %v543
      %v1467 = vpop.f32.mrf.mxu0
      %v1468 = vadd.f32 0.0, %v1467
      %v1469 = vpop.f32.mrf.mxu0
      %v1470 = vadd.f32 0.0, %v1469
      %1471 = vmatmul.bf16.gmra.mxu0 %v544
      %v1472 = vpop.f32.mrf.mxu0
      %v1473 = vadd.f32 0.0, %v1472
      %v1474 = vpop.f32.mrf.mxu0
      %v1475 = vadd.f32 0.0, %v1474
      %1476 = vmatmul.bf16.gmra.mxu0 %v545
      %v1477 = vpop.f32.mrf.mxu0
      %v1478 = vadd.f32 0.0, %v1477
      %v1479 = vpop.f32.mrf.mxu0
      %v1480 = vadd.f32 0.0, %v1479
      %1481 = vdwg.mxu0
      %v1498 = vunpack.c.l.b16 %v458
      %v1499 = vunpack.c.l.b16 %v459
      %v1500 = vunpack.c.l.b16 %v460
      %v1501 = vunpack.c.l.b16 %v461
      %v1502 = vunpack.c.l.b16 %v462
      %v1503 = vunpack.c.l.b16 %v463
      %v1504 = vunpack.c.l.b16 %v464
      %v1505 = vunpack.c.l.b16 %v465
      %v1506 = vunpack.c.l.b16 %v466
      %v1507 = vunpack.c.l.b16 %v467
      %v1508 = vunpack.c.l.b16 %v468
      %v1509 = vunpack.c.l.b16 %v469
      %v1510 = vunpack.c.l.b16 %v470
      %v1511 = vunpack.c.l.b16 %v471
      %v1512 = vunpack.c.l.b16 %v472
      %v1513 = vunpack.c.l.b16 %v473
      %v1514 = vpack.c.b16 %v1499, %v1498
      %v1515 = vpack.c.b16 %v1501, %v1500
      %v1516 = vpack.c.b16 %v1503, %v1502
      %v1517 = vpack.c.b16 %v1505, %v1504
      %v1518 = vpack.c.b16 %v1507, %v1506
      %v1519 = vpack.c.b16 %v1509, %v1508
      %v1520 = vpack.c.b16 %v1511, %v1510
      %v1521 = vpack.c.b16 %v1513, %v1512
      %1530 = vmatpush.bf16.msra.mxu0 %v1521
      %1531 = vmatpush.bf16.msra.mxu0 %v1520
      %1532 = vmatpush.bf16.msra.mxu0 %v1519
      %1533 = vmatpush.bf16.msra.mxu0 %v1518
      %1534 = vmatpush.bf16.msra.mxu0 %v1517
      %1535 = vmatpush.bf16.msra.mxu0 %v1516
      %1536 = vmatpush.bf16.msra.mxu0 %v1515
      %1537 = vmatpush.bf16.msra.mxu0 %v1514
      %1538 = vmatmul.bf16.gmra.mxu0 %v400
      %v1539 = vpop.f32.mrf.mxu0
      %v1540 = vadd.f32 %v1363, %v1539
      %v1541 = vpop.f32.mrf.mxu0
      %v1542 = vadd.f32 %v1365, %v1541
      %1543 = vmatmul.bf16.gmra.mxu0 %v401
      %v1544 = vpop.f32.mrf.mxu0
      %v1545 = vadd.f32 %v1368, %v1544
      %v1546 = vpop.f32.mrf.mxu0
      %v1547 = vadd.f32 %v1370, %v1546
      %1548 = vmatmul.bf16.gmra.mxu0 %v402
      %v1549 = vpop.f32.mrf.mxu0
      %v1550 = vadd.f32 %v1373, %v1549
      %v1551 = vpop.f32.mrf.mxu0
      %v1552 = vadd.f32 %v1375, %v1551
      %1553 = vmatmul.bf16.gmra.mxu0 %v403
      %v1554 = vpop.f32.mrf.mxu0
      %v1555 = vadd.f32 %v1378, %v1554
      %v1556 = vpop.f32.mrf.mxu0
      %v1557 = vadd.f32 %v1380, %v1556
      %1558 = vmatmul.bf16.gmra.mxu0 %v404
      %v1559 = vpop.f32.mrf.mxu0
      %v1560 = vadd.f32 %v1383, %v1559
      %v1561 = vpop.f32.mrf.mxu0
      %v1562 = vadd.f32 %v1385, %v1561
      %1563 = vmatmul.bf16.gmra.mxu0 %v405
      %v1564 = vpop.f32.mrf.mxu0
      %v1565 = vadd.f32 %v1388, %v1564
      %v1566 = vpop.f32.mrf.mxu0
      %v1567 = vadd.f32 %v1390, %v1566
      %1568 = vmatmul.bf16.gmra.mxu0 %v406
      %v1569 = vpop.f32.mrf.mxu0
      %v1570 = vadd.f32 %v1393, %v1569
      %v1571 = vpop.f32.mrf.mxu0
      %v1572 = vadd.f32 %v1395, %v1571
      %1573 = vmatmul.bf16.gmra.mxu0 %v407
      %v1574 = vpop.f32.mrf.mxu0
      %v1575 = vadd.f32 %v1398, %v1574
      %v1576 = vpop.f32.mrf.mxu0
      %v1577 = vadd.f32 %v1400, %v1576
      %1578 = vmatmul.bf16.gmra.mxu0 %v408
      %v1579 = vpop.f32.mrf.mxu0
      %v1580 = vadd.f32 %v1403, %v1579
      %v1581 = vpop.f32.mrf.mxu0
      %v1582 = vadd.f32 %v1405, %v1581
      %1583 = vmatmul.bf16.gmra.mxu0 %v409
      %v1584 = vpop.f32.mrf.mxu0
      %v1585 = vadd.f32 %v1408, %v1584
      %v1586 = vpop.f32.mrf.mxu0
      %v1587 = vadd.f32 %v1410, %v1586
      %1588 = vmatmul.bf16.gmra.mxu0 %v410
      %v1589 = vpop.f32.mrf.mxu0
      %v1590 = vadd.f32 %v1413, %v1589
      %v1591 = vpop.f32.mrf.mxu0
      %v1592 = vadd.f32 %v1415, %v1591
      %1593 = vmatmul.bf16.gmra.mxu0 %v411
      %v1594 = vpop.f32.mrf.mxu0
      %v1595 = vadd.f32 %v1418, %v1594
      %v1596 = vpop.f32.mrf.mxu0
      %v1597 = vadd.f32 %v1420, %v1596
      %1598 = vmatmul.bf16.gmra.mxu0 %v412
      %v1599 = vpop.f32.mrf.mxu0
      %v1600 = vadd.f32 %v1423, %v1599
      %v1601 = vpop.f32.mrf.mxu0
      %v1602 = vadd.f32 %v1425, %v1601
      %1603 = vmatmul.bf16.gmra.mxu0 %v413
      %v1604 = vpop.f32.mrf.mxu0
      %v1605 = vadd.f32 %v1428, %v1604
      %v1606 = vpop.f32.mrf.mxu0
      %v1607 = vadd.f32 %v1430, %v1606
      %1608 = vmatmul.bf16.gmra.mxu0 %v414
      %v1609 = vpop.f32.mrf.mxu0
      %v1610 = vadd.f32 %v1433, %v1609
      %v1611 = vpop.f32.mrf.mxu0
      %v1612 = vadd.f32 %v1435, %v1611
      %1613 = vmatmul.bf16.gmra.mxu0 %v415
      %v1614 = vpop.f32.mrf.mxu0
      %v1615 = vadd.f32 %v1438, %v1614
      %v1616 = vpop.f32.mrf.mxu0
      %v1617 = vadd.f32 %v1440, %v1616
      %1618 = vmatmul.bf16.gmra.mxu0 %v416
      %v1619 = vpop.f32.mrf.mxu0
      %v1620 = vadd.f32 %v1443, %v1619
      %v1621 = vpop.f32.mrf.mxu0
      %v1622 = vadd.f32 %v1445, %v1621
      %1623 = vmatmul.bf16.gmra.mxu0 %v417
      %v1624 = vpop.f32.mrf.mxu0
      %v1625 = vadd.f32 %v1448, %v1624
      %v1626 = vpop.f32.mrf.mxu0
      %v1627 = vadd.f32 %v1450, %v1626
      %1628 = vmatmul.bf16.gmra.mxu0 %v418
      %v1629 = vpop.f32.mrf.mxu0
      %v1630 = vadd.f32 %v1453, %v1629
      %v1631 = vpop.f32.mrf.mxu0
      %v1632 = vadd.f32 %v1455, %v1631
      %1633 = vmatmul.bf16.gmra.mxu0 %v419
      %v1634 = vpop.f32.mrf.mxu0
      %v1635 = vadd.f32 %v1458, %v1634
      %v1636 = vpop.f32.mrf.mxu0
      %v1637 = vadd.f32 %v1460, %v1636
      %1638 = vmatmul.bf16.gmra.mxu0 %v420
      %v1639 = vpop.f32.mrf.mxu0
      %v1640 = vadd.f32 %v1463, %v1639
      %v1641 = vpop.f32.mrf.mxu0
      %v1642 = vadd.f32 %v1465, %v1641
      %1643 = vmatmul.bf16.gmra.mxu0 %v421
      %v1644 = vpop.f32.mrf.mxu0
      %v1645 = vadd.f32 %v1468, %v1644
      %v1646 = vpop.f32.mrf.mxu0
      %v1647 = vadd.f32 %v1470, %v1646
      %1648 = vmatmul.bf16.gmra.mxu0 %v422
      %v1649 = vpop.f32.mrf.mxu0
      %v1650 = vadd.f32 %v1473, %v1649
      %v1651 = vpop.f32.mrf.mxu0
      %v1652 = vadd.f32 %v1475, %v1651
      %1653 = vmatmul.bf16.gmra.mxu0 %v423
      %v1654 = vpop.f32.mrf.mxu0
      %v1655 = vadd.f32 %v1478, %v1654
      %v1656 = vpop.f32.mrf.mxu0
      %v1657 = vadd.f32 %v1480, %v1656
      %1658 = vdwg.mxu0
      %v1659 = vld [vmem:[%s337] sm:$0xff]
      %v1660 = vld [vmem:[%s337 + $0x8] sm:$0xff]
      %v1661 = vld [vmem:[%s337 + $0x10] sm:$0xff]
      %v1662 = vld [vmem:[%s337 + $0x18] sm:$0xff]
      %v1663 = vld [vmem:[%s337 + $0x20] sm:$0xff]
      %v1664 = vld [vmem:[%s337 + $0x28] sm:$0xff]
      %v1665 = vld [vmem:[%s337 + $0x30] sm:$0xff]
      %v1666 = vld [vmem:[%s337 + $0x38] sm:$0xff]
      %v1667 = vld [vmem:[%s337 + $0x40] sm:$0xff]
      %v1668 = vld [vmem:[%s337 + $0x48] sm:$0xff]
      %v1669 = vld [vmem:[%s337 + $0x50] sm:$0xff]
      %v1670 = vld [vmem:[%s337 + $0x58] sm:$0xff]
      %v1671 = vld [vmem:[%s337 + $0x60] sm:$0xff]
      %v1672 = vld [vmem:[%s337 + $0x68] sm:$0xff]
      %v1673 = vld [vmem:[%s337 + $0x70] sm:$0xff]
      %v1674 = vld [vmem:[%s337 + $0x78] sm:$0xff]
      %v1675 = vld [vmem:[%s337 + $0x80] sm:$0xff]
      %v1676 = vld [vmem:[%s337 + $0x88] sm:$0xff]
      %v1677 = vld [vmem:[%s337 + $0x90] sm:$0xff]
      %v1678 = vld [vmem:[%s337 + $0x98] sm:$0xff]
      %v1679 = vld [vmem:[%s337 + $0xa0] sm:$0xff]
      %v1680 = vld [vmem:[%s337 + $0xa8] sm:$0xff]
      %v1681 = vld [vmem:[%s337 + $0xb0] sm:$0xff]
      %v1682 = vld [vmem:[%s337 + $0xb8] sm:$0xff]
      %v1683 = vld [vmem:[%s337 + $0xc0] sm:$0xff]
      %v1684 = vld [vmem:[%s337 + $0xc8] sm:$0xff]
      %v1685 = vld [vmem:[%s337 + $0xd0] sm:$0xff]
      %v1686 = vld [vmem:[%s337 + $0xd8] sm:$0xff]
      %v1687 = vld [vmem:[%s337 + $0xe0] sm:$0xff]
      %v1688 = vld [vmem:[%s337 + $0xe8] sm:$0xff]
      %v1689 = vld [vmem:[%s337 + $0xf0] sm:$0xff]
      %v1690 = vld [vmem:[%s337 + $0xf8] sm:$0xff]
      %v1691 = vld [vmem:[%s337 + $0x100] sm:$0xff]
      %v1692 = vld [vmem:[%s337 + $0x108] sm:$0xff]
      %v1693 = vld [vmem:[%s337 + $0x110] sm:$0xff]
      %v1694 = vld [vmem:[%s337 + $0x118] sm:$0xff]
      %v1695 = vld [vmem:[%s337 + $0x120] sm:$0xff]
      %v1696 = vld [vmem:[%s337 + $0x128] sm:$0xff]
      %v1697 = vld [vmem:[%s337 + $0x130] sm:$0xff]
      %v1698 = vld [vmem:[%s337 + $0x138] sm:$0xff]
      %v1699 = vld [vmem:[%s337 + $0x140] sm:$0xff]
      %v1700 = vld [vmem:[%s337 + $0x148] sm:$0xff]
      %v1701 = vld [vmem:[%s337 + $0x150] sm:$0xff]
      %v1702 = vld [vmem:[%s337 + $0x158] sm:$0xff]
      %v1703 = vld [vmem:[%s337 + $0x160] sm:$0xff]
      %v1704 = vld [vmem:[%s337 + $0x168] sm:$0xff]
      %v1705 = vld [vmem:[%s337 + $0x170] sm:$0xff]
      %v1706 = vld [vmem:[%s337 + $0x178] sm:$0xff]
      %v1707 = vpack.c.bf16 %v1660, %v1659
      %v1708 = vpack.c.bf16 %v1662, %v1661
      %v1709 = vpack.c.bf16 %v1664, %v1663
      %v1710 = vpack.c.bf16 %v1666, %v1665
      %v1711 = vpack.c.bf16 %v1668, %v1667
      %v1712 = vpack.c.bf16 %v1670, %v1669
      %v1713 = vpack.c.bf16 %v1672, %v1671
      %v1714 = vpack.c.bf16 %v1674, %v1673
      %v1715 = vpack.c.bf16 %v1676, %v1675
      %v1716 = vpack.c.bf16 %v1678, %v1677
      %v1717 = vpack.c.bf16 %v1680, %v1679
      %v1718 = vpack.c.bf16 %v1682, %v1681
      %v1719 = vpack.c.bf16 %v1684, %v1683
      %v1720 = vpack.c.bf16 %v1686, %v1685
      %v1721 = vpack.c.bf16 %v1688, %v1687
      %v1722 = vpack.c.bf16 %v1690, %v1689
      %v1723 = vpack.c.bf16 %v1692, %v1691
      %v1724 = vpack.c.bf16 %v1694, %v1693
      %v1725 = vpack.c.bf16 %v1696, %v1695
      %v1726 = vpack.c.bf16 %v1698, %v1697
      %v1727 = vpack.c.bf16 %v1700, %v1699
      %v1728 = vpack.c.bf16 %v1702, %v1701
      %v1729 = vpack.c.bf16 %v1704, %v1703
      %v1730 = vpack.c.bf16 %v1706, %v1705
      %s1731 = scalar_lea.vmem %s1, 384
      %v1732 = vld [vmem:[%s1731] sm:$0xf]
      %v1733 = vld [vmem:[%s1731 + $0x4] sm:$0xf]
      %v1734 = vld [vmem:[%s1731 + $0x8] sm:$0xf]
      %v1735 = vld [vmem:[%s1731 + $0xc] sm:$0xf]
      %v1736 = vld [vmem:[%s1731 + $0x10] sm:$0xf]
      %v1737 = vld [vmem:[%s1731 + $0x14] sm:$0xf]
      %v1738 = vld [vmem:[%s1731 + $0x18] sm:$0xf]
      %v1739 = vld [vmem:[%s1731 + $0x1c] sm:$0xf]
      %v1740 = vld [vmem:[%s1731 + $0x20] sm:$0xf]
      %v1741 = vld [vmem:[%s1731 + $0x24] sm:$0xf]
      %v1742 = vld [vmem:[%s1731 + $0x28] sm:$0xf]
      %v1743 = vld [vmem:[%s1731 + $0x2c] sm:$0xf]
      %v1744 = vld [vmem:[%s1731 + $0x30] sm:$0xf]
      %v1745 = vld [vmem:[%s1731 + $0x34] sm:$0xf]
      %v1746 = vld [vmem:[%s1731 + $0x38] sm:$0xf]
      %v1747 = vld [vmem:[%s1731 + $0x3c] sm:$0xf]
      %v1764 = vunpack.c.l.b16 %v1732
      %v1765 = vunpack.c.l.b16 %v1733
      %v1766 = vunpack.c.l.b16 %v1734
      %v1767 = vunpack.c.l.b16 %v1735
      %v1768 = vunpack.c.l.b16 %v1736
      %v1769 = vunpack.c.l.b16 %v1737
      %v1770 = vunpack.c.l.b16 %v1738
      %v1771 = vunpack.c.l.b16 %v1739
      %v1772 = vunpack.c.l.b16 %v1740
      %v1773 = vunpack.c.l.b16 %v1741
      %v1774 = vunpack.c.l.b16 %v1742
      %v1775 = vunpack.c.l.b16 %v1743
      %v1776 = vunpack.c.l.b16 %v1744
      %v1777 = vunpack.c.l.b16 %v1745
      %v1778 = vunpack.c.l.b16 %v1746
      %v1779 = vunpack.c.l.b16 %v1747
      %v1780 = vpack.c.b16 %v1765, %v1764
      %v1781 = vpack.c.b16 %v1767, %v1766
      %v1782 = vpack.c.b16 %v1769, %v1768
      %v1783 = vpack.c.b16 %v1771, %v1770
      %v1784 = vpack.c.b16 %v1773, %v1772
      %v1785 = vpack.c.b16 %v1775, %v1774
      %v1786 = vpack.c.b16 %v1777, %v1776
      %v1787 = vpack.c.b16 %v1779, %v1778
      %1796 = vmatpush.bf16.msra.mxu0 %v1787
      %1797 = vmatpush.bf16.msra.mxu0 %v1786
      %1798 = vmatpush.bf16.msra.mxu0 %v1785
      %1799 = vmatpush.bf16.msra.mxu0 %v1784
      %1800 = vmatpush.bf16.msra.mxu0 %v1783
      %1801 = vmatpush.bf16.msra.mxu0 %v1782
      %1802 = vmatpush.bf16.msra.mxu0 %v1781
      %1803 = vmatpush.bf16.msra.mxu0 %v1780
      %1804 = vmatmul.bf16.gmra.mxu0 %v1707
      %v1805 = vpop.f32.mrf.mxu0
      %v1806 = vadd.f32 0.0, %v1805
      %v1807 = vpop.f32.mrf.mxu0
      %v1808 = vadd.f32 0.0, %v1807
      %1809 = vmatmul.bf16.gmra.mxu0 %v1708
      %v1810 = vpop.f32.mrf.mxu0
      %v1811 = vadd.f32 0.0, %v1810
      %v1812 = vpop.f32.mrf.mxu0
      %v1813 = vadd.f32 0.0, %v1812
      %1814 = vmatmul.bf16.gmra.mxu0 %v1709
      %v1815 = vpop.f32.mrf.mxu0
      %v1816 = vadd.f32 0.0, %v1815
      %v1817 = vpop.f32.mrf.mxu0
      %v1818 = vadd.f32 0.0, %v1817
      %1819 = vmatmul.bf16.gmra.mxu0 %v1710
      %v1820 = vpop.f32.mrf.mxu0
      %v1821 = vadd.f32 0.0, %v1820
      %v1822 = vpop.f32.mrf.mxu0
      %v1823 = vadd.f32 0.0, %v1822
      %1824 = vmatmul.bf16.gmra.mxu0 %v1711
      %v1825 = vpop.f32.mrf.mxu0
      %v1826 = vadd.f32 0.0, %v1825
      %v1827 = vpop.f32.mrf.mxu0
      %v1828 = vadd.f32 0.0, %v1827
      %1829 = vmatmul.bf16.gmra.mxu0 %v1712
      %v1830 = vpop.f32.mrf.mxu0
      %v1831 = vadd.f32 0.0, %v1830
      %v1832 = vpop.f32.mrf.mxu0
      %v1833 = vadd.f32 0.0, %v1832
      %1834 = vmatmul.bf16.gmra.mxu0 %v1713
      %v1835 = vpop.f32.mrf.mxu0
      %v1836 = vadd.f32 0.0, %v1835
      %v1837 = vpop.f32.mrf.mxu0
      %v1838 = vadd.f32 0.0, %v1837
      %1839 = vmatmul.bf16.gmra.mxu0 %v1714
      %v1840 = vpop.f32.mrf.mxu0
      %v1841 = vadd.f32 0.0, %v1840
      %v1842 = vpop.f32.mrf.mxu0
      %v1843 = vadd.f32 0.0, %v1842
      %1844 = vmatmul.bf16.gmra.mxu0 %v1715
      %v1845 = vpop.f32.mrf.mxu0
      %v1846 = vadd.f32 0.0, %v1845
      %v1847 = vpop.f32.mrf.mxu0
      %v1848 = vadd.f32 0.0, %v1847
      %1849 = vmatmul.bf16.gmra.mxu0 %v1716
      %v1850 = vpop.f32.mrf.mxu0
      %v1851 = vadd.f32 0.0, %v1850
      %v1852 = vpop.f32.mrf.mxu0
      %v1853 = vadd.f32 0.0, %v1852
      %1854 = vmatmul.bf16.gmra.mxu0 %v1717
      %v1855 = vpop.f32.mrf.mxu0
      %v1856 = vadd.f32 0.0, %v1855
      %v1857 = vpop.f32.mrf.mxu0
      %v1858 = vadd.f32 0.0, %v1857
      %1859 = vmatmul.bf16.gmra.mxu0 %v1718
      %v1860 = vpop.f32.mrf.mxu0
      %v1861 = vadd.f32 0.0, %v1860
      %v1862 = vpop.f32.mrf.mxu0
      %v1863 = vadd.f32 0.0, %v1862
      %1864 = vmatmul.bf16.gmra.mxu0 %v1719
      %v1865 = vpop.f32.mrf.mxu0
      %v1866 = vadd.f32 0.0, %v1865
      %v1867 = vpop.f32.mrf.mxu0
      %v1868 = vadd.f32 0.0, %v1867
      %1869 = vmatmul.bf16.gmra.mxu0 %v1720
      %v1870 = vpop.f32.mrf.mxu0
      %v1871 = vadd.f32 0.0, %v1870
      %v1872 = vpop.f32.mrf.mxu0
      %v1873 = vadd.f32 0.0, %v1872
      %1874 = vmatmul.bf16.gmra.mxu0 %v1721
      %v1875 = vpop.f32.mrf.mxu0
      %v1876 = vadd.f32 0.0, %v1875
      %v1877 = vpop.f32.mrf.mxu0
      %v1878 = vadd.f32 0.0, %v1877
      %1879 = vmatmul.bf16.gmra.mxu0 %v1722
      %v1880 = vpop.f32.mrf.mxu0
      %v1881 = vadd.f32 0.0, %v1880
      %v1882 = vpop.f32.mrf.mxu0
      %v1883 = vadd.f32 0.0, %v1882
      %1884 = vmatmul.bf16.gmra.mxu0 %v1723
      %v1885 = vpop.f32.mrf.mxu0
      %v1886 = vadd.f32 0.0, %v1885
      %v1887 = vpop.f32.mrf.mxu0
      %v1888 = vadd.f32 0.0, %v1887
      %1889 = vmatmul.bf16.gmra.mxu0 %v1724
      %v1890 = vpop.f32.mrf.mxu0
      %v1891 = vadd.f32 0.0, %v1890
      %v1892 = vpop.f32.mrf.mxu0
      %v1893 = vadd.f32 0.0, %v1892
      %1894 = vmatmul.bf16.gmra.mxu0 %v1725
      %v1895 = vpop.f32.mrf.mxu0
      %v1896 = vadd.f32 0.0, %v1895
      %v1897 = vpop.f32.mrf.mxu0
      %v1898 = vadd.f32 0.0, %v1897
      %1899 = vmatmul.bf16.gmra.mxu0 %v1726
      %v1900 = vpop.f32.mrf.mxu0
      %v1901 = vadd.f32 0.0, %v1900
      %v1902 = vpop.f32.mrf.mxu0
      %v1903 = vadd.f32 0.0, %v1902
      %1904 = vmatmul.bf16.gmra.mxu0 %v1727
      %v1905 = vpop.f32.mrf.mxu0
      %v1906 = vadd.f32 0.0, %v1905
      %v1907 = vpop.f32.mrf.mxu0
      %v1908 = vadd.f32 0.0, %v1907
      %1909 = vmatmul.bf16.gmra.mxu0 %v1728
      %v1910 = vpop.f32.mrf.mxu0
      %v1911 = vadd.f32 0.0, %v1910
      %v1912 = vpop.f32.mrf.mxu0
      %v1913 = vadd.f32 0.0, %v1912
      %1914 = vmatmul.bf16.gmra.mxu0 %v1729
      %v1915 = vpop.f32.mrf.mxu0
      %v1916 = vadd.f32 0.0, %v1915
      %v1917 = vpop.f32.mrf.mxu0
      %v1918 = vadd.f32 0.0, %v1917
      %1919 = vmatmul.bf16.gmra.mxu0 %v1730
      %v1920 = vpop.f32.mrf.mxu0
      %v1921 = vadd.f32 0.0, %v1920
      %v1922 = vpop.f32.mrf.mxu0
      %v1923 = vadd.f32 0.0, %v1922
      %1924 = vdwg.mxu0
      %v1925 = vadd.f32 %v798, %v1806
      %v1926 = vadd.f32 %v800, %v1808
      %v1927 = vadd.f32 %v803, %v1811
      %v1928 = vadd.f32 %v805, %v1813
      %v1929 = vadd.f32 %v808, %v1816
      %v1930 = vadd.f32 %v810, %v1818
      %v1931 = vadd.f32 %v813, %v1821
      %v1932 = vadd.f32 %v815, %v1823
      %v1933 = vadd.f32 %v818, %v1826
      %v1934 = vadd.f32 %v820, %v1828
      %v1935 = vadd.f32 %v823, %v1831
      %v1936 = vadd.f32 %v825, %v1833
      %v1937 = vadd.f32 %v828, %v1836
      %v1938 = vadd.f32 %v830, %v1838
      %v1939 = vadd.f32 %v833, %v1841
      %v1940 = vadd.f32 %v835, %v1843
      %v1941 = vadd.f32 %v838, %v1846
      %v1942 = vadd.f32 %v840, %v1848
      %v1943 = vadd.f32 %v843, %v1851
      %v1944 = vadd.f32 %v845, %v1853
      %v1945 = vadd.f32 %v848, %v1856
      %v1946 = vadd.f32 %v850, %v1858
      %v1947 = vadd.f32 %v853, %v1861
      %v1948 = vadd.f32 %v855, %v1863
      %v1949 = vadd.f32 %v858, %v1866
      %v1950 = vadd.f32 %v860, %v1868
      %v1951 = vadd.f32 %v863, %v1871
      %v1952 = vadd.f32 %v865, %v1873
      %v1953 = vadd.f32 %v868, %v1876
      %v1954 = vadd.f32 %v870, %v1878
      %v1955 = vadd.f32 %v873, %v1881
      %v1956 = vadd.f32 %v875, %v1883
      %v1957 = vadd.f32 %v878, %v1886
      %v1958 = vadd.f32 %v880, %v1888
      %v1959 = vadd.f32 %v883, %v1891
      %v1960 = vadd.f32 %v885, %v1893
      %v1961 = vadd.f32 %v888, %v1896
      %v1962 = vadd.f32 %v890, %v1898
      %v1963 = vadd.f32 %v893, %v1901
      %v1964 = vadd.f32 %v895, %v1903
      %v1965 = vadd.f32 %v898, %v1906
      %v1966 = vadd.f32 %v900, %v1908
      %v1967 = vadd.f32 %v903, %v1911
      %v1968 = vadd.f32 %v905, %v1913
      %v1969 = vadd.f32 %v908, %v1916
      %v1970 = vadd.f32 %v910, %v1918
      %v1971 = vadd.f32 %v913, %v1921
      %v1972 = vadd.f32 %v915, %v1923
      %s1973 = scalar_lea.vmem %s1, 448
      %v1974 = vld [vmem:[%s1973] sm:$0xf]
      %v1975 = vld [vmem:[%s1973 + $0x4] sm:$0xf]
      %v1976 = vld [vmem:[%s1973 + $0x8] sm:$0xf]
      %v1977 = vld [vmem:[%s1973 + $0xc] sm:$0xf]
      %v1978 = vld [vmem:[%s1973 + $0x10] sm:$0xf]
      %v1979 = vld [vmem:[%s1973 + $0x14] sm:$0xf]
      %v1980 = vld [vmem:[%s1973 + $0x18] sm:$0xf]
      %v1981 = vld [vmem:[%s1973 + $0x1c] sm:$0xf]
      %v1982 = vld [vmem:[%s1973 + $0x20] sm:$0xf]
      %v1983 = vld [vmem:[%s1973 + $0x24] sm:$0xf]
      %v1984 = vld [vmem:[%s1973 + $0x28] sm:$0xf]
      %v1985 = vld [vmem:[%s1973 + $0x2c] sm:$0xf]
      %v1986 = vld [vmem:[%s1973 + $0x30] sm:$0xf]
      %v1987 = vld [vmem:[%s1973 + $0x34] sm:$0xf]
      %v1988 = vld [vmem:[%s1973 + $0x38] sm:$0xf]
      %v1989 = vld [vmem:[%s1973 + $0x3c] sm:$0xf]
      %v2006 = vunpack.c.l.b16 %v1974
      %v2007 = vunpack.c.l.b16 %v1975
      %v2008 = vunpack.c.l.b16 %v1976
      %v2009 = vunpack.c.l.b16 %v1977
      %v2010 = vunpack.c.l.b16 %v1978
      %v2011 = vunpack.c.l.b16 %v1979
      %v2012 = vunpack.c.l.b16 %v1980
      %v2013 = vunpack.c.l.b16 %v1981
      %v2014 = vunpack.c.l.b16 %v1982
      %v2015 = vunpack.c.l.b16 %v1983
      %v2016 = vunpack.c.l.b16 %v1984
      %v2017 = vunpack.c.l.b16 %v1985
      %v2018 = vunpack.c.l.b16 %v1986
      %v2019 = vunpack.c.l.b16 %v1987
      %v2020 = vunpack.c.l.b16 %v1988
      %v2021 = vunpack.c.l.b16 %v1989
      %v2022 = vpack.c.b16 %v2007, %v2006
      %v2023 = vpack.c.b16 %v2009, %v2008
      %v2024 = vpack.c.b16 %v2011, %v2010
      %v2025 = vpack.c.b16 %v2013, %v2012
      %v2026 = vpack.c.b16 %v2015, %v2014
      %v2027 = vpack.c.b16 %v2017, %v2016
      %v2028 = vpack.c.b16 %v2019, %v2018
      %v2029 = vpack.c.b16 %v2021, %v2020
      %2038 = vmatpush.bf16.msra.mxu0 %v2029
      %2039 = vmatpush.bf16.msra.mxu0 %v2028
      %2040 = vmatpush.bf16.msra.mxu0 %v2027
      %2041 = vmatpush.bf16.msra.mxu0 %v2026
      %2042 = vmatpush.bf16.msra.mxu0 %v2025
      %2043 = vmatpush.bf16.msra.mxu0 %v2024
      %2044 = vmatpush.bf16.msra.mxu0 %v2023
      %2045 = vmatpush.bf16.msra.mxu0 %v2022
      %2046 = vmatmul.bf16.gmra.mxu0 %v1707
      %v2047 = vpop.f32.mrf.mxu0
      %v2048 = vadd.f32 0.0, %v2047
      %v2049 = vpop.f32.mrf.mxu0
      %v2050 = vadd.f32 0.0, %v2049
      %2051 = vmatmul.bf16.gmra.mxu0 %v1708
      %v2052 = vpop.f32.mrf.mxu0
      %v2053 = vadd.f32 0.0, %v2052
      %v2054 = vpop.f32.mrf.mxu0
      %v2055 = vadd.f32 0.0, %v2054
      %2056 = vmatmul.bf16.gmra.mxu0 %v1709
      %v2057 = vpop.f32.mrf.mxu0
      %v2058 = vadd.f32 0.0, %v2057
      %v2059 = vpop.f32.mrf.mxu0
      %v2060 = vadd.f32 0.0, %v2059
      %2061 = vmatmul.bf16.gmra.mxu0 %v1710
      %v2062 = vpop.f32.mrf.mxu0
      %v2063 = vadd.f32 0.0, %v2062
      %v2064 = vpop.f32.mrf.mxu0
      %v2065 = vadd.f32 0.0, %v2064
      %2066 = vmatmul.bf16.gmra.mxu0 %v1711
      %v2067 = vpop.f32.mrf.mxu0
      %v2068 = vadd.f32 0.0, %v2067
      %v2069 = vpop.f32.mrf.mxu0
      %v2070 = vadd.f32 0.0, %v2069
      %2071 = vmatmul.bf16.gmra.mxu0 %v1712
      %v2072 = vpop.f32.mrf.mxu0
      %v2073 = vadd.f32 0.0, %v2072
      %v2074 = vpop.f32.mrf.mxu0
      %v2075 = vadd.f32 0.0, %v2074
      %2076 = vmatmul.bf16.gmra.mxu0 %v1713
      %v2077 = vpop.f32.mrf.mxu0
      %v2078 = vadd.f32 0.0, %v2077
      %v2079 = vpop.f32.mrf.mxu0
      %v2080 = vadd.f32 0.0, %v2079
      %2081 = vmatmul.bf16.gmra.mxu0 %v1714
      %v2082 = vpop.f32.mrf.mxu0
      %v2083 = vadd.f32 0.0, %v2082
      %v2084 = vpop.f32.mrf.mxu0
      %v2085 = vadd.f32 0.0, %v2084
      %2086 = vmatmul.bf16.gmra.mxu0 %v1715
      %v2087 = vpop.f32.mrf.mxu0
      %v2088 = vadd.f32 0.0, %v2087
      %v2089 = vpop.f32.mrf.mxu0
      %v2090 = vadd.f32 0.0, %v2089
      %2091 = vmatmul.bf16.gmra.mxu0 %v1716
      %v2092 = vpop.f32.mrf.mxu0
      %v2093 = vadd.f32 0.0, %v2092
      %v2094 = vpop.f32.mrf.mxu0
      %v2095 = vadd.f32 0.0, %v2094
      %2096 = vmatmul.bf16.gmra.mxu0 %v1717
      %v2097 = vpop.f32.mrf.mxu0
      %v2098 = vadd.f32 0.0, %v2097
      %v2099 = vpop.f32.mrf.mxu0
      %v2100 = vadd.f32 0.0, %v2099
      %2101 = vmatmul.bf16.gmra.mxu0 %v1718
      %v2102 = vpop.f32.mrf.mxu0
      %v2103 = vadd.f32 0.0, %v2102
      %v2104 = vpop.f32.mrf.mxu0
      %v2105 = vadd.f32 0.0, %v2104
      %2106 = vmatmul.bf16.gmra.mxu0 %v1719
      %v2107 = vpop.f32.mrf.mxu0
      %v2108 = vadd.f32 0.0, %v2107
      %v2109 = vpop.f32.mrf.mxu0
      %v2110 = vadd.f32 0.0, %v2109
      %2111 = vmatmul.bf16.gmra.mxu0 %v1720
      %v2112 = vpop.f32.mrf.mxu0
      %v2113 = vadd.f32 0.0, %v2112
      %v2114 = vpop.f32.mrf.mxu0
      %v2115 = vadd.f32 0.0, %v2114
      %2116 = vmatmul.bf16.gmra.mxu0 %v1721
      %v2117 = vpop.f32.mrf.mxu0
      %v2118 = vadd.f32 0.0, %v2117
      %v2119 = vpop.f32.mrf.mxu0
      %v2120 = vadd.f32 0.0, %v2119
      %2121 = vmatmul.bf16.gmra.mxu0 %v1722
      %v2122 = vpop.f32.mrf.mxu0
      %v2123 = vadd.f32 0.0, %v2122
      %v2124 = vpop.f32.mrf.mxu0
      %v2125 = vadd.f32 0.0, %v2124
      %2126 = vmatmul.bf16.gmra.mxu0 %v1723
      %v2127 = vpop.f32.mrf.mxu0
      %v2128 = vadd.f32 0.0, %v2127
      %v2129 = vpop.f32.mrf.mxu0
      %v2130 = vadd.f32 0.0, %v2129
      %2131 = vmatmul.bf16.gmra.mxu0 %v1724
      %v2132 = vpop.f32.mrf.mxu0
      %v2133 = vadd.f32 0.0, %v2132
      %v2134 = vpop.f32.mrf.mxu0
      %v2135 = vadd.f32 0.0, %v2134
      %2136 = vmatmul.bf16.gmra.mxu0 %v1725
      %v2137 = vpop.f32.mrf.mxu0
      %v2138 = vadd.f32 0.0, %v2137
      %v2139 = vpop.f32.mrf.mxu0
      %v2140 = vadd.f32 0.0, %v2139
      %2141 = vmatmul.bf16.gmra.mxu0 %v1726
      %v2142 = vpop.f32.mrf.mxu0
      %v2143 = vadd.f32 0.0, %v2142
      %v2144 = vpop.f32.mrf.mxu0
      %v2145 = vadd.f32 0.0, %v2144
      %2146 = vmatmul.bf16.gmra.mxu0 %v1727
      %v2147 = vpop.f32.mrf.mxu0
      %v2148 = vadd.f32 0.0, %v2147
      %v2149 = vpop.f32.mrf.mxu0
      %v2150 = vadd.f32 0.0, %v2149
      %2151 = vmatmul.bf16.gmra.mxu0 %v1728
      %v2152 = vpop.f32.mrf.mxu0
      %v2153 = vadd.f32 0.0, %v2152
      %v2154 = vpop.f32.mrf.mxu0
      %v2155 = vadd.f32 0.0, %v2154
      %2156 = vmatmul.bf16.gmra.mxu0 %v1729
      %v2157 = vpop.f32.mrf.mxu0
      %v2158 = vadd.f32 0.0, %v2157
      %v2159 = vpop.f32.mrf.mxu0
      %v2160 = vadd.f32 0.0, %v2159
      %2161 = vmatmul.bf16.gmra.mxu0 %v1730
      %v2162 = vpop.f32.mrf.mxu0
      %v2163 = vadd.f32 0.0, %v2162
      %v2164 = vpop.f32.mrf.mxu0
      %v2165 = vadd.f32 0.0, %v2164
      %2166 = vdwg.mxu0
      %v2167 = vadd.f32 %v1169, %v2048
      %v2168 = vadd.f32 %v1171, %v2050
      %v2169 = vadd.f32 %v1174, %v2053
      %v2170 = vadd.f32 %v1176, %v2055
      %v2171 = vadd.f32 %v1179, %v2058
      %v2172 = vadd.f32 %v1181, %v2060
      %v2173 = vadd.f32 %v1184, %v2063
      %v2174 = vadd.f32 %v1186, %v2065
      %v2175 = vadd.f32 %v1189, %v2068
      %v2176 = vadd.f32 %v1191, %v2070
      %v2177 = vadd.f32 %v1194, %v2073
      %v2178 = vadd.f32 %v1196, %v2075
      %v2179 = vadd.f32 %v1199, %v2078
      %v2180 = vadd.f32 %v1201, %v2080
      %v2181 = vadd.f32 %v1204, %v2083
      %v2182 = vadd.f32 %v1206, %v2085
      %v2183 = vadd.f32 %v1209, %v2088
      %v2184 = vadd.f32 %v1211, %v2090
      %v2185 = vadd.f32 %v1214, %v2093
      %v2186 = vadd.f32 %v1216, %v2095
      %v2187 = vadd.f32 %v1219, %v2098
      %v2188 = vadd.f32 %v1221, %v2100
      %v2189 = vadd.f32 %v1224, %v2103
      %v2190 = vadd.f32 %v1226, %v2105
      %v2191 = vadd.f32 %v1229, %v2108
      %v2192 = vadd.f32 %v1231, %v2110
      %v2193 = vadd.f32 %v1234, %v2113
      %v2194 = vadd.f32 %v1236, %v2115
      %v2195 = vadd.f32 %v1239, %v2118
      %v2196 = vadd.f32 %v1241, %v2120
      %v2197 = vadd.f32 %v1244, %v2123
      %v2198 = vadd.f32 %v1246, %v2125
      %v2199 = vadd.f32 %v1249, %v2128
      %v2200 = vadd.f32 %v1251, %v2130
      %v2201 = vadd.f32 %v1254, %v2133
      %v2202 = vadd.f32 %v1256, %v2135
      %v2203 = vadd.f32 %v1259, %v2138
      %v2204 = vadd.f32 %v1261, %v2140
      %v2205 = vadd.f32 %v1264, %v2143
      %v2206 = vadd.f32 %v1266, %v2145
      %v2207 = vadd.f32 %v1269, %v2148
      %v2208 = vadd.f32 %v1271, %v2150
      %v2209 = vadd.f32 %v1274, %v2153
      %v2210 = vadd.f32 %v1276, %v2155
      %v2211 = vadd.f32 %v1279, %v2158
      %v2212 = vadd.f32 %v1281, %v2160
      %v2213 = vadd.f32 %v1284, %v2163
      %v2214 = vadd.f32 %v1286, %v2165
      %s2215 = scalar_lea.vmem %s1, 512
      %v2216 = vld [vmem:[%s2215] sm:$0xf]
      %v2217 = vld [vmem:[%s2215 + $0x4] sm:$0xf]
      %v2218 = vld [vmem:[%s2215 + $0x8] sm:$0xf]
      %v2219 = vld [vmem:[%s2215 + $0xc] sm:$0xf]
      %v2220 = vld [vmem:[%s2215 + $0x10] sm:$0xf]
      %v2221 = vld [vmem:[%s2215 + $0x14] sm:$0xf]
      %v2222 = vld [vmem:[%s2215 + $0x18] sm:$0xf]
      %v2223 = vld [vmem:[%s2215 + $0x1c] sm:$0xf]
      %v2224 = vld [vmem:[%s2215 + $0x20] sm:$0xf]
      %v2225 = vld [vmem:[%s2215 + $0x24] sm:$0xf]
      %v2226 = vld [vmem:[%s2215 + $0x28] sm:$0xf]
      %v2227 = vld [vmem:[%s2215 + $0x2c] sm:$0xf]
      %v2228 = vld [vmem:[%s2215 + $0x30] sm:$0xf]
      %v2229 = vld [vmem:[%s2215 + $0x34] sm:$0xf]
      %v2230 = vld [vmem:[%s2215 + $0x38] sm:$0xf]
      %v2231 = vld [vmem:[%s2215 + $0x3c] sm:$0xf]
      %v2248 = vunpack.c.l.b16 %v2216
      %v2249 = vunpack.c.l.b16 %v2217
      %v2250 = vunpack.c.l.b16 %v2218
      %v2251 = vunpack.c.l.b16 %v2219
      %v2252 = vunpack.c.l.b16 %v2220
      %v2253 = vunpack.c.l.b16 %v2221
      %v2254 = vunpack.c.l.b16 %v2222
      %v2255 = vunpack.c.l.b16 %v2223
      %v2256 = vunpack.c.l.b16 %v2224
      %v2257 = vunpack.c.l.b16 %v2225
      %v2258 = vunpack.c.l.b16 %v2226
      %v2259 = vunpack.c.l.b16 %v2227
      %v2260 = vunpack.c.l.b16 %v2228
      %v2261 = vunpack.c.l.b16 %v2229
      %v2262 = vunpack.c.l.b16 %v2230
      %v2263 = vunpack.c.l.b16 %v2231
      %v2264 = vpack.c.b16 %v2249, %v2248
      %v2265 = vpack.c.b16 %v2251, %v2250
      %v2266 = vpack.c.b16 %v2253, %v2252
      %v2267 = vpack.c.b16 %v2255, %v2254
      %v2268 = vpack.c.b16 %v2257, %v2256
      %v2269 = vpack.c.b16 %v2259, %v2258
      %v2270 = vpack.c.b16 %v2261, %v2260
      %v2271 = vpack.c.b16 %v2263, %v2262
      %2280 = vmatpush.bf16.msra.mxu0 %v2271
      %2281 = vmatpush.bf16.msra.mxu0 %v2270
      %2282 = vmatpush.bf16.msra.mxu0 %v2269
      %2283 = vmatpush.bf16.msra.mxu0 %v2268
      %2284 = vmatpush.bf16.msra.mxu0 %v2267
      %2285 = vmatpush.bf16.msra.mxu0 %v2266
      %2286 = vmatpush.bf16.msra.mxu0 %v2265
      %2287 = vmatpush.bf16.msra.mxu0 %v2264
      %2288 = vmatmul.bf16.gmra.mxu0 %v1707
      %v2289 = vpop.f32.mrf.mxu0
      %v2290 = vadd.f32 0.0, %v2289
      %v2291 = vpop.f32.mrf.mxu0
      %v2292 = vadd.f32 0.0, %v2291
      %2293 = vmatmul.bf16.gmra.mxu0 %v1708
      %v2294 = vpop.f32.mrf.mxu0
      %v2295 = vadd.f32 0.0, %v2294
      %v2296 = vpop.f32.mrf.mxu0
      %v2297 = vadd.f32 0.0, %v2296
      %2298 = vmatmul.bf16.gmra.mxu0 %v1709
      %v2299 = vpop.f32.mrf.mxu0
      %v2300 = vadd.f32 0.0, %v2299
      %v2301 = vpop.f32.mrf.mxu0
      %v2302 = vadd.f32 0.0, %v2301
      %2303 = vmatmul.bf16.gmra.mxu0 %v1710
      %v2304 = vpop.f32.mrf.mxu0
      %v2305 = vadd.f32 0.0, %v2304
      %v2306 = vpop.f32.mrf.mxu0
      %v2307 = vadd.f32 0.0, %v2306
      %2308 = vmatmul.bf16.gmra.mxu0 %v1711
      %v2309 = vpop.f32.mrf.mxu0
      %v2310 = vadd.f32 0.0, %v2309
      %v2311 = vpop.f32.mrf.mxu0
      %v2312 = vadd.f32 0.0, %v2311
      %2313 = vmatmul.bf16.gmra.mxu0 %v1712
      %v2314 = vpop.f32.mrf.mxu0
      %v2315 = vadd.f32 0.0, %v2314
      %v2316 = vpop.f32.mrf.mxu0
      %v2317 = vadd.f32 0.0, %v2316
      %2318 = vmatmul.bf16.gmra.mxu0 %v1713
      %v2319 = vpop.f32.mrf.mxu0
      %v2320 = vadd.f32 0.0, %v2319
      %v2321 = vpop.f32.mrf.mxu0
      %v2322 = vadd.f32 0.0, %v2321
      %2323 = vmatmul.bf16.gmra.mxu0 %v1714
      %v2324 = vpop.f32.mrf.mxu0
      %v2325 = vadd.f32 0.0, %v2324
      %v2326 = vpop.f32.mrf.mxu0
      %v2327 = vadd.f32 0.0, %v2326
      %2328 = vmatmul.bf16.gmra.mxu0 %v1715
      %v2329 = vpop.f32.mrf.mxu0
      %v2330 = vadd.f32 0.0, %v2329
      %v2331 = vpop.f32.mrf.mxu0
      %v2332 = vadd.f32 0.0, %v2331
      %2333 = vmatmul.bf16.gmra.mxu0 %v1716
      %v2334 = vpop.f32.mrf.mxu0
      %v2335 = vadd.f32 0.0, %v2334
      %v2336 = vpop.f32.mrf.mxu0
      %v2337 = vadd.f32 0.0, %v2336
      %2338 = vmatmul.bf16.gmra.mxu0 %v1717
      %v2339 = vpop.f32.mrf.mxu0
      %v2340 = vadd.f32 0.0, %v2339
      %v2341 = vpop.f32.mrf.mxu0
      %v2342 = vadd.f32 0.0, %v2341
      %2343 = vmatmul.bf16.gmra.mxu0 %v1718
      %v2344 = vpop.f32.mrf.mxu0
      %v2345 = vadd.f32 0.0, %v2344
      %v2346 = vpop.f32.mrf.mxu0
      %v2347 = vadd.f32 0.0, %v2346
      %2348 = vmatmul.bf16.gmra.mxu0 %v1719
      %v2349 = vpop.f32.mrf.mxu0
      %v2350 = vadd.f32 0.0, %v2349
      %v2351 = vpop.f32.mrf.mxu0
      %v2352 = vadd.f32 0.0, %v2351
      %2353 = vmatmul.bf16.gmra.mxu0 %v1720
      %v2354 = vpop.f32.mrf.mxu0
      %v2355 = vadd.f32 0.0, %v2354
      %v2356 = vpop.f32.mrf.mxu0
      %v2357 = vadd.f32 0.0, %v2356
      %2358 = vmatmul.bf16.gmra.mxu0 %v1721
      %v2359 = vpop.f32.mrf.mxu0
      %v2360 = vadd.f32 0.0, %v2359
      %v2361 = vpop.f32.mrf.mxu0
      %v2362 = vadd.f32 0.0, %v2361
      %2363 = vmatmul.bf16.gmra.mxu0 %v1722
      %v2364 = vpop.f32.mrf.mxu0
      %v2365 = vadd.f32 0.0, %v2364
      %v2366 = vpop.f32.mrf.mxu0
      %v2367 = vadd.f32 0.0, %v2366
      %2368 = vmatmul.bf16.gmra.mxu0 %v1723
      %v2369 = vpop.f32.mrf.mxu0
      %v2370 = vadd.f32 0.0, %v2369
      %v2371 = vpop.f32.mrf.mxu0
      %v2372 = vadd.f32 0.0, %v2371
      %2373 = vmatmul.bf16.gmra.mxu0 %v1724
      %v2374 = vpop.f32.mrf.mxu0
      %v2375 = vadd.f32 0.0, %v2374
      %v2376 = vpop.f32.mrf.mxu0
      %v2377 = vadd.f32 0.0, %v2376
      %2378 = vmatmul.bf16.gmra.mxu0 %v1725
      %v2379 = vpop.f32.mrf.mxu0
      %v2380 = vadd.f32 0.0, %v2379
      %v2381 = vpop.f32.mrf.mxu0
      %v2382 = vadd.f32 0.0, %v2381
      %2383 = vmatmul.bf16.gmra.mxu0 %v1726
      %v2384 = vpop.f32.mrf.mxu0
      %v2385 = vadd.f32 0.0, %v2384
      %v2386 = vpop.f32.mrf.mxu0
      %v2387 = vadd.f32 0.0, %v2386
      %2388 = vmatmul.bf16.gmra.mxu0 %v1727
      %v2389 = vpop.f32.mrf.mxu0
      %v2390 = vadd.f32 0.0, %v2389
      %v2391 = vpop.f32.mrf.mxu0
      %v2392 = vadd.f32 0.0, %v2391
      %2393 = vmatmul.bf16.gmra.mxu0 %v1728
      %v2394 = vpop.f32.mrf.mxu0
      %v2395 = vadd.f32 0.0, %v2394
      %v2396 = vpop.f32.mrf.mxu0
      %v2397 = vadd.f32 0.0, %v2396
      %2398 = vmatmul.bf16.gmra.mxu0 %v1729
      %v2399 = vpop.f32.mrf.mxu0
      %v2400 = vadd.f32 0.0, %v2399
      %v2401 = vpop.f32.mrf.mxu0
      %v2402 = vadd.f32 0.0, %v2401
      %2403 = vmatmul.bf16.gmra.mxu0 %v1730
      %v2404 = vpop.f32.mrf.mxu0
      %v2405 = vadd.f32 0.0, %v2404
      %v2406 = vpop.f32.mrf.mxu0
      %v2407 = vadd.f32 0.0, %v2406
      %2408 = vdwg.mxu0
      %v2409 = vadd.f32 %v1540, %v2290
      %v2410 = vadd.f32 %v1542, %v2292
      %v2411 = vadd.f32 %v1545, %v2295
      %v2412 = vadd.f32 %v1547, %v2297
      %v2413 = vadd.f32 %v1550, %v2300
      %v2414 = vadd.f32 %v1552, %v2302
      %v2415 = vadd.f32 %v1555, %v2305
      %v2416 = vadd.f32 %v1557, %v2307
      %v2417 = vadd.f32 %v1560, %v2310
      %v2418 = vadd.f32 %v1562, %v2312
      %v2419 = vadd.f32 %v1565, %v2315
      %v2420 = vadd.f32 %v1567, %v2317
      %v2421 = vadd.f32 %v1570, %v2320
      %v2422 = vadd.f32 %v1572, %v2322
      %v2423 = vadd.f32 %v1575, %v2325
      %v2424 = vadd.f32 %v1577, %v2327
      %v2425 = vadd.f32 %v1580, %v2330
      %v2426 = vadd.f32 %v1582, %v2332
      %v2427 = vadd.f32 %v1585, %v2335
      %v2428 = vadd.f32 %v1587, %v2337
      %v2429 = vadd.f32 %v1590, %v2340
      %v2430 = vadd.f32 %v1592, %v2342
      %v2431 = vadd.f32 %v1595, %v2345
      %v2432 = vadd.f32 %v1597, %v2347
      %v2433 = vadd.f32 %v1600, %v2350
      %v2434 = vadd.f32 %v1602, %v2352
      %v2435 = vadd.f32 %v1605, %v2355
      %v2436 = vadd.f32 %v1607, %v2357
      %v2437 = vadd.f32 %v1610, %v2360
      %v2438 = vadd.f32 %v1612, %v2362
      %v2439 = vadd.f32 %v1615, %v2365
      %v2440 = vadd.f32 %v1617, %v2367
      %v2441 = vadd.f32 %v1620, %v2370
      %v2442 = vadd.f32 %v1622, %v2372
      %v2443 = vadd.f32 %v1625, %v2375
      %v2444 = vadd.f32 %v1627, %v2377
      %v2445 = vadd.f32 %v1630, %v2380
      %v2446 = vadd.f32 %v1632, %v2382
      %v2447 = vadd.f32 %v1635, %v2385
      %v2448 = vadd.f32 %v1637, %v2387
      %v2449 = vadd.f32 %v1640, %v2390
      %v2450 = vadd.f32 %v1642, %v2392
      %v2451 = vadd.f32 %v1645, %v2395
      %v2452 = vadd.f32 %v1647, %v2397
      %v2453 = vadd.f32 %v1650, %v2400
      %v2454 = vadd.f32 %v1652, %v2402
      %v2455 = vadd.f32 %v1655, %v2405
      %v2456 = vadd.f32 %v1657, %v2407
      %v2457 = vrot.slane %v1925, 7
      %v2458 = vrot.slane %v1926, 7
      %v2459 = vrot.slane %v1927, 7
      %v2460 = vrot.slane %v1928, 7
      %v2461 = vrot.slane %v1929, 7
      %v2462 = vrot.slane %v1930, 7
      %v2463 = vrot.slane %v1931, 7
      %v2464 = vrot.slane %v1932, 7
      %v2465 = vrot.slane %v1933, 7
      %v2466 = vrot.slane %v1934, 7
      %v2467 = vrot.slane %v1935, 7
      %v2468 = vrot.slane %v1936, 7
      %v2469 = vrot.slane %v1937, 7
      %v2470 = vrot.slane %v1938, 7
      %v2471 = vrot.slane %v1939, 7
      %v2472 = vrot.slane %v1940, 7
      %v2473 = vrot.slane %v1941, 7
      %v2474 = vrot.slane %v1942, 7
      %v2475 = vrot.slane %v1943, 7
      %v2476 = vrot.slane %v1944, 7
      %v2477 = vrot.slane %v1945, 7
      %v2478 = vrot.slane %v1946, 7
      %v2479 = vrot.slane %v1947, 7
      %v2480 = vrot.slane %v1948, 7
      %v2481 = vrot.slane %v1949, 7
      %v2482 = vrot.slane %v1950, 7
      %v2483 = vrot.slane %v1951, 7
      %v2484 = vrot.slane %v1952, 7
      %v2485 = vrot.slane %v1953, 7
      %v2486 = vrot.slane %v1954, 7
      %v2487 = vrot.slane %v1955, 7
      %v2488 = vrot.slane %v1956, 7
      %v2489 = vrot.slane %v1957, 7
      %v2490 = vrot.slane %v1958, 7
      %v2491 = vrot.slane %v1959, 7
      %v2492 = vrot.slane %v1960, 7
      %v2493 = vrot.slane %v1961, 7
      %v2494 = vrot.slane %v1962, 7
      %v2495 = vrot.slane %v1963, 7
      %v2496 = vrot.slane %v1964, 7
      %v2497 = vrot.slane %v1965, 7
      %v2498 = vrot.slane %v1966, 7
      %v2499 = vrot.slane %v1967, 7
      %v2500 = vrot.slane %v1968, 7
      %v2501 = vrot.slane %v1969, 7
      %v2502 = vrot.slane %v1970, 7
      %v2503 = vrot.slane %v1971, 7
      %v2504 = vrot.slane %v1972, 7
      %vm2505 = vcmp.lt.s32.totalorder %v172, 1
      %v2506 = vsel %vm2505, %v2503, %v2504
      %v2507 = vsel %vm2505, %v2502, %v2503
      %v2508 = vsel %vm2505, %v2501, %v2502
      %v2509 = vsel %vm2505, %v2500, %v2501
      %v2510 = vsel %vm2505, %v2499, %v2500
      %v2511 = vsel %vm2505, %v2498, %v2499
      %v2512 = vsel %vm2505, %v2497, %v2498
      %v2513 = vsel %vm2505, %v2496, %v2497
      %v2514 = vsel %vm2505, %v2495, %v2496
      %v2515 = vsel %vm2505, %v2494, %v2495
      %v2516 = vsel %vm2505, %v2493, %v2494
      %v2517 = vsel %vm2505, %v2492, %v2493
      %v2518 = vsel %vm2505, %v2491, %v2492
      %v2519 = vsel %vm2505, %v2490, %v2491
      %v2520 = vsel %vm2505, %v2489, %v2490
      %v2521 = vsel %vm2505, %v2488, %v2489
      %v2522 = vsel %vm2505, %v2487, %v2488
      %v2523 = vsel %vm2505, %v2486, %v2487
      %v2524 = vsel %vm2505, %v2485, %v2486
      %v2525 = vsel %vm2505, %v2484, %v2485
      %v2526 = vsel %vm2505, %v2483, %v2484
      %v2527 = vsel %vm2505, %v2482, %v2483
      %v2528 = vsel %vm2505, %v2481, %v2482
      %v2529 = vsel %vm2505, %v2480, %v2481
      %v2530 = vsel %vm2505, %v2479, %v2480
      %v2531 = vsel %vm2505, %v2478, %v2479
      %v2532 = vsel %vm2505, %v2477, %v2478
      %v2533 = vsel %vm2505, %v2476, %v2477
      %v2534 = vsel %vm2505, %v2475, %v2476
      %v2535 = vsel %vm2505, %v2474, %v2475
      %v2536 = vsel %vm2505, %v2473, %v2474
      %v2537 = vsel %vm2505, %v2472, %v2473
      %v2538 = vsel %vm2505, %v2471, %v2472
      %v2539 = vsel %vm2505, %v2470, %v2471
      %v2540 = vsel %vm2505, %v2469, %v2470
      %v2541 = vsel %vm2505, %v2468, %v2469
      %v2542 = vsel %vm2505, %v2467, %v2468
      %v2543 = vsel %vm2505, %v2466, %v2467
      %v2544 = vsel %vm2505, %v2465, %v2466
      %v2545 = vsel %vm2505, %v2464, %v2465
      %v2546 = vsel %vm2505, %v2463, %v2464
      %v2547 = vsel %vm2505, %v2462, %v2463
      %v2548 = vsel %vm2505, %v2461, %v2462
      %v2549 = vsel %vm2505, %v2460, %v2461
      %v2550 = vsel %vm2505, %v2459, %v2460
      %v2551 = vsel %vm2505, %v2458, %v2459
      %v2552 = vsel %vm2505, %v2457, %v2458
      %v2553 = vsel %vm2505, %v2504, %v2457
      %v2554 = vadd.f32 %v2553, %v2167
      %v2555 = vadd.f32 %v2552, %v2168
      %v2556 = vadd.f32 %v2551, %v2169
      %v2557 = vadd.f32 %v2550, %v2170
      %v2558 = vadd.f32 %v2549, %v2171
      %v2559 = vadd.f32 %v2548, %v2172
      %v2560 = vadd.f32 %v2547, %v2173
      %v2561 = vadd.f32 %v2546, %v2174
      %v2562 = vadd.f32 %v2545, %v2175
      %v2563 = vadd.f32 %v2544, %v2176
      %v2564 = vadd.f32 %v2543, %v2177
      %v2565 = vadd.f32 %v2542, %v2178
      %v2566 = vadd.f32 %v2541, %v2179
      %v2567 = vadd.f32 %v2540, %v2180
      %v2568 = vadd.f32 %v2539, %v2181
      %v2569 = vadd.f32 %v2538, %v2182
      %v2570 = vadd.f32 %v2537, %v2183
      %v2571 = vadd.f32 %v2536, %v2184
      %v2572 = vadd.f32 %v2535, %v2185
      %v2573 = vadd.f32 %v2534, %v2186
      %v2574 = vadd.f32 %v2533, %v2187
      %v2575 = vadd.f32 %v2532, %v2188
      %v2576 = vadd.f32 %v2531, %v2189
      %v2577 = vadd.f32 %v2530, %v2190
      %v2578 = vadd.f32 %v2529, %v2191
      %v2579 = vadd.f32 %v2528, %v2192
      %v2580 = vadd.f32 %v2527, %v2193
      %v2581 = vadd.f32 %v2526, %v2194
      %v2582 = vadd.f32 %v2525, %v2195
      %v2583 = vadd.f32 %v2524, %v2196
      %v2584 = vadd.f32 %v2523, %v2197
      %v2585 = vadd.f32 %v2522, %v2198
      %v2586 = vadd.f32 %v2521, %v2199
      %v2587 = vadd.f32 %v2520, %v2200
      %v2588 = vadd.f32 %v2519, %v2201
      %v2589 = vadd.f32 %v2518, %v2202
      %v2590 = vadd.f32 %v2517, %v2203
      %v2591 = vadd.f32 %v2516, %v2204
      %v2592 = vadd.f32 %v2515, %v2205
      %v2593 = vadd.f32 %v2514, %v2206
      %v2594 = vadd.f32 %v2513, %v2207
      %v2595 = vadd.f32 %v2512, %v2208
      %v2596 = vadd.f32 %v2511, %v2209
      %v2597 = vadd.f32 %v2510, %v2210
      %v2598 = vadd.f32 %v2509, %v2211
      %v2599 = vadd.f32 %v2508, %v2212
      %v2600 = vadd.f32 %v2507, %v2213
      %v2601 = vadd.f32 %v2506, %v2214
      %v2602 = vrot.slane %v2409, 1
      %v2603 = vrot.slane %v2410, 1
      %v2604 = vrot.slane %v2411, 1
      %v2605 = vrot.slane %v2412, 1
      %v2606 = vrot.slane %v2413, 1
      %v2607 = vrot.slane %v2414, 1
      %v2608 = vrot.slane %v2415, 1
      %v2609 = vrot.slane %v2416, 1
      %v2610 = vrot.slane %v2417, 1
      %v2611 = vrot.slane %v2418, 1
      %v2612 = vrot.slane %v2419, 1
      %v2613 = vrot.slane %v2420, 1
      %v2614 = vrot.slane %v2421, 1
      %v2615 = vrot.slane %v2422, 1
      %v2616 = vrot.slane %v2423, 1
      %v2617 = vrot.slane %v2424, 1
      %v2618 = vrot.slane %v2425, 1
      %v2619 = vrot.slane %v2426, 1
      %v2620 = vrot.slane %v2427, 1
      %v2621 = vrot.slane %v2428, 1
      %v2622 = vrot.slane %v2429, 1
      %v2623 = vrot.slane %v2430, 1
      %v2624 = vrot.slane %v2431, 1
      %v2625 = vrot.slane %v2432, 1
      %v2626 = vrot.slane %v2433, 1
      %v2627 = vrot.slane %v2434, 1
      %v2628 = vrot.slane %v2435, 1
      %v2629 = vrot.slane %v2436, 1
      %v2630 = vrot.slane %v2437, 1
      %v2631 = vrot.slane %v2438, 1
      %v2632 = vrot.slane %v2439, 1
      %v2633 = vrot.slane %v2440, 1
      %v2634 = vrot.slane %v2441, 1
      %v2635 = vrot.slane %v2442, 1
      %v2636 = vrot.slane %v2443, 1
      %v2637 = vrot.slane %v2444, 1
      %v2638 = vrot.slane %v2445, 1
      %v2639 = vrot.slane %v2446, 1
      %v2640 = vrot.slane %v2447, 1
      %v2641 = vrot.slane %v2448, 1
      %v2642 = vrot.slane %v2449, 1
      %v2643 = vrot.slane %v2450, 1
      %v2644 = vrot.slane %v2451, 1
      %v2645 = vrot.slane %v2452, 1
      %v2646 = vrot.slane %v2453, 1
      %v2647 = vrot.slane %v2454, 1
      %v2648 = vrot.slane %v2455, 1
      %v2649 = vrot.slane %v2456, 1
      %vm2650 = vcmp.lt.s32.totalorder %v172, 7
      %v2651 = vsel %vm2650, %v2648, %v2649
      %v2652 = vsel %vm2650, %v2647, %v2648
      %v2653 = vsel %vm2650, %v2646, %v2647
      %v2654 = vsel %vm2650, %v2645, %v2646
      %v2655 = vsel %vm2650, %v2644, %v2645
      %v2656 = vsel %vm2650, %v2643, %v2644
      %v2657 = vsel %vm2650, %v2642, %v2643
      %v2658 = vsel %vm2650, %v2641, %v2642
      %v2659 = vsel %vm2650, %v2640, %v2641
      %v2660 = vsel %vm2650, %v2639, %v2640
      %v2661 = vsel %vm2650, %v2638, %v2639
      %v2662 = vsel %vm2650, %v2637, %v2638
      %v2663 = vsel %vm2650, %v2636, %v2637
      %v2664 = vsel %vm2650, %v2635, %v2636
      %v2665 = vsel %vm2650, %v2634, %v2635
      %v2666 = vsel %vm2650, %v2633, %v2634
      %v2667 = vsel %vm2650, %v2632, %v2633
      %v2668 = vsel %vm2650, %v2631, %v2632
      %v2669 = vsel %vm2650, %v2630, %v2631
      %v2670 = vsel %vm2650, %v2629, %v2630
      %v2671 = vsel %vm2650, %v2628, %v2629
      %v2672 = vsel %vm2650, %v2627, %v2628
      %v2673 = vsel %vm2650, %v2626, %v2627
      %v2674 = vsel %vm2650, %v2625, %v2626
      %v2675 = vsel %vm2650, %v2624, %v2625
      %v2676 = vsel %vm2650, %v2623, %v2624
      %v2677 = vsel %vm2650, %v2622, %v2623
      %v2678 = vsel %vm2650, %v2621, %v2622
      %v2679 = vsel %vm2650, %v2620, %v2621
      %v2680 = vsel %vm2650, %v2619, %v2620
      %v2681 = vsel %vm2650, %v2618, %v2619
      %v2682 = vsel %vm2650, %v2617, %v2618
      %v2683 = vsel %vm2650, %v2616, %v2617
      %v2684 = vsel %vm2650, %v2615, %v2616
      %v2685 = vsel %vm2650, %v2614, %v2615
      %v2686 = vsel %vm2650, %v2613, %v2614
      %v2687 = vsel %vm2650, %v2612, %v2613
      %v2688 = vsel %vm2650, %v2611, %v2612
      %v2689 = vsel %vm2650, %v2610, %v2611
      %v2690 = vsel %vm2650, %v2609, %v2610
      %v2691 = vsel %vm2650, %v2608, %v2609
      %v2692 = vsel %vm2650, %v2607, %v2608
      %v2693 = vsel %vm2650, %v2606, %v2607
      %v2694 = vsel %vm2650, %v2605, %v2606
      %v2695 = vsel %vm2650, %v2604, %v2605
      %v2696 = vsel %vm2650, %v2603, %v2604
      %v2697 = vsel %vm2650, %v2602, %v2603
      %v2698 = vsel %vm2650, %v2649, %v2602
      %v2699 = vadd.f32 %v2554, %v2697
      %v2700 = vadd.f32 %v2555, %v2696
      %v2701 = vadd.f32 %v2556, %v2695
      %v2702 = vadd.f32 %v2557, %v2694
      %v2703 = vadd.f32 %v2558, %v2693
      %v2704 = vadd.f32 %v2559, %v2692
      %v2705 = vadd.f32 %v2560, %v2691
      %v2706 = vadd.f32 %v2561, %v2690
      %v2707 = vadd.f32 %v2562, %v2689
      %v2708 = vadd.f32 %v2563, %v2688
      %v2709 = vadd.f32 %v2564, %v2687
      %v2710 = vadd.f32 %v2565, %v2686
      %v2711 = vadd.f32 %v2566, %v2685
      %v2712 = vadd.f32 %v2567, %v2684
      %v2713 = vadd.f32 %v2568, %v2683
      %v2714 = vadd.f32 %v2569, %v2682
      %v2715 = vadd.f32 %v2570, %v2681
      %v2716 = vadd.f32 %v2571, %v2680
      %v2717 = vadd.f32 %v2572, %v2679
      %v2718 = vadd.f32 %v2573, %v2678
      %v2719 = vadd.f32 %v2574, %v2677
      %v2720 = vadd.f32 %v2575, %v2676
      %v2721 = vadd.f32 %v2576, %v2675
      %v2722 = vadd.f32 %v2577, %v2674
      %v2723 = vadd.f32 %v2578, %v2673
      %v2724 = vadd.f32 %v2579, %v2672
      %v2725 = vadd.f32 %v2580, %v2671
      %v2726 = vadd.f32 %v2581, %v2670
      %v2727 = vadd.f32 %v2582, %v2669
      %v2728 = vadd.f32 %v2583, %v2668
      %v2729 = vadd.f32 %v2584, %v2667
      %v2730 = vadd.f32 %v2585, %v2666
      %v2731 = vadd.f32 %v2586, %v2665
      %v2732 = vadd.f32 %v2587, %v2664
      %v2733 = vadd.f32 %v2588, %v2663
      %v2734 = vadd.f32 %v2589, %v2662
      %v2735 = vadd.f32 %v2590, %v2661
      %v2736 = vadd.f32 %v2591, %v2660
      %v2737 = vadd.f32 %v2592, %v2659
      %v2738 = vadd.f32 %v2593, %v2658
      %v2739 = vadd.f32 %v2594, %v2657
      %v2740 = vadd.f32 %v2595, %v2656
      %v2741 = vadd.f32 %v2596, %v2655
      %v2742 = vadd.f32 %v2597, %v2654
      %v2743 = vadd.f32 %v2598, %v2653
      %v2744 = vadd.f32 %v2599, %v2652
      %v2745 = vadd.f32 %v2600, %v2651
      %v2746 = vadd.f32 %v2601, %v2698
      %v2747 = vmul.f32 %v2699, %v187
      %v2748 = vmul.f32 %v2700, %v188
      %v2749 = vmul.f32 %v2701, %v189
      %v2750 = vmul.f32 %v2702, %v187
      %v2751 = vmul.f32 %v2703, %v188
      %v2752 = vmul.f32 %v2704, %v189
      %v2753 = vmul.f32 %v2705, %v187
      %v2754 = vmul.f32 %v2706, %v188
      %v2755 = vmul.f32 %v2707, %v189
      %v2756 = vmul.f32 %v2708, %v187
      %v2757 = vmul.f32 %v2709, %v188
      %v2758 = vmul.f32 %v2710, %v189
      %v2759 = vmul.f32 %v2711, %v187
      %v2760 = vmul.f32 %v2712, %v188
      %v2761 = vmul.f32 %v2713, %v189
      %v2762 = vmul.f32 %v2714, %v187
      %v2763 = vmul.f32 %v2715, %v188
      %v2764 = vmul.f32 %v2716, %v189
      %v2765 = vmul.f32 %v2717, %v187
      %v2766 = vmul.f32 %v2718, %v188
      %v2767 = vmul.f32 %v2719, %v189
      %v2768 = vmul.f32 %v2720, %v187
      %v2769 = vmul.f32 %v2721, %v188
      %v2770 = vmul.f32 %v2722, %v189
      %v2771 = vmul.f32 %v2723, %v187
      %v2772 = vmul.f32 %v2724, %v188
      %v2773 = vmul.f32 %v2725, %v189
      %v2774 = vmul.f32 %v2726, %v187
      %v2775 = vmul.f32 %v2727, %v188
      %v2776 = vmul.f32 %v2728, %v189
      %v2777 = vmul.f32 %v2729, %v187
      %v2778 = vmul.f32 %v2730, %v188
      %v2779 = vmul.f32 %v2731, %v189
      %v2780 = vmul.f32 %v2732, %v187
      %v2781 = vmul.f32 %v2733, %v188
      %v2782 = vmul.f32 %v2734, %v189
      %v2783 = vmul.f32 %v2735, %v187
      %v2784 = vmul.f32 %v2736, %v188
      %v2785 = vmul.f32 %v2737, %v189
      %v2786 = vmul.f32 %v2738, %v187
      %v2787 = vmul.f32 %v2739, %v188
      %v2788 = vmul.f32 %v2740, %v189
      %v2789 = vmul.f32 %v2741, %v187
      %v2790 = vmul.f32 %v2742, %v188
      %v2791 = vmul.f32 %v2743, %v189
      %v2792 = vmul.f32 %v2744, %v187
      %v2793 = vmul.f32 %v2745, %v188
      %v2794 = vmul.f32 %v2746, %v189
      %v2795 = vadd.f32 %v2747, %v2748
      %v2796 = vadd.f32 %v2795, %v2749
      %v2797 = vadd.f32 %v2796, %v2750
      %v2798 = vadd.f32 %v2797, %v2751
      %v2799 = vadd.f32 %v2798, %v2752
      %v2800 = vadd.f32 %v2799, %v2753
      %v2801 = vadd.f32 %v2800, %v2754
      %v2802 = vadd.f32 %v2801, %v2755
      %v2803 = vadd.f32 %v2802, %v2756
      %v2804 = vadd.f32 %v2803, %v2757
      %v2805 = vadd.f32 %v2804, %v2758
      %v2806 = vadd.f32 %v2805, %v2759
      %v2807 = vadd.f32 %v2806, %v2760
      %v2808 = vadd.f32 %v2807, %v2761
      %v2809 = vadd.f32 %v2808, %v2762
      %v2810 = vadd.f32 %v2809, %v2763
      %v2811 = vadd.f32 %v2810, %v2764
      %v2812 = vadd.f32 %v2811, %v2765
      %v2813 = vadd.f32 %v2812, %v2766
      %v2814 = vadd.f32 %v2813, %v2767
      %v2815 = vadd.f32 %v2814, %v2768
      %v2816 = vadd.f32 %v2815, %v2769
      %v2817 = vadd.f32 %v2816, %v2770
      %v2818 = vadd.f32 %v2817, %v2771
      %v2819 = vadd.f32 %v2818, %v2772
      %v2820 = vadd.f32 %v2819, %v2773
      %v2821 = vadd.f32 %v2820, %v2774
      %v2822 = vadd.f32 %v2821, %v2775
      %v2823 = vadd.f32 %v2822, %v2776
      %v2824 = vadd.f32 %v2823, %v2777
      %v2825 = vadd.f32 %v2824, %v2778
      %v2826 = vadd.f32 %v2825, %v2779
      %v2827 = vadd.f32 %v2826, %v2780
      %v2828 = vadd.f32 %v2827, %v2781
      %v2829 = vadd.f32 %v2828, %v2782
      %v2830 = vadd.f32 %v2829, %v2783
      %v2831 = vadd.f32 %v2830, %v2784
      %v2832 = vadd.f32 %v2831, %v2785
      %v2833 = vadd.f32 %v2832, %v2786
      %v2834 = vadd.f32 %v2833, %v2787
      %v2835 = vadd.f32 %v2834, %v2788
      %v2836 = vadd.f32 %v2835, %v2789
      %v2837 = vadd.f32 %v2836, %v2790
      %v2838 = vadd.f32 %v2837, %v2791
      %v2839 = vadd.f32 %v2838, %v2792
      %v2840 = vadd.f32 %v2839, %v2793
      %v2841 = vadd.f32 %v2840, %v2794
      %v2842 = vrot.slane %v2841, 4
      %v2843 = vadd.f32 %v2841, %v2842
      %v2844 = vrot.slane %v2843, 2
      %v2845 = vadd.f32 %v2843, %v2844
      %v2846 = vrot.slane %v2845, 1
      %v2847 = vadd.f32 %v2845, %v2846
      %v2848 = vmul.f32 %v2747, %v2699
      %v2849 = vmul.f32 %v2748, %v2700
      %v2850 = vmul.f32 %v2749, %v2701
      %v2851 = vmul.f32 %v2750, %v2702
      %v2852 = vmul.f32 %v2751, %v2703
      %v2853 = vmul.f32 %v2752, %v2704
      %v2854 = vmul.f32 %v2753, %v2705
      %v2855 = vmul.f32 %v2754, %v2706
      %v2856 = vmul.f32 %v2755, %v2707
      %v2857 = vmul.f32 %v2756, %v2708
      %v2858 = vmul.f32 %v2757, %v2709
      %v2859 = vmul.f32 %v2758, %v2710
      %v2860 = vmul.f32 %v2759, %v2711
      %v2861 = vmul.f32 %v2760, %v2712
      %v2862 = vmul.f32 %v2761, %v2713
      %v2863 = vmul.f32 %v2762, %v2714
      %v2864 = vmul.f32 %v2763, %v2715
      %v2865 = vmul.f32 %v2764, %v2716
      %v2866 = vmul.f32 %v2765, %v2717
      %v2867 = vmul.f32 %v2766, %v2718
      %v2868 = vmul.f32 %v2767, %v2719
      %v2869 = vmul.f32 %v2768, %v2720
      %v2870 = vmul.f32 %v2769, %v2721
      %v2871 = vmul.f32 %v2770, %v2722
      %v2872 = vmul.f32 %v2771, %v2723
      %v2873 = vmul.f32 %v2772, %v2724
      %v2874 = vmul.f32 %v2773, %v2725
      %v2875 = vmul.f32 %v2774, %v2726
      %v2876 = vmul.f32 %v2775, %v2727
      %v2877 = vmul.f32 %v2776, %v2728
      %v2878 = vmul.f32 %v2777, %v2729
      %v2879 = vmul.f32 %v2778, %v2730
      %v2880 = vmul.f32 %v2779, %v2731
      %v2881 = vmul.f32 %v2780, %v2732
      %v2882 = vmul.f32 %v2781, %v2733
      %v2883 = vmul.f32 %v2782, %v2734
      %v2884 = vmul.f32 %v2783, %v2735
      %v2885 = vmul.f32 %v2784, %v2736
      %v2886 = vmul.f32 %v2785, %v2737
      %v2887 = vmul.f32 %v2786, %v2738
      %v2888 = vmul.f32 %v2787, %v2739
      %v2889 = vmul.f32 %v2788, %v2740
      %v2890 = vmul.f32 %v2789, %v2741
      %v2891 = vmul.f32 %v2790, %v2742
      %v2892 = vmul.f32 %v2791, %v2743
      %v2893 = vmul.f32 %v2792, %v2744
      %v2894 = vmul.f32 %v2793, %v2745
      %v2895 = vmul.f32 %v2794, %v2746
      %v2896 = vadd.f32 %v2848, %v2849
      %v2897 = vadd.f32 %v2896, %v2850
      %v2898 = vadd.f32 %v2897, %v2851
      %v2899 = vadd.f32 %v2898, %v2852
      %v2900 = vadd.f32 %v2899, %v2853
      %v2901 = vadd.f32 %v2900, %v2854
      %v2902 = vadd.f32 %v2901, %v2855
      %v2903 = vadd.f32 %v2902, %v2856
      %v2904 = vadd.f32 %v2903, %v2857
      %v2905 = vadd.f32 %v2904, %v2858
      %v2906 = vadd.f32 %v2905, %v2859
      %v2907 = vadd.f32 %v2906, %v2860
      %v2908 = vadd.f32 %v2907, %v2861
      %v2909 = vadd.f32 %v2908, %v2862
      %v2910 = vadd.f32 %v2909, %v2863
      %v2911 = vadd.f32 %v2910, %v2864
      %v2912 = vadd.f32 %v2911, %v2865
      %v2913 = vadd.f32 %v2912, %v2866
      %v2914 = vadd.f32 %v2913, %v2867
      %v2915 = vadd.f32 %v2914, %v2868
      %v2916 = vadd.f32 %v2915, %v2869
      %v2917 = vadd.f32 %v2916, %v2870
      %v2918 = vadd.f32 %v2917, %v2871
      %v2919 = vadd.f32 %v2918, %v2872
      %v2920 = vadd.f32 %v2919, %v2873
      %v2921 = vadd.f32 %v2920, %v2874
      %v2922 = vadd.f32 %v2921, %v2875
      %v2923 = vadd.f32 %v2922, %v2876
      %v2924 = vadd.f32 %v2923, %v2877
      %v2925 = vadd.f32 %v2924, %v2878
      %v2926 = vadd.f32 %v2925, %v2879
      %v2927 = vadd.f32 %v2926, %v2880
      %v2928 = vadd.f32 %v2927, %v2881
      %v2929 = vadd.f32 %v2928, %v2882
      %v2930 = vadd.f32 %v2929, %v2883
      %v2931 = vadd.f32 %v2930, %v2884
      %v2932 = vadd.f32 %v2931, %v2885
      %v2933 = vadd.f32 %v2932, %v2886
      %v2934 = vadd.f32 %v2933, %v2887
      %v2935 = vadd.f32 %v2934, %v2888
      %v2936 = vadd.f32 %v2935, %v2889
      %v2937 = vadd.f32 %v2936, %v2890
      %v2938 = vadd.f32 %v2937, %v2891
      %v2939 = vadd.f32 %v2938, %v2892
      %v2940 = vadd.f32 %v2939, %v2893
      %v2941 = vadd.f32 %v2940, %v2894
      %v2942 = vadd.f32 %v2941, %v2895
      %v2943 = vrot.slane %v2942, 4
      %v2944 = vadd.f32 %v2942, %v2943
      %v2945 = vrot.slane %v2944, 2
      %v2946 = vadd.f32 %v2944, %v2945
      %v2947 = vrot.slane %v2946, 1
      %v2948 = vadd.f32 %v2946, %v2947
      %v2949 = vmul.f32 %v2847, 0.00390625
      %v2950 = vmul.f32 %v2948, 0.00390625
      %v2951 = vmul.f32 %v2949, %v2949
      %v2952 = vsub.f32 %v2950, %v2951
      %v2953 = vsub.f32 %v2699, %v2949
      %v2954 = vsub.f32 %v2700, %v2949
      %v2955 = vsub.f32 %v2701, %v2949
      %v2956 = vsub.f32 %v2702, %v2949
      %v2957 = vsub.f32 %v2703, %v2949
      %v2958 = vsub.f32 %v2704, %v2949
      %v2959 = vsub.f32 %v2705, %v2949
      %v2960 = vsub.f32 %v2706, %v2949
      %v2961 = vsub.f32 %v2707, %v2949
      %v2962 = vsub.f32 %v2708, %v2949
      %v2963 = vsub.f32 %v2709, %v2949
      %v2964 = vsub.f32 %v2710, %v2949
      %v2965 = vsub.f32 %v2711, %v2949
      %v2966 = vsub.f32 %v2712, %v2949
      %v2967 = vsub.f32 %v2713, %v2949
      %v2968 = vsub.f32 %v2714, %v2949
      %v2969 = vsub.f32 %v2715, %v2949
      %v2970 = vsub.f32 %v2716, %v2949
      %v2971 = vsub.f32 %v2717, %v2949
      %v2972 = vsub.f32 %v2718, %v2949
      %v2973 = vsub.f32 %v2719, %v2949
      %v2974 = vsub.f32 %v2720, %v2949
      %v2975 = vsub.f32 %v2721, %v2949
      %v2976 = vsub.f32 %v2722, %v2949
      %v2977 = vsub.f32 %v2723, %v2949
      %v2978 = vsub.f32 %v2724, %v2949
      %v2979 = vsub.f32 %v2725, %v2949
      %v2980 = vsub.f32 %v2726, %v2949
      %v2981 = vsub.f32 %v2727, %v2949
      %v2982 = vsub.f32 %v2728, %v2949
      %v2983 = vsub.f32 %v2729, %v2949
      %v2984 = vsub.f32 %v2730, %v2949
      %v2985 = vsub.f32 %v2731, %v2949
      %v2986 = vsub.f32 %v2732, %v2949
      %v2987 = vsub.f32 %v2733, %v2949
      %v2988 = vsub.f32 %v2734, %v2949
      %v2989 = vsub.f32 %v2735, %v2949
      %v2990 = vsub.f32 %v2736, %v2949
      %v2991 = vsub.f32 %v2737, %v2949
      %v2992 = vsub.f32 %v2738, %v2949
      %v2993 = vsub.f32 %v2739, %v2949
      %v2994 = vsub.f32 %v2740, %v2949
      %v2995 = vsub.f32 %v2741, %v2949
      %v2996 = vsub.f32 %v2742, %v2949
      %v2997 = vsub.f32 %v2743, %v2949
      %v2998 = vsub.f32 %v2744, %v2949
      %v2999 = vsub.f32 %v2745, %v2949
      %v3000 = vsub.f32 %v2746, %v2949
      %v3001 = vadd.f32 %v2952, 1e-05
      %v3002 = vrsqrt.pop %v3001
      %v3003 = vmul.f32 %v3002, %v3001
      %v3004 = vmul.f32 %v3003, %v3002
      %v3005 = vmul.f32 0.5, %v3004
      %v3006 = vsub.f32 1.5, %v3005
      %v3007 = vmul.f32 %v3002, %v3006
      %vm3008 = vweird.f32 %v3001
      %vm3009 = vweird.f32 %v3002
      %vm3010 = vmor %vm3008, %vm3009
      %v3011 = vsel %vm3010, %v3002, %v3007
      %v3012 = vmul.f32 %v2953, %v3011
      %v3013 = vmul.f32 %v2954, %v3011
      %v3014 = vmul.f32 %v2955, %v3011
      %v3015 = vmul.f32 %v2956, %v3011
      %v3016 = vmul.f32 %v2957, %v3011
      %v3017 = vmul.f32 %v2958, %v3011
      %v3018 = vmul.f32 %v2959, %v3011
      %v3019 = vmul.f32 %v2960, %v3011
      %v3020 = vmul.f32 %v2961, %v3011
      %v3021 = vmul.f32 %v2962, %v3011
      %v3022 = vmul.f32 %v2963, %v3011
      %v3023 = vmul.f32 %v2964, %v3011
      %v3024 = vmul.f32 %v2965, %v3011
      %v3025 = vmul.f32 %v2966, %v3011
      %v3026 = vmul.f32 %v2967, %v3011
      %v3027 = vmul.f32 %v2968, %v3011
      %v3028 = vmul.f32 %v2969, %v3011
      %v3029 = vmul.f32 %v2970, %v3011
      %v3030 = vmul.f32 %v2971, %v3011
      %v3031 = vmul.f32 %v2972, %v3011
      %v3032 = vmul.f32 %v2973, %v3011
      %v3033 = vmul.f32 %v2974, %v3011
      %v3034 = vmul.f32 %v2975, %v3011
      %v3035 = vmul.f32 %v2976, %v3011
      %v3036 = vmul.f32 %v2977, %v3011
      %v3037 = vmul.f32 %v2978, %v3011
      %v3038 = vmul.f32 %v2979, %v3011
      %v3039 = vmul.f32 %v2980, %v3011
      %v3040 = vmul.f32 %v2981, %v3011
      %v3041 = vmul.f32 %v2982, %v3011
      %v3042 = vmul.f32 %v2983, %v3011
      %v3043 = vmul.f32 %v2984, %v3011
      %v3044 = vmul.f32 %v2985, %v3011
      %v3045 = vmul.f32 %v2986, %v3011
      %v3046 = vmul.f32 %v2987, %v3011
      %v3047 = vmul.f32 %v2988, %v3011
      %v3048 = vmul.f32 %v2989, %v3011
      %v3049 = vmul.f32 %v2990, %v3011
      %v3050 = vmul.f32 %v2991, %v3011
      %v3051 = vmul.f32 %v2992, %v3011
      %v3052 = vmul.f32 %v2993, %v3011
      %v3053 = vmul.f32 %v2994, %v3011
      %v3054 = vmul.f32 %v2995, %v3011
      %v3055 = vmul.f32 %v2996, %v3011
      %v3056 = vmul.f32 %v2997, %v3011
      %v3057 = vmul.f32 %v2998, %v3011
      %v3058 = vmul.f32 %v2999, %v3011
      %v3059 = vmul.f32 %v3000, %v3011
      %v3060 = vmax.f32 %v3012, 0.0
      %v3061 = vmax.f32 %v3013, 0.0
      %v3062 = vmax.f32 %v3014, 0.0
      %v3063 = vmax.f32 %v3015, 0.0
      %v3064 = vmax.f32 %v3016, 0.0
      %v3065 = vmax.f32 %v3017, 0.0
      %v3066 = vmax.f32 %v3018, 0.0
      %v3067 = vmax.f32 %v3019, 0.0
      %v3068 = vmax.f32 %v3020, 0.0
      %v3069 = vmax.f32 %v3021, 0.0
      %v3070 = vmax.f32 %v3022, 0.0
      %v3071 = vmax.f32 %v3023, 0.0
      %v3072 = vmax.f32 %v3024, 0.0
      %v3073 = vmax.f32 %v3025, 0.0
      %v3074 = vmax.f32 %v3026, 0.0
      %v3075 = vmax.f32 %v3027, 0.0
      %v3076 = vmax.f32 %v3028, 0.0
      %v3077 = vmax.f32 %v3029, 0.0
      %v3078 = vmax.f32 %v3030, 0.0
      %v3079 = vmax.f32 %v3031, 0.0
      %v3080 = vmax.f32 %v3032, 0.0
      %v3081 = vmax.f32 %v3033, 0.0
      %v3082 = vmax.f32 %v3034, 0.0
      %v3083 = vmax.f32 %v3035, 0.0
      %v3084 = vmax.f32 %v3036, 0.0
      %v3085 = vmax.f32 %v3037, 0.0
      %v3086 = vmax.f32 %v3038, 0.0
      %v3087 = vmax.f32 %v3039, 0.0
      %v3088 = vmax.f32 %v3040, 0.0
      %v3089 = vmax.f32 %v3041, 0.0
      %v3090 = vmax.f32 %v3042, 0.0
      %v3091 = vmax.f32 %v3043, 0.0
      %v3092 = vmax.f32 %v3044, 0.0
      %v3093 = vmax.f32 %v3045, 0.0
      %v3094 = vmax.f32 %v3046, 0.0
      %v3095 = vmax.f32 %v3047, 0.0
      %v3096 = vmax.f32 %v3048, 0.0
      %v3097 = vmax.f32 %v3049, 0.0
      %v3098 = vmax.f32 %v3050, 0.0
      %v3099 = vmax.f32 %v3051, 0.0
      %v3100 = vmax.f32 %v3052, 0.0
      %v3101 = vmax.f32 %v3053, 0.0
      %v3102 = vmax.f32 %v3054, 0.0
      %v3103 = vmax.f32 %v3055, 0.0
      %v3104 = vmax.f32 %v3056, 0.0
      %v3105 = vmax.f32 %v3057, 0.0
      %v3106 = vmax.f32 %v3058, 0.0
      %v3107 = vmax.f32 %v3059, 0.0
      %s3108 = scalar_lea.vmem [#allocation3], 24
      %3109 = vst [vmem:[%s3108] sm:$0xff] %v3060
      %3110 = vst [vmem:[%s3108 + $0x8] sm:$0xff] %v3061
      %3111 = vst [vmem:[%s3108 + $0x10] sm:$0xff] %v3062
      %3112 = vst [vmem:[%s3108 + $0x18] sm:$0xff] %v3063
      %3113 = vst [vmem:[%s3108 + $0x20] sm:$0xff] %v3064
      %3114 = vst [vmem:[%s3108 + $0x28] sm:$0xff] %v3065
      %3115 = vst [vmem:[%s3108 + $0x30] sm:$0xff] %v3066
      %3116 = vst [vmem:[%s3108 + $0x38] sm:$0xff] %v3067
      %3117 = vst [vmem:[%s3108 + $0x40] sm:$0xff] %v3068
      %3118 = vst [vmem:[%s3108 + $0x48] sm:$0xff] %v3069
      %3119 = vst [vmem:[%s3108 + $0x50] sm:$0xff] %v3070
      %3120 = vst [vmem:[%s3108 + $0x58] sm:$0xff] %v3071
      %3121 = vst [vmem:[%s3108 + $0x60] sm:$0xff] %v3072
      %3122 = vst [vmem:[%s3108 + $0x68] sm:$0xff] %v3073
      %3123 = vst [vmem:[%s3108 + $0x70] sm:$0xff] %v3074
      %3124 = vst [vmem:[%s3108 + $0x78] sm:$0xff] %v3075
      %3125 = vst [vmem:[%s3108 + $0x80] sm:$0xff] %v3076
      %3126 = vst [vmem:[%s3108 + $0x88] sm:$0xff] %v3077
      %3127 = vst [vmem:[%s3108 + $0x90] sm:$0xff] %v3078
      %3128 = vst [vmem:[%s3108 + $0x98] sm:$0xff] %v3079
      %3129 = vst [vmem:[%s3108 + $0xa0] sm:$0xff] %v3080
      %3130 = vst [vmem:[%s3108 + $0xa8] sm:$0xff] %v3081
      %3131 = vst [vmem:[%s3108 + $0xb0] sm:$0xff] %v3082
      %3132 = vst [vmem:[%s3108 + $0xb8] sm:$0xff] %v3083
      %3133 = vst [vmem:[%s3108 + $0xc0] sm:$0xff] %v3084
      %3134 = vst [vmem:[%s3108 + $0xc8] sm:$0xff] %v3085
      %3135 = vst [vmem:[%s3108 + $0xd0] sm:$0xff] %v3086
      %3136 = vst [vmem:[%s3108 + $0xd8] sm:$0xff] %v3087
      %3137 = vst [vmem:[%s3108 + $0xe0] sm:$0xff] %v3088
      %3138 = vst [vmem:[%s3108 + $0xe8] sm:$0xff] %v3089
      %3139 = vst [vmem:[%s3108 + $0xf0] sm:$0xff] %v3090
      %3140 = vst [vmem:[%s3108 + $0xf8] sm:$0xff] %v3091
      %3141 = vst [vmem:[%s3108 + $0x100] sm:$0xff] %v3092
      %3142 = vst [vmem:[%s3108 + $0x108] sm:$0xff] %v3093
      %3143 = vst [vmem:[%s3108 + $0x110] sm:$0xff] %v3094
      %3144 = vst [vmem:[%s3108 + $0x118] sm:$0xff] %v3095
      %3145 = vst [vmem:[%s3108 + $0x120] sm:$0xff] %v3096
      %3146 = vst [vmem:[%s3108 + $0x128] sm:$0xff] %v3097
      %3147 = vst [vmem:[%s3108 + $0x130] sm:$0xff] %v3098
      %3148 = vst [vmem:[%s3108 + $0x138] sm:$0xff] %v3099
      %3149 = vst [vmem:[%s3108 + $0x140] sm:$0xff] %v3100
      %3150 = vst [vmem:[%s3108 + $0x148] sm:$0xff] %v3101
      %3151 = vst [vmem:[%s3108 + $0x150] sm:$0xff] %v3102
      %3152 = vst [vmem:[%s3108 + $0x158] sm:$0xff] %v3103
      %3153 = vst [vmem:[%s3108 + $0x160] sm:$0xff] %v3104
      %3154 = vst [vmem:[%s3108 + $0x168] sm:$0xff] %v3105
      %3155 = vst [vmem:[%s3108 + $0x170] sm:$0xff] %v3106
      %3156 = vst [vmem:[%s3108 + $0x178] sm:$0xff] %v3107
      %3157 = vst [vmem:[%s3108 - $0x2] sm:$0x4] %v3060
      %3158 = vst [vmem:[%s3108 + $0x16] sm:$0x4] %v3063
      %3159 = vst [vmem:[%s3108 + $0x2e] sm:$0x4] %v3066
      %3160 = vst [vmem:[%s3108 + $0x46] sm:$0x4] %v3069
      %3161 = vst [vmem:[%s3108 + $0x5e] sm:$0x4] %v3072
      %3162 = vst [vmem:[%s3108 + $0x76] sm:$0x4] %v3075
      %3163 = vst [vmem:[%s3108 + $0x8e] sm:$0x4] %v3078
      %3164 = vst [vmem:[%s3108 + $0xa6] sm:$0x4] %v3081
      %3165 = vst [vmem:[%s3108 + $0xbe] sm:$0x4] %v3084
      %3166 = vst [vmem:[%s3108 + $0xd6] sm:$0x4] %v3087
      %3167 = vst [vmem:[%s3108 + $0xee] sm:$0x4] %v3090
      %3168 = vst [vmem:[%s3108 + $0x106] sm:$0x4] %v3093
      %3169 = vst [vmem:[%s3108 + $0x11e] sm:$0x4] %v3096
      %3170 = vst [vmem:[%s3108 + $0x136] sm:$0x4] %v3099
      %3171 = vst [vmem:[%s3108 + $0x14e] sm:$0x4] %v3102
      %3172 = vst [vmem:[%s3108 + $0x166] sm:$0x4] %v3105
      %3173 = vst [vmem:[%s3108 + $0xa] sm:$0x80] %v3061
      %3174 = vst [vmem:[%s3108 + $0x22] sm:$0x80] %v3064
      %3175 = vst [vmem:[%s3108 + $0x3a] sm:$0x80] %v3067
      %3176 = vst [vmem:[%s3108 + $0x52] sm:$0x80] %v3070
      %3177 = vst [vmem:[%s3108 + $0x6a] sm:$0x80] %v3073
      %3178 = vst [vmem:[%s3108 + $0x82] sm:$0x80] %v3076
      %3179 = vst [vmem:[%s3108 + $0x9a] sm:$0x80] %v3079
      %3180 = vst [vmem:[%s3108 + $0xb2] sm:$0x80] %v3082
      %3181 = vst [vmem:[%s3108 + $0xca] sm:$0x80] %v3085
      %3182 = vst [vmem:[%s3108 + $0xe2] sm:$0x80] %v3088
      %3183 = vst [vmem:[%s3108 + $0xfa] sm:$0x80] %v3091
      %3184 = vst [vmem:[%s3108 + $0x112] sm:$0x80] %v3094
      %3185 = vst [vmem:[%s3108 + $0x12a] sm:$0x80] %v3097
      %3186 = vst [vmem:[%s3108 + $0x142] sm:$0x80] %v3100
      %3187 = vst [vmem:[%s3108 + $0x15a] sm:$0x80] %v3103
      %3188 = vst [vmem:[%s3108 + $0x172] sm:$0x80] %v3106
      %s3189 = scalar_lea.vmem [#allocation3], 48
      %v3190 = vld [vmem:[%s3189] sm:$0xff]
      %v3191 = vld [vmem:[%s3189 + $0x8] sm:$0xff]
      %v3192 = vld [vmem:[%s3189 + $0x10] sm:$0xff]
      %3193 = vst [vmem:[#allocation3] sm:$0xff] %v3190
      %3194 = vst [vmem:[#allocation3 + $0x8] sm:$0xff] %v3191
      %3195 = vst [vmem:[#allocation3 + $0x10] sm:$0xff] %v3192
      %s3196 = scalar_lea.vmem [#allocation3], 360
      %v3197 = vld [vmem:[%s3196] sm:$0xff]
      %v3198 = vld [vmem:[%s3196 + $0x8] sm:$0xff]
      %v3199 = vld [vmem:[%s3196 + $0x10] sm:$0xff]
      %s3200 = scalar_lea.vmem [#allocation3], 408
      %3201 = vst [vmem:[%s3200] sm:$0xff] %v3197
      %3202 = vst [vmem:[%s3200 + $0x8] sm:$0xff] %v3198
      %3203 = vst [vmem:[%s3200 + $0x10] sm:$0xff] %v3199
      %v3204 = vld [vmem:[#allocation3] sm:$0xff]
      %v3205 = vld [vmem:[#allocation3 + $0x8] sm:$0xff]
      %v3206 = vld [vmem:[#allocation3 + $0x10] sm:$0xff]
      %v3207 = vld [vmem:[#allocation3 + $0x18] sm:$0xff]
      %v3208 = vld [vmem:[#allocation3 + $0x20] sm:$0xff]
      %v3209 = vld [vmem:[#allocation3 + $0x28] sm:$0xff]
      %v3210 = vld [vmem:[#allocation3 + $0x30] sm:$0xff]
      %v3211 = vld [vmem:[#allocation3 + $0x38] sm:$0xff]
      %v3212 = vld [vmem:[#allocation3 + $0x40] sm:$0xff]
      %v3213 = vld [vmem:[#allocation3 + $0x48] sm:$0xff]
      %v3214 = vld [vmem:[#allocation3 + $0x50] sm:$0xff]
      %v3215 = vld [vmem:[#allocation3 + $0x58] sm:$0xff]
      %v3216 = vld [vmem:[#allocation3 + $0x60] sm:$0xff]
      %v3217 = vld [vmem:[#allocation3 + $0x68] sm:$0xff]
      %v3218 = vld [vmem:[#allocation3 + $0x70] sm:$0xff]
      %v3219 = vld [vmem:[#allocation3 + $0x78] sm:$0xff]
      %v3220 = vld [vmem:[#allocation3 + $0x80] sm:$0xff]
      %v3221 = vld [vmem:[#allocation3 + $0x88] sm:$0xff]
      %v3222 = vld [vmem:[#allocation3 + $0x90] sm:$0xff]
      %v3223 = vld [vmem:[#allocation3 + $0x98] sm:$0xff]
      %v3224 = vld [vmem:[#allocation3 + $0xa0] sm:$0xff]
      %v3225 = vld [vmem:[#allocation3 + $0xa8] sm:$0xff]
      %v3226 = vld [vmem:[#allocation3 + $0xb0] sm:$0xff]
      %v3227 = vld [vmem:[#allocation3 + $0xb8] sm:$0xff]
      %v3228 = vld [vmem:[#allocation3 + $0xc0] sm:$0xff]
      %v3229 = vld [vmem:[#allocation3 + $0xc8] sm:$0xff]
      %v3230 = vld [vmem:[#allocation3 + $0xd0] sm:$0xff]
      %v3231 = vld [vmem:[#allocation3 + $0xd8] sm:$0xff]
      %v3232 = vld [vmem:[#allocation3 + $0xe0] sm:$0xff]
      %v3233 = vld [vmem:[#allocation3 + $0xe8] sm:$0xff]
      %v3234 = vld [vmem:[#allocation3 + $0xf0] sm:$0xff]
      %v3235 = vld [vmem:[#allocation3 + $0xf8] sm:$0xff]
      %v3236 = vld [vmem:[#allocation3 + $0x100] sm:$0xff]
      %v3237 = vld [vmem:[#allocation3 + $0x108] sm:$0xff]
      %v3238 = vld [vmem:[#allocation3 + $0x110] sm:$0xff]
      %v3239 = vld [vmem:[#allocation3 + $0x118] sm:$0xff]
      %v3240 = vld [vmem:[#allocation3 + $0x120] sm:$0xff]
      %v3241 = vld [vmem:[#allocation3 + $0x128] sm:$0xff]
      %v3242 = vld [vmem:[#allocation3 + $0x130] sm:$0xff]
      %v3243 = vld [vmem:[#allocation3 + $0x138] sm:$0xff]
      %v3244 = vld [vmem:[#allocation3 + $0x140] sm:$0xff]
      %v3245 = vld [vmem:[#allocation3 + $0x148] sm:$0xff]
      %v3246 = vld [vmem:[#allocation3 + $0x150] sm:$0xff]
      %v3247 = vld [vmem:[#allocation3 + $0x158] sm:$0xff]
      %v3248 = vld [vmem:[#allocation3 + $0x160] sm:$0xff]
      %v3249 = vld [vmem:[#allocation3 + $0x168] sm:$0xff]
      %v3250 = vld [vmem:[#allocation3 + $0x170] sm:$0xff]
      %v3251 = vld [vmem:[#allocation3 + $0x178] sm:$0xff]
      %v3252 = vpack.c.bf16 %v3205, %v3204
      %v3253 = vpack.c.bf16 %v3207, %v3206
      %v3254 = vpack.c.bf16 %v3209, %v3208
      %v3255 = vpack.c.bf16 %v3211, %v3210
      %v3256 = vpack.c.bf16 %v3213, %v3212
      %v3257 = vpack.c.bf16 %v3215, %v3214
      %v3258 = vpack.c.bf16 %v3217, %v3216
      %v3259 = vpack.c.bf16 %v3219, %v3218
      %v3260 = vpack.c.bf16 %v3221, %v3220
      %v3261 = vpack.c.bf16 %v3223, %v3222
      %v3262 = vpack.c.bf16 %v3225, %v3224
      %v3263 = vpack.c.bf16 %v3227, %v3226
      %v3264 = vpack.c.bf16 %v3229, %v3228
      %v3265 = vpack.c.bf16 %v3231, %v3230
      %v3266 = vpack.c.bf16 %v3233, %v3232
      %v3267 = vpack.c.bf16 %v3235, %v3234
      %v3268 = vpack.c.bf16 %v3237, %v3236
      %v3269 = vpack.c.bf16 %v3239, %v3238
      %v3270 = vpack.c.bf16 %v3241, %v3240
      %v3271 = vpack.c.bf16 %v3243, %v3242
      %v3272 = vpack.c.bf16 %v3245, %v3244
      %v3273 = vpack.c.bf16 %v3247, %v3246
      %v3274 = vpack.c.bf16 %v3249, %v3248
      %v3275 = vpack.c.bf16 %v3251, %v3250
      %v3276 = vld [vmem:[%s2] sm:$0xf]
      %v3277 = vld [vmem:[%s2 + $0x4] sm:$0xf]
      %v3278 = vld [vmem:[%s2 + $0x8] sm:$0xf]
      %v3279 = vld [vmem:[%s2 + $0xc] sm:$0xf]
      %v3280 = vld [vmem:[%s2 + $0x10] sm:$0xf]
      %v3281 = vld [vmem:[%s2 + $0x14] sm:$0xf]
      %v3282 = vld [vmem:[%s2 + $0x18] sm:$0xf]
      %v3283 = vld [vmem:[%s2 + $0x1c] sm:$0xf]
      %v3284 = vld [vmem:[%s2 + $0x20] sm:$0xf]
      %v3285 = vld [vmem:[%s2 + $0x24] sm:$0xf]
      %v3286 = vld [vmem:[%s2 + $0x28] sm:$0xf]
      %v3287 = vld [vmem:[%s2 + $0x2c] sm:$0xf]
      %v3288 = vld [vmem:[%s2 + $0x30] sm:$0xf]
      %v3289 = vld [vmem:[%s2 + $0x34] sm:$0xf]
      %v3290 = vld [vmem:[%s2 + $0x38] sm:$0xf]
      %v3291 = vld [vmem:[%s2 + $0x3c] sm:$0xf]
      %s3292 = scalar_lea.vmem %s2, 64
      %v3293 = vld [vmem:[%s3292] sm:$0xf]
      %v3294 = vld [vmem:[%s3292 + $0x4] sm:$0xf]
      %v3295 = vld [vmem:[%s3292 + $0x8] sm:$0xf]
      %v3296 = vld [vmem:[%s3292 + $0xc] sm:$0xf]
      %v3297 = vld [vmem:[%s3292 + $0x10] sm:$0xf]
      %v3298 = vld [vmem:[%s3292 + $0x14] sm:$0xf]
      %v3299 = vld [vmem:[%s3292 + $0x18] sm:$0xf]
      %v3300 = vld [vmem:[%s3292 + $0x1c] sm:$0xf]
      %v3301 = vld [vmem:[%s3292 + $0x20] sm:$0xf]
      %v3302 = vld [vmem:[%s3292 + $0x24] sm:$0xf]
      %v3303 = vld [vmem:[%s3292 + $0x28] sm:$0xf]
      %v3304 = vld [vmem:[%s3292 + $0x2c] sm:$0xf]
      %v3305 = vld [vmem:[%s3292 + $0x30] sm:$0xf]
      %v3306 = vld [vmem:[%s3292 + $0x34] sm:$0xf]
      %v3307 = vld [vmem:[%s3292 + $0x38] sm:$0xf]
      %v3308 = vld [vmem:[%s3292 + $0x3c] sm:$0xf]
      %s3309 = scalar_lea.vmem %s2, 128
      %v3310 = vld [vmem:[%s3309] sm:$0xf]
      %v3311 = vld [vmem:[%s3309 + $0x4] sm:$0xf]
      %v3312 = vld [vmem:[%s3309 + $0x8] sm:$0xf]
      %v3313 = vld [vmem:[%s3309 + $0xc] sm:$0xf]
      %v3314 = vld [vmem:[%s3309 + $0x10] sm:$0xf]
      %v3315 = vld [vmem:[%s3309 + $0x14] sm:$0xf]
      %v3316 = vld [vmem:[%s3309 + $0x18] sm:$0xf]
      %v3317 = vld [vmem:[%s3309 + $0x1c] sm:$0xf]
      %v3318 = vld [vmem:[%s3309 + $0x20] sm:$0xf]
      %v3319 = vld [vmem:[%s3309 + $0x24] sm:$0xf]
      %v3320 = vld [vmem:[%s3309 + $0x28] sm:$0xf]
      %v3321 = vld [vmem:[%s3309 + $0x2c] sm:$0xf]
      %v3322 = vld [vmem:[%s3309 + $0x30] sm:$0xf]
      %v3323 = vld [vmem:[%s3309 + $0x34] sm:$0xf]
      %v3324 = vld [vmem:[%s3309 + $0x38] sm:$0xf]
      %v3325 = vld [vmem:[%s3309 + $0x3c] sm:$0xf]
      %v3326 = vld [vmem:[%s3108] sm:$0xff]
      %v3327 = vld [vmem:[%s3108 + $0x8] sm:$0xff]
      %v3328 = vld [vmem:[%s3108 + $0x10] sm:$0xff]
      %v3329 = vld [vmem:[%s3108 + $0x18] sm:$0xff]
      %v3330 = vld [vmem:[%s3108 + $0x20] sm:$0xff]
      %v3331 = vld [vmem:[%s3108 + $0x28] sm:$0xff]
      %v3332 = vld [vmem:[%s3108 + $0x30] sm:$0xff]
      %v3333 = vld [vmem:[%s3108 + $0x38] sm:$0xff]
      %v3334 = vld [vmem:[%s3108 + $0x40] sm:$0xff]
      %v3335 = vld [vmem:[%s3108 + $0x48] sm:$0xff]
      %v3336 = vld [vmem:[%s3108 + $0x50] sm:$0xff]
      %v3337 = vld [vmem:[%s3108 + $0x58] sm:$0xff]
      %v3338 = vld [vmem:[%s3108 + $0x60] sm:$0xff]
      %v3339 = vld [vmem:[%s3108 + $0x68] sm:$0xff]
      %v3340 = vld [vmem:[%s3108 + $0x70] sm:$0xff]
      %v3341 = vld [vmem:[%s3108 + $0x78] sm:$0xff]
      %v3342 = vld [vmem:[%s3108 + $0x80] sm:$0xff]
      %v3343 = vld [vmem:[%s3108 + $0x88] sm:$0xff]
      %v3344 = vld [vmem:[%s3108 + $0x90] sm:$0xff]
      %v3345 = vld [vmem:[%s3108 + $0x98] sm:$0xff]
      %v3346 = vld [vmem:[%s3108 + $0xa0] sm:$0xff]
      %v3347 = vld [vmem:[%s3108 + $0xa8] sm:$0xff]
      %v3348 = vld [vmem:[%s3108 + $0xb0] sm:$0xff]
      %v3349 = vld [vmem:[%s3108 + $0xb8] sm:$0xff]
      %v3350 = vld [vmem:[%s3108 + $0xc0] sm:$0xff]
      %v3351 = vld [vmem:[%s3108 + $0xc8] sm:$0xff]
      %v3352 = vld [vmem:[%s3108 + $0xd0] sm:$0xff]
      %v3353 = vld [vmem:[%s3108 + $0xd8] sm:$0xff]
      %v3354 = vld [vmem:[%s3108 + $0xe0] sm:$0xff]
      %v3355 = vld [vmem:[%s3108 + $0xe8] sm:$0xff]
      %v3356 = vld [vmem:[%s3108 + $0xf0] sm:$0xff]
      %v3357 = vld [vmem:[%s3108 + $0xf8] sm:$0xff]
      %v3358 = vld [vmem:[%s3108 + $0x100] sm:$0xff]
      %v3359 = vld [vmem:[%s3108 + $0x108] sm:$0xff]
      %v3360 = vld [vmem:[%s3108 + $0x110] sm:$0xff]
      %v3361 = vld [vmem:[%s3108 + $0x118] sm:$0xff]
      %v3362 = vld [vmem:[%s3108 + $0x120] sm:$0xff]
      %v3363 = vld [vmem:[%s3108 + $0x128] sm:$0xff]
      %v3364 = vld [vmem:[%s3108 + $0x130] sm:$0xff]
      %v3365 = vld [vmem:[%s3108 + $0x138] sm:$0xff]
      %v3366 = vld [vmem:[%s3108 + $0x140] sm:$0xff]
      %v3367 = vld [vmem:[%s3108 + $0x148] sm:$0xff]
      %v3368 = vld [vmem:[%s3108 + $0x150] sm:$0xff]
      %v3369 = vld [vmem:[%s3108 + $0x158] sm:$0xff]
      %v3370 = vld [vmem:[%s3108 + $0x160] sm:$0xff]
      %v3371 = vld [vmem:[%s3108 + $0x168] sm:$0xff]
      %v3372 = vld [vmem:[%s3108 + $0x170] sm:$0xff]
      %v3373 = vld [vmem:[%s3108 + $0x178] sm:$0xff]
      %v3374 = vpack.c.bf16 %v3327, %v3326
      %v3375 = vpack.c.bf16 %v3329, %v3328
      %v3376 = vpack.c.bf16 %v3331, %v3330
      %v3377 = vpack.c.bf16 %v3333, %v3332
      %v3378 = vpack.c.bf16 %v3335, %v3334
      %v3379 = vpack.c.bf16 %v3337, %v3336
      %v3380 = vpack.c.bf16 %v3339, %v3338
      %v3381 = vpack.c.bf16 %v3341, %v3340
      %v3382 = vpack.c.bf16 %v3343, %v3342
      %v3383 = vpack.c.bf16 %v3345, %v3344
      %v3384 = vpack.c.bf16 %v3347, %v3346
      %v3385 = vpack.c.bf16 %v3349, %v3348
      %v3386 = vpack.c.bf16 %v3351, %v3350
      %v3387 = vpack.c.bf16 %v3353, %v3352
      %v3388 = vpack.c.bf16 %v3355, %v3354
      %v3389 = vpack.c.bf16 %v3357, %v3356
      %v3390 = vpack.c.bf16 %v3359, %v3358
      %v3391 = vpack.c.bf16 %v3361, %v3360
      %v3392 = vpack.c.bf16 %v3363, %v3362
      %v3393 = vpack.c.bf16 %v3365, %v3364
      %v3394 = vpack.c.bf16 %v3367, %v3366
      %v3395 = vpack.c.bf16 %v3369, %v3368
      %v3396 = vpack.c.bf16 %v3371, %v3370
      %v3397 = vpack.c.bf16 %v3373, %v3372
      %s3398 = scalar_lea.vmem %s2, 192
      %v3399 = vld [vmem:[%s3398] sm:$0xf]
      %v3400 = vld [vmem:[%s3398 + $0x4] sm:$0xf]
      %v3401 = vld [vmem:[%s3398 + $0x8] sm:$0xf]
      %v3402 = vld [vmem:[%s3398 + $0xc] sm:$0xf]
      %v3403 = vld [vmem:[%s3398 + $0x10] sm:$0xf]
      %v3404 = vld [vmem:[%s3398 + $0x14] sm:$0xf]
      %v3405 = vld [vmem:[%s3398 + $0x18] sm:$0xf]
      %v3406 = vld [vmem:[%s3398 + $0x1c] sm:$0xf]
      %v3407 = vld [vmem:[%s3398 + $0x20] sm:$0xf]
      %v3408 = vld [vmem:[%s3398 + $0x24] sm:$0xf]
      %v3409 = vld [vmem:[%s3398 + $0x28] sm:$0xf]
      %v3410 = vld [vmem:[%s3398 + $0x2c] sm:$0xf]
      %v3411 = vld [vmem:[%s3398 + $0x30] sm:$0xf]
      %v3412 = vld [vmem:[%s3398 + $0x34] sm:$0xf]
      %v3413 = vld [vmem:[%s3398 + $0x38] sm:$0xf]
      %v3414 = vld [vmem:[%s3398 + $0x3c] sm:$0xf]
      %v3431 = vunpack.c.l.b16 %v3399
      %v3432 = vunpack.c.l.b16 %v3400
      %v3433 = vunpack.c.l.b16 %v3401
      %v3434 = vunpack.c.l.b16 %v3402
      %v3435 = vunpack.c.l.b16 %v3403
      %v3436 = vunpack.c.l.b16 %v3404
      %v3437 = vunpack.c.l.b16 %v3405
      %v3438 = vunpack.c.l.b16 %v3406
      %v3439 = vunpack.c.l.b16 %v3407
      %v3440 = vunpack.c.l.b16 %v3408
      %v3441 = vunpack.c.l.b16 %v3409
      %v3442 = vunpack.c.l.b16 %v3410
      %v3443 = vunpack.c.l.b16 %v3411
      %v3444 = vunpack.c.l.b16 %v3412
      %v3445 = vunpack.c.l.b16 %v3413
      %v3446 = vunpack.c.l.b16 %v3414
      %v3447 = vpack.c.b16 %v3432, %v3431
      %v3448 = vpack.c.b16 %v3434, %v3433
      %v3449 = vpack.c.b16 %v3436, %v3435
      %v3450 = vpack.c.b16 %v3438, %v3437
      %v3451 = vpack.c.b16 %v3440, %v3439
      %v3452 = vpack.c.b16 %v3442, %v3441
      %v3453 = vpack.c.b16 %v3444, %v3443
      %v3454 = vpack.c.b16 %v3446, %v3445
      %3463 = vmatpush.bf16.msra.mxu0 %v3454
      %3464 = vmatpush.bf16.msra.mxu0 %v3453
      %3465 = vmatpush.bf16.msra.mxu0 %v3452
      %3466 = vmatpush.bf16.msra.mxu0 %v3451
      %3467 = vmatpush.bf16.msra.mxu0 %v3450
      %3468 = vmatpush.bf16.msra.mxu0 %v3449
      %3469 = vmatpush.bf16.msra.mxu0 %v3448
      %3470 = vmatpush.bf16.msra.mxu0 %v3447
      %3471 = vmatmul.bf16.gmra.mxu0 %v3374
      %v3472 = vpop.f32.mrf.mxu0
      %v3473 = vadd.f32 0.0, %v3472
      %v3474 = vpop.f32.mrf.mxu0
      %v3475 = vadd.f32 0.0, %v3474
      %3476 = vmatmul.bf16.gmra.mxu0 %v3375
      %v3477 = vpop.f32.mrf.mxu0
      %v3478 = vadd.f32 0.0, %v3477
      %v3479 = vpop.f32.mrf.mxu0
      %v3480 = vadd.f32 0.0, %v3479
      %3481 = vmatmul.bf16.gmra.mxu0 %v3376
      %v3482 = vpop.f32.mrf.mxu0
      %v3483 = vadd.f32 0.0, %v3482
      %v3484 = vpop.f32.mrf.mxu0
      %v3485 = vadd.f32 0.0, %v3484
      %3486 = vmatmul.bf16.gmra.mxu0 %v3377
      %v3487 = vpop.f32.mrf.mxu0
      %v3488 = vadd.f32 0.0, %v3487
      %v3489 = vpop.f32.mrf.mxu0
      %v3490 = vadd.f32 0.0, %v3489
      %3491 = vmatmul.bf16.gmra.mxu0 %v3378
      %v3492 = vpop.f32.mrf.mxu0
      %v3493 = vadd.f32 0.0, %v3492
      %v3494 = vpop.f32.mrf.mxu0
      %v3495 = vadd.f32 0.0, %v3494
      %3496 = vmatmul.bf16.gmra.mxu0 %v3379
      %v3497 = vpop.f32.mrf.mxu0
      %v3498 = vadd.f32 0.0, %v3497
      %v3499 = vpop.f32.mrf.mxu0
      %v3500 = vadd.f32 0.0, %v3499
      %3501 = vmatmul.bf16.gmra.mxu0 %v3380
      %v3502 = vpop.f32.mrf.mxu0
      %v3503 = vadd.f32 0.0, %v3502
      %v3504 = vpop.f32.mrf.mxu0
      %v3505 = vadd.f32 0.0, %v3504
      %3506 = vmatmul.bf16.gmra.mxu0 %v3381
      %v3507 = vpop.f32.mrf.mxu0
      %v3508 = vadd.f32 0.0, %v3507
      %v3509 = vpop.f32.mrf.mxu0
      %v3510 = vadd.f32 0.0, %v3509
      %3511 = vmatmul.bf16.gmra.mxu0 %v3382
      %v3512 = vpop.f32.mrf.mxu0
      %v3513 = vadd.f32 0.0, %v3512
      %v3514 = vpop.f32.mrf.mxu0
      %v3515 = vadd.f32 0.0, %v3514
      %3516 = vmatmul.bf16.gmra.mxu0 %v3383
      %v3517 = vpop.f32.mrf.mxu0
      %v3518 = vadd.f32 0.0, %v3517
      %v3519 = vpop.f32.mrf.mxu0
      %v3520 = vadd.f32 0.0, %v3519
      %3521 = vmatmul.bf16.gmra.mxu0 %v3384
      %v3522 = vpop.f32.mrf.mxu0
      %v3523 = vadd.f32 0.0, %v3522
      %v3524 = vpop.f32.mrf.mxu0
      %v3525 = vadd.f32 0.0, %v3524
      %3526 = vmatmul.bf16.gmra.mxu0 %v3385
      %v3527 = vpop.f32.mrf.mxu0
      %v3528 = vadd.f32 0.0, %v3527
      %v3529 = vpop.f32.mrf.mxu0
      %v3530 = vadd.f32 0.0, %v3529
      %3531 = vmatmul.bf16.gmra.mxu0 %v3386
      %v3532 = vpop.f32.mrf.mxu0
      %v3533 = vadd.f32 0.0, %v3532
      %v3534 = vpop.f32.mrf.mxu0
      %v3535 = vadd.f32 0.0, %v3534
      %3536 = vmatmul.bf16.gmra.mxu0 %v3387
      %v3537 = vpop.f32.mrf.mxu0
      %v3538 = vadd.f32 0.0, %v3537
      %v3539 = vpop.f32.mrf.mxu0
      %v3540 = vadd.f32 0.0, %v3539
      %3541 = vmatmul.bf16.gmra.mxu0 %v3388
      %v3542 = vpop.f32.mrf.mxu0
      %v3543 = vadd.f32 0.0, %v3542
      %v3544 = vpop.f32.mrf.mxu0
      %v3545 = vadd.f32 0.0, %v3544
      %3546 = vmatmul.bf16.gmra.mxu0 %v3389
      %v3547 = vpop.f32.mrf.mxu0
      %v3548 = vadd.f32 0.0, %v3547
      %v3549 = vpop.f32.mrf.mxu0
      %v3550 = vadd.f32 0.0, %v3549
      %3551 = vmatmul.bf16.gmra.mxu0 %v3390
      %v3552 = vpop.f32.mrf.mxu0
      %v3553 = vadd.f32 0.0, %v3552
      %v3554 = vpop.f32.mrf.mxu0
      %v3555 = vadd.f32 0.0, %v3554
      %3556 = vmatmul.bf16.gmra.mxu0 %v3391
      %v3557 = vpop.f32.mrf.mxu0
      %v3558 = vadd.f32 0.0, %v3557
      %v3559 = vpop.f32.mrf.mxu0
      %v3560 = vadd.f32 0.0, %v3559
      %3561 = vmatmul.bf16.gmra.mxu0 %v3392
      %v3562 = vpop.f32.mrf.mxu0
      %v3563 = vadd.f32 0.0, %v3562
      %v3564 = vpop.f32.mrf.mxu0
      %v3565 = vadd.f32 0.0, %v3564
      %3566 = vmatmul.bf16.gmra.mxu0 %v3393
      %v3567 = vpop.f32.mrf.mxu0
      %v3568 = vadd.f32 0.0, %v3567
      %v3569 = vpop.f32.mrf.mxu0
      %v3570 = vadd.f32 0.0, %v3569
      %3571 = vmatmul.bf16.gmra.mxu0 %v3394
      %v3572 = vpop.f32.mrf.mxu0
      %v3573 = vadd.f32 0.0, %v3572
      %v3574 = vpop.f32.mrf.mxu0
      %v3575 = vadd.f32 0.0, %v3574
      %3576 = vmatmul.bf16.gmra.mxu0 %v3395
      %v3577 = vpop.f32.mrf.mxu0
      %v3578 = vadd.f32 0.0, %v3577
      %v3579 = vpop.f32.mrf.mxu0
      %v3580 = vadd.f32 0.0, %v3579
      %3581 = vmatmul.bf16.gmra.mxu0 %v3396
      %v3582 = vpop.f32.mrf.mxu0
      %v3583 = vadd.f32 0.0, %v3582
      %v3584 = vpop.f32.mrf.mxu0
      %v3585 = vadd.f32 0.0, %v3584
      %3586 = vmatmul.bf16.gmra.mxu0 %v3397
      %v3587 = vpop.f32.mrf.mxu0
      %v3588 = vadd.f32 0.0, %v3587
      %v3589 = vpop.f32.mrf.mxu0
      %v3590 = vadd.f32 0.0, %v3589
      %3591 = vdwg.mxu0
      %v3608 = vunpack.c.l.b16 %v3276
      %v3609 = vunpack.c.l.b16 %v3277
      %v3610 = vunpack.c.l.b16 %v3278
      %v3611 = vunpack.c.l.b16 %v3279
      %v3612 = vunpack.c.l.b16 %v3280
      %v3613 = vunpack.c.l.b16 %v3281
      %v3614 = vunpack.c.l.b16 %v3282
      %v3615 = vunpack.c.l.b16 %v3283
      %v3616 = vunpack.c.l.b16 %v3284
      %v3617 = vunpack.c.l.b16 %v3285
      %v3618 = vunpack.c.l.b16 %v3286
      %v3619 = vunpack.c.l.b16 %v3287
      %v3620 = vunpack.c.l.b16 %v3288
      %v3621 = vunpack.c.l.b16 %v3289
      %v3622 = vunpack.c.l.b16 %v3290
      %v3623 = vunpack.c.l.b16 %v3291
      %v3624 = vpack.c.b16 %v3609, %v3608
      %v3625 = vpack.c.b16 %v3611, %v3610
      %v3626 = vpack.c.b16 %v3613, %v3612
      %v3627 = vpack.c.b16 %v3615, %v3614
      %v3628 = vpack.c.b16 %v3617, %v3616
      %v3629 = vpack.c.b16 %v3619, %v3618
      %v3630 = vpack.c.b16 %v3621, %v3620
      %v3631 = vpack.c.b16 %v3623, %v3622
      %3640 = vmatpush.bf16.msra.mxu0 %v3631
      %3641 = vmatpush.bf16.msra.mxu0 %v3630
      %3642 = vmatpush.bf16.msra.mxu0 %v3629
      %3643 = vmatpush.bf16.msra.mxu0 %v3628
      %3644 = vmatpush.bf16.msra.mxu0 %v3627
      %3645 = vmatpush.bf16.msra.mxu0 %v3626
      %3646 = vmatpush.bf16.msra.mxu0 %v3625
      %3647 = vmatpush.bf16.msra.mxu0 %v3624
      %3648 = vmatmul.bf16.gmra.mxu0 %v3252
      %v3649 = vpop.f32.mrf.mxu0
      %v3650 = vadd.f32 %v3473, %v3649
      %v3651 = vpop.f32.mrf.mxu0
      %v3652 = vadd.f32 %v3475, %v3651
      %3653 = vmatmul.bf16.gmra.mxu0 %v3253
      %v3654 = vpop.f32.mrf.mxu0
      %v3655 = vadd.f32 %v3478, %v3654
      %v3656 = vpop.f32.mrf.mxu0
      %v3657 = vadd.f32 %v3480, %v3656
      %3658 = vmatmul.bf16.gmra.mxu0 %v3254
      %v3659 = vpop.f32.mrf.mxu0
      %v3660 = vadd.f32 %v3483, %v3659
      %v3661 = vpop.f32.mrf.mxu0
      %v3662 = vadd.f32 %v3485, %v3661
      %3663 = vmatmul.bf16.gmra.mxu0 %v3255
      %v3664 = vpop.f32.mrf.mxu0
      %v3665 = vadd.f32 %v3488, %v3664
      %v3666 = vpop.f32.mrf.mxu0
      %v3667 = vadd.f32 %v3490, %v3666
      %3668 = vmatmul.bf16.gmra.mxu0 %v3256
      %v3669 = vpop.f32.mrf.mxu0
      %v3670 = vadd.f32 %v3493, %v3669
      %v3671 = vpop.f32.mrf.mxu0
      %v3672 = vadd.f32 %v3495, %v3671
      %3673 = vmatmul.bf16.gmra.mxu0 %v3257
      %v3674 = vpop.f32.mrf.mxu0
      %v3675 = vadd.f32 %v3498, %v3674
      %v3676 = vpop.f32.mrf.mxu0
      %v3677 = vadd.f32 %v3500, %v3676
      %3678 = vmatmul.bf16.gmra.mxu0 %v3258
      %v3679 = vpop.f32.mrf.mxu0
      %v3680 = vadd.f32 %v3503, %v3679
      %v3681 = vpop.f32.mrf.mxu0
      %v3682 = vadd.f32 %v3505, %v3681
      %3683 = vmatmul.bf16.gmra.mxu0 %v3259
      %v3684 = vpop.f32.mrf.mxu0
      %v3685 = vadd.f32 %v3508, %v3684
      %v3686 = vpop.f32.mrf.mxu0
      %v3687 = vadd.f32 %v3510, %v3686
      %3688 = vmatmul.bf16.gmra.mxu0 %v3260
      %v3689 = vpop.f32.mrf.mxu0
      %v3690 = vadd.f32 %v3513, %v3689
      %v3691 = vpop.f32.mrf.mxu0
      %v3692 = vadd.f32 %v3515, %v3691
      %3693 = vmatmul.bf16.gmra.mxu0 %v3261
      %v3694 = vpop.f32.mrf.mxu0
      %v3695 = vadd.f32 %v3518, %v3694
      %v3696 = vpop.f32.mrf.mxu0
      %v3697 = vadd.f32 %v3520, %v3696
      %3698 = vmatmul.bf16.gmra.mxu0 %v3262
      %v3699 = vpop.f32.mrf.mxu0
      %v3700 = vadd.f32 %v3523, %v3699
      %v3701 = vpop.f32.mrf.mxu0
      %v3702 = vadd.f32 %v3525, %v3701
      %3703 = vmatmul.bf16.gmra.mxu0 %v3263
      %v3704 = vpop.f32.mrf.mxu0
      %v3705 = vadd.f32 %v3528, %v3704
      %v3706 = vpop.f32.mrf.mxu0
      %v3707 = vadd.f32 %v3530, %v3706
      %3708 = vmatmul.bf16.gmra.mxu0 %v3264
      %v3709 = vpop.f32.mrf.mxu0
      %v3710 = vadd.f32 %v3533, %v3709
      %v3711 = vpop.f32.mrf.mxu0
      %v3712 = vadd.f32 %v3535, %v3711
      %3713 = vmatmul.bf16.gmra.mxu0 %v3265
      %v3714 = vpop.f32.mrf.mxu0
      %v3715 = vadd.f32 %v3538, %v3714
      %v3716 = vpop.f32.mrf.mxu0
      %v3717 = vadd.f32 %v3540, %v3716
      %3718 = vmatmul.bf16.gmra.mxu0 %v3266
      %v3719 = vpop.f32.mrf.mxu0
      %v3720 = vadd.f32 %v3543, %v3719
      %v3721 = vpop.f32.mrf.mxu0
      %v3722 = vadd.f32 %v3545, %v3721
      %3723 = vmatmul.bf16.gmra.mxu0 %v3267
      %v3724 = vpop.f32.mrf.mxu0
      %v3725 = vadd.f32 %v3548, %v3724
      %v3726 = vpop.f32.mrf.mxu0
      %v3727 = vadd.f32 %v3550, %v3726
      %3728 = vmatmul.bf16.gmra.mxu0 %v3268
      %v3729 = vpop.f32.mrf.mxu0
      %v3730 = vadd.f32 %v3553, %v3729
      %v3731 = vpop.f32.mrf.mxu0
      %v3732 = vadd.f32 %v3555, %v3731
      %3733 = vmatmul.bf16.gmra.mxu0 %v3269
      %v3734 = vpop.f32.mrf.mxu0
      %v3735 = vadd.f32 %v3558, %v3734
      %v3736 = vpop.f32.mrf.mxu0
      %v3737 = vadd.f32 %v3560, %v3736
      %3738 = vmatmul.bf16.gmra.mxu0 %v3270
      %v3739 = vpop.f32.mrf.mxu0
      %v3740 = vadd.f32 %v3563, %v3739
      %v3741 = vpop.f32.mrf.mxu0
      %v3742 = vadd.f32 %v3565, %v3741
      %3743 = vmatmul.bf16.gmra.mxu0 %v3271
      %v3744 = vpop.f32.mrf.mxu0
      %v3745 = vadd.f32 %v3568, %v3744
      %v3746 = vpop.f32.mrf.mxu0
      %v3747 = vadd.f32 %v3570, %v3746
      %3748 = vmatmul.bf16.gmra.mxu0 %v3272
      %v3749 = vpop.f32.mrf.mxu0
      %v3750 = vadd.f32 %v3573, %v3749
      %v3751 = vpop.f32.mrf.mxu0
      %v3752 = vadd.f32 %v3575, %v3751
      %3753 = vmatmul.bf16.gmra.mxu0 %v3273
      %v3754 = vpop.f32.mrf.mxu0
      %v3755 = vadd.f32 %v3578, %v3754
      %v3756 = vpop.f32.mrf.mxu0
      %v3757 = vadd.f32 %v3580, %v3756
      %3758 = vmatmul.bf16.gmra.mxu0 %v3274
      %v3759 = vpop.f32.mrf.mxu0
      %v3760 = vadd.f32 %v3583, %v3759
      %v3761 = vpop.f32.mrf.mxu0
      %v3762 = vadd.f32 %v3585, %v3761
      %3763 = vmatmul.bf16.gmra.mxu0 %v3275
      %v3764 = vpop.f32.mrf.mxu0
      %v3765 = vadd.f32 %v3588, %v3764
      %v3766 = vpop.f32.mrf.mxu0
      %v3767 = vadd.f32 %v3590, %v3766
      %3768 = vdwg.mxu0
      %s3769 = scalar_lea.vmem %s2, 256
      %v3770 = vld [vmem:[%s3769] sm:$0xf]
      %v3771 = vld [vmem:[%s3769 + $0x4] sm:$0xf]
      %v3772 = vld [vmem:[%s3769 + $0x8] sm:$0xf]
      %v3773 = vld [vmem:[%s3769 + $0xc] sm:$0xf]
      %v3774 = vld [vmem:[%s3769 + $0x10] sm:$0xf]
      %v3775 = vld [vmem:[%s3769 + $0x14] sm:$0xf]
      %v3776 = vld [vmem:[%s3769 + $0x18] sm:$0xf]
      %v3777 = vld [vmem:[%s3769 + $0x1c] sm:$0xf]
      %v3778 = vld [vmem:[%s3769 + $0x20] sm:$0xf]
      %v3779 = vld [vmem:[%s3769 + $0x24] sm:$0xf]
      %v3780 = vld [vmem:[%s3769 + $0x28] sm:$0xf]
      %v3781 = vld [vmem:[%s3769 + $0x2c] sm:$0xf]
      %v3782 = vld [vmem:[%s3769 + $0x30] sm:$0xf]
      %v3783 = vld [vmem:[%s3769 + $0x34] sm:$0xf]
      %v3784 = vld [vmem:[%s3769 + $0x38] sm:$0xf]
      %v3785 = vld [vmem:[%s3769 + $0x3c] sm:$0xf]
      %v3802 = vunpack.c.l.b16 %v3770
      %v3803 = vunpack.c.l.b16 %v3771
      %v3804 = vunpack.c.l.b16 %v3772
      %v3805 = vunpack.c.l.b16 %v3773
      %v3806 = vunpack.c.l.b16 %v3774
      %v3807 = vunpack.c.l.b16 %v3775
      %v3808 = vunpack.c.l.b16 %v3776
      %v3809 = vunpack.c.l.b16 %v3777
      %v3810 = vunpack.c.l.b16 %v3778
      %v3811 = vunpack.c.l.b16 %v3779
      %v3812 = vunpack.c.l.b16 %v3780
      %v3813 = vunpack.c.l.b16 %v3781
      %v3814 = vunpack.c.l.b16 %v3782
      %v3815 = vunpack.c.l.b16 %v3783
      %v3816 = vunpack.c.l.b16 %v3784
      %v3817 = vunpack.c.l.b16 %v3785
      %v3818 = vpack.c.b16 %v3803, %v3802
      %v3819 = vpack.c.b16 %v3805, %v3804
      %v3820 = vpack.c.b16 %v3807, %v3806
      %v3821 = vpack.c.b16 %v3809, %v3808
      %v3822 = vpack.c.b16 %v3811, %v3810
      %v3823 = vpack.c.b16 %v3813, %v3812
      %v3824 = vpack.c.b16 %v3815, %v3814
      %v3825 = vpack.c.b16 %v3817, %v3816
      %3834 = vmatpush.bf16.msra.mxu0 %v3825
      %3835 = vmatpush.bf16.msra.mxu0 %v3824
      %3836 = vmatpush.bf16.msra.mxu0 %v3823
      %3837 = vmatpush.bf16.msra.mxu0 %v3822
      %3838 = vmatpush.bf16.msra.mxu0 %v3821
      %3839 = vmatpush.bf16.msra.mxu0 %v3820
      %3840 = vmatpush.bf16.msra.mxu0 %v3819
      %3841 = vmatpush.bf16.msra.mxu0 %v3818
      %3842 = vmatmul.bf16.gmra.mxu0 %v3374
      %v3843 = vpop.f32.mrf.mxu0
      %v3844 = vadd.f32 0.0, %v3843
      %v3845 = vpop.f32.mrf.mxu0
      %v3846 = vadd.f32 0.0, %v3845
      %3847 = vmatmul.bf16.gmra.mxu0 %v3375
      %v3848 = vpop.f32.mrf.mxu0
      %v3849 = vadd.f32 0.0, %v3848
      %v3850 = vpop.f32.mrf.mxu0
      %v3851 = vadd.f32 0.0, %v3850
      %3852 = vmatmul.bf16.gmra.mxu0 %v3376
      %v3853 = vpop.f32.mrf.mxu0
      %v3854 = vadd.f32 0.0, %v3853
      %v3855 = vpop.f32.mrf.mxu0
      %v3856 = vadd.f32 0.0, %v3855
      %3857 = vmatmul.bf16.gmra.mxu0 %v3377
      %v3858 = vpop.f32.mrf.mxu0
      %v3859 = vadd.f32 0.0, %v3858
      %v3860 = vpop.f32.mrf.mxu0
      %v3861 = vadd.f32 0.0, %v3860
      %3862 = vmatmul.bf16.gmra.mxu0 %v3378
      %v3863 = vpop.f32.mrf.mxu0
      %v3864 = vadd.f32 0.0, %v3863
      %v3865 = vpop.f32.mrf.mxu0
      %v3866 = vadd.f32 0.0, %v3865
      %3867 = vmatmul.bf16.gmra.mxu0 %v3379
      %v3868 = vpop.f32.mrf.mxu0
      %v3869 = vadd.f32 0.0, %v3868
      %v3870 = vpop.f32.mrf.mxu0
      %v3871 = vadd.f32 0.0, %v3870
      %3872 = vmatmul.bf16.gmra.mxu0 %v3380
      %v3873 = vpop.f32.mrf.mxu0
      %v3874 = vadd.f32 0.0, %v3873
      %v3875 = vpop.f32.mrf.mxu0
      %v3876 = vadd.f32 0.0, %v3875
      %3877 = vmatmul.bf16.gmra.mxu0 %v3381
      %v3878 = vpop.f32.mrf.mxu0
      %v3879 = vadd.f32 0.0, %v3878
      %v3880 = vpop.f32.mrf.mxu0
      %v3881 = vadd.f32 0.0, %v3880
      %3882 = vmatmul.bf16.gmra.mxu0 %v3382
      %v3883 = vpop.f32.mrf.mxu0
      %v3884 = vadd.f32 0.0, %v3883
      %v3885 = vpop.f32.mrf.mxu0
      %v3886 = vadd.f32 0.0, %v3885
      %3887 = vmatmul.bf16.gmra.mxu0 %v3383
      %v3888 = vpop.f32.mrf.mxu0
      %v3889 = vadd.f32 0.0, %v3888
      %v3890 = vpop.f32.mrf.mxu0
      %v3891 = vadd.f32 0.0, %v3890
      %3892 = vmatmul.bf16.gmra.mxu0 %v3384
      %v3893 = vpop.f32.mrf.mxu0
      %v3894 = vadd.f32 0.0, %v3893
      %v3895 = vpop.f32.mrf.mxu0
      %v3896 = vadd.f32 0.0, %v3895
      %3897 = vmatmul.bf16.gmra.mxu0 %v3385
      %v3898 = vpop.f32.mrf.mxu0
      %v3899 = vadd.f32 0.0, %v3898
      %v3900 = vpop.f32.mrf.mxu0
      %v3901 = vadd.f32 0.0, %v3900
      %3902 = vmatmul.bf16.gmra.mxu0 %v3386
      %v3903 = vpop.f32.mrf.mxu0
      %v3904 = vadd.f32 0.0, %v3903
      %v3905 = vpop.f32.mrf.mxu0
      %v3906 = vadd.f32 0.0, %v3905
      %3907 = vmatmul.bf16.gmra.mxu0 %v3387
      %v3908 = vpop.f32.mrf.mxu0
      %v3909 = vadd.f32 0.0, %v3908
      %v3910 = vpop.f32.mrf.mxu0
      %v3911 = vadd.f32 0.0, %v3910
      %3912 = vmatmul.bf16.gmra.mxu0 %v3388
      %v3913 = vpop.f32.mrf.mxu0
      %v3914 = vadd.f32 0.0, %v3913
      %v3915 = vpop.f32.mrf.mxu0
      %v3916 = vadd.f32 0.0, %v3915
      %3917 = vmatmul.bf16.gmra.mxu0 %v3389
      %v3918 = vpop.f32.mrf.mxu0
      %v3919 = vadd.f32 0.0, %v3918
      %v3920 = vpop.f32.mrf.mxu0
      %v3921 = vadd.f32 0.0, %v3920
      %3922 = vmatmul.bf16.gmra.mxu0 %v3390
      %v3923 = vpop.f32.mrf.mxu0
      %v3924 = vadd.f32 0.0, %v3923
      %v3925 = vpop.f32.mrf.mxu0
      %v3926 = vadd.f32 0.0, %v3925
      %3927 = vmatmul.bf16.gmra.mxu0 %v3391
      %v3928 = vpop.f32.mrf.mxu0
      %v3929 = vadd.f32 0.0, %v3928
      %v3930 = vpop.f32.mrf.mxu0
      %v3931 = vadd.f32 0.0, %v3930
      %3932 = vmatmul.bf16.gmra.mxu0 %v3392
      %v3933 = vpop.f32.mrf.mxu0
      %v3934 = vadd.f32 0.0, %v3933
      %v3935 = vpop.f32.mrf.mxu0
      %v3936 = vadd.f32 0.0, %v3935
      %3937 = vmatmul.bf16.gmra.mxu0 %v3393
      %v3938 = vpop.f32.mrf.mxu0
      %v3939 = vadd.f32 0.0, %v3938
      %v3940 = vpop.f32.mrf.mxu0
      %v3941 = vadd.f32 0.0, %v3940
      %3942 = vmatmul.bf16.gmra.mxu0 %v3394
      %v3943 = vpop.f32.mrf.mxu0
      %v3944 = vadd.f32 0.0, %v3943
      %v3945 = vpop.f32.mrf.mxu0
      %v3946 = vadd.f32 0.0, %v3945
      %3947 = vmatmul.bf16.gmra.mxu0 %v3395
      %v3948 = vpop.f32.mrf.mxu0
      %v3949 = vadd.f32 0.0, %v3948
      %v3950 = vpop.f32.mrf.mxu0
      %v3951 = vadd.f32 0.0, %v3950
      %3952 = vmatmul.bf16.gmra.mxu0 %v3396
      %v3953 = vpop.f32.mrf.mxu0
      %v3954 = vadd.f32 0.0, %v3953
      %v3955 = vpop.f32.mrf.mxu0
      %v3956 = vadd.f32 0.0, %v3955
      %3957 = vmatmul.bf16.gmra.mxu0 %v3397
      %v3958 = vpop.f32.mrf.mxu0
      %v3959 = vadd.f32 0.0, %v3958
      %v3960 = vpop.f32.mrf.mxu0
      %v3961 = vadd.f32 0.0, %v3960
      %3962 = vdwg.mxu0
      %v3979 = vunpack.c.l.b16 %v3293
      %v3980 = vunpack.c.l.b16 %v3294
      %v3981 = vunpack.c.l.b16 %v3295
      %v3982 = vunpack.c.l.b16 %v3296
      %v3983 = vunpack.c.l.b16 %v3297
      %v3984 = vunpack.c.l.b16 %v3298
      %v3985 = vunpack.c.l.b16 %v3299
      %v3986 = vunpack.c.l.b16 %v3300
      %v3987 = vunpack.c.l.b16 %v3301
      %v3988 = vunpack.c.l.b16 %v3302
      %v3989 = vunpack.c.l.b16 %v3303
      %v3990 = vunpack.c.l.b16 %v3304
      %v3991 = vunpack.c.l.b16 %v3305
      %v3992 = vunpack.c.l.b16 %v3306
      %v3993 = vunpack.c.l.b16 %v3307
      %v3994 = vunpack.c.l.b16 %v3308
      %v3995 = vpack.c.b16 %v3980, %v3979
      %v3996 = vpack.c.b16 %v3982, %v3981
      %v3997 = vpack.c.b16 %v3984, %v3983
      %v3998 = vpack.c.b16 %v3986, %v3985
      %v3999 = vpack.c.b16 %v3988, %v3987
      %v4000 = vpack.c.b16 %v3990, %v3989
      %v4001 = vpack.c.b16 %v3992, %v3991
      %v4002 = vpack.c.b16 %v3994, %v3993
      %4011 = vmatpush.bf16.msra.mxu0 %v4002
      %4012 = vmatpush.bf16.msra.mxu0 %v4001
      %4013 = vmatpush.bf16.msra.mxu0 %v4000
      %4014 = vmatpush.bf16.msra.mxu0 %v3999
      %4015 = vmatpush.bf16.msra.mxu0 %v3998
      %4016 = vmatpush.bf16.msra.mxu0 %v3997
      %4017 = vmatpush.bf16.msra.mxu0 %v3996
      %4018 = vmatpush.bf16.msra.mxu0 %v3995
      %4019 = vmatmul.bf16.gmra.mxu0 %v3252
      %v4020 = vpop.f32.mrf.mxu0
      %v4021 = vadd.f32 %v3844, %v4020
      %v4022 = vpop.f32.mrf.mxu0
      %v4023 = vadd.f32 %v3846, %v4022
      %4024 = vmatmul.bf16.gmra.mxu0 %v3253
      %v4025 = vpop.f32.mrf.mxu0
      %v4026 = vadd.f32 %v3849, %v4025
      %v4027 = vpop.f32.mrf.mxu0
      %v4028 = vadd.f32 %v3851, %v4027
      %4029 = vmatmul.bf16.gmra.mxu0 %v3254
      %v4030 = vpop.f32.mrf.mxu0
      %v4031 = vadd.f32 %v3854, %v4030
      %v4032 = vpop.f32.mrf.mxu0
      %v4033 = vadd.f32 %v3856, %v4032
      %4034 = vmatmul.bf16.gmra.mxu0 %v3255
      %v4035 = vpop.f32.mrf.mxu0
      %v4036 = vadd.f32 %v3859, %v4035
      %v4037 = vpop.f32.mrf.mxu0
      %v4038 = vadd.f32 %v3861, %v4037
      %4039 = vmatmul.bf16.gmra.mxu0 %v3256
      %v4040 = vpop.f32.mrf.mxu0
      %v4041 = vadd.f32 %v3864, %v4040
      %v4042 = vpop.f32.mrf.mxu0
      %v4043 = vadd.f32 %v3866, %v4042
      %4044 = vmatmul.bf16.gmra.mxu0 %v3257
      %v4045 = vpop.f32.mrf.mxu0
      %v4046 = vadd.f32 %v3869, %v4045
      %v4047 = vpop.f32.mrf.mxu0
      %v4048 = vadd.f32 %v3871, %v4047
      %4049 = vmatmul.bf16.gmra.mxu0 %v3258
      %v4050 = vpop.f32.mrf.mxu0
      %v4051 = vadd.f32 %v3874, %v4050
      %v4052 = vpop.f32.mrf.mxu0
      %v4053 = vadd.f32 %v3876, %v4052
      %4054 = vmatmul.bf16.gmra.mxu0 %v3259
      %v4055 = vpop.f32.mrf.mxu0
      %v4056 = vadd.f32 %v3879, %v4055
      %v4057 = vpop.f32.mrf.mxu0
      %v4058 = vadd.f32 %v3881, %v4057
      %4059 = vmatmul.bf16.gmra.mxu0 %v3260
      %v4060 = vpop.f32.mrf.mxu0
      %v4061 = vadd.f32 %v3884, %v4060
      %v4062 = vpop.f32.mrf.mxu0
      %v4063 = vadd.f32 %v3886, %v4062
      %4064 = vmatmul.bf16.gmra.mxu0 %v3261
      %v4065 = vpop.f32.mrf.mxu0
      %v4066 = vadd.f32 %v3889, %v4065
      %v4067 = vpop.f32.mrf.mxu0
      %v4068 = vadd.f32 %v3891, %v4067
      %4069 = vmatmul.bf16.gmra.mxu0 %v3262
      %v4070 = vpop.f32.mrf.mxu0
      %v4071 = vadd.f32 %v3894, %v4070
      %v4072 = vpop.f32.mrf.mxu0
      %v4073 = vadd.f32 %v3896, %v4072
      %4074 = vmatmul.bf16.gmra.mxu0 %v3263
      %v4075 = vpop.f32.mrf.mxu0
      %v4076 = vadd.f32 %v3899, %v4075
      %v4077 = vpop.f32.mrf.mxu0
      %v4078 = vadd.f32 %v3901, %v4077
      %4079 = vmatmul.bf16.gmra.mxu0 %v3264
      %v4080 = vpop.f32.mrf.mxu0
      %v4081 = vadd.f32 %v3904, %v4080
      %v4082 = vpop.f32.mrf.mxu0
      %v4083 = vadd.f32 %v3906, %v4082
      %4084 = vmatmul.bf16.gmra.mxu0 %v3265
      %v4085 = vpop.f32.mrf.mxu0
      %v4086 = vadd.f32 %v3909, %v4085
      %v4087 = vpop.f32.mrf.mxu0
      %v4088 = vadd.f32 %v3911, %v4087
      %4089 = vmatmul.bf16.gmra.mxu0 %v3266
      %v4090 = vpop.f32.mrf.mxu0
      %v4091 = vadd.f32 %v3914, %v4090
      %v4092 = vpop.f32.mrf.mxu0
      %v4093 = vadd.f32 %v3916, %v4092
      %4094 = vmatmul.bf16.gmra.mxu0 %v3267
      %v4095 = vpop.f32.mrf.mxu0
      %v4096 = vadd.f32 %v3919, %v4095
      %v4097 = vpop.f32.mrf.mxu0
      %v4098 = vadd.f32 %v3921, %v4097
      %4099 = vmatmul.bf16.gmra.mxu0 %v3268
      %v4100 = vpop.f32.mrf.mxu0
      %v4101 = vadd.f32 %v3924, %v4100
      %v4102 = vpop.f32.mrf.mxu0
      %v4103 = vadd.f32 %v3926, %v4102
      %4104 = vmatmul.bf16.gmra.mxu0 %v3269
      %v4105 = vpop.f32.mrf.mxu0
      %v4106 = vadd.f32 %v3929, %v4105
      %v4107 = vpop.f32.mrf.mxu0
      %v4108 = vadd.f32 %v3931, %v4107
      %4109 = vmatmul.bf16.gmra.mxu0 %v3270
      %v4110 = vpop.f32.mrf.mxu0
      %v4111 = vadd.f32 %v3934, %v4110
      %v4112 = vpop.f32.mrf.mxu0
      %v4113 = vadd.f32 %v3936, %v4112
      %4114 = vmatmul.bf16.gmra.mxu0 %v3271
      %v4115 = vpop.f32.mrf.mxu0
      %v4116 = vadd.f32 %v3939, %v4115
      %v4117 = vpop.f32.mrf.mxu0
      %v4118 = vadd.f32 %v3941, %v4117
      %4119 = vmatmul.bf16.gmra.mxu0 %v3272
      %v4120 = vpop.f32.mrf.mxu0
      %v4121 = vadd.f32 %v3944, %v4120
      %v4122 = vpop.f32.mrf.mxu0
      %v4123 = vadd.f32 %v3946, %v4122
      %4124 = vmatmul.bf16.gmra.mxu0 %v3273
      %v4125 = vpop.f32.mrf.mxu0
      %v4126 = vadd.f32 %v3949, %v4125
      %v4127 = vpop.f32.mrf.mxu0
      %v4128 = vadd.f32 %v3951, %v4127
      %4129 = vmatmul.bf16.gmra.mxu0 %v3274
      %v4130 = vpop.f32.mrf.mxu0
      %v4131 = vadd.f32 %v3954, %v4130
      %v4132 = vpop.f32.mrf.mxu0
      %v4133 = vadd.f32 %v3956, %v4132
      %4134 = vmatmul.bf16.gmra.mxu0 %v3275
      %v4135 = vpop.f32.mrf.mxu0
      %v4136 = vadd.f32 %v3959, %v4135
      %v4137 = vpop.f32.mrf.mxu0
      %v4138 = vadd.f32 %v3961, %v4137
      %4139 = vdwg.mxu0
      %s4140 = scalar_lea.vmem %s2, 320
      %v4141 = vld [vmem:[%s4140] sm:$0xf]
      %v4142 = vld [vmem:[%s4140 + $0x4] sm:$0xf]
      %v4143 = vld [vmem:[%s4140 + $0x8] sm:$0xf]
      %v4144 = vld [vmem:[%s4140 + $0xc] sm:$0xf]
      %v4145 = vld [vmem:[%s4140 + $0x10] sm:$0xf]
      %v4146 = vld [vmem:[%s4140 + $0x14] sm:$0xf]
      %v4147 = vld [vmem:[%s4140 + $0x18] sm:$0xf]
      %v4148 = vld [vmem:[%s4140 + $0x1c] sm:$0xf]
      %v4149 = vld [vmem:[%s4140 + $0x20] sm:$0xf]
      %v4150 = vld [vmem:[%s4140 + $0x24] sm:$0xf]
      %v4151 = vld [vmem:[%s4140 + $0x28] sm:$0xf]
      %v4152 = vld [vmem:[%s4140 + $0x2c] sm:$0xf]
      %v4153 = vld [vmem:[%s4140 + $0x30] sm:$0xf]
      %v4154 = vld [vmem:[%s4140 + $0x34] sm:$0xf]
      %v4155 = vld [vmem:[%s4140 + $0x38] sm:$0xf]
      %v4156 = vld [vmem:[%s4140 + $0x3c] sm:$0xf]
      %v4173 = vunpack.c.l.b16 %v4141
      %v4174 = vunpack.c.l.b16 %v4142
      %v4175 = vunpack.c.l.b16 %v4143
      %v4176 = vunpack.c.l.b16 %v4144
      %v4177 = vunpack.c.l.b16 %v4145
      %v4178 = vunpack.c.l.b16 %v4146
      %v4179 = vunpack.c.l.b16 %v4147
      %v4180 = vunpack.c.l.b16 %v4148
      %v4181 = vunpack.c.l.b16 %v4149
      %v4182 = vunpack.c.l.b16 %v4150
      %v4183 = vunpack.c.l.b16 %v4151
      %v4184 = vunpack.c.l.b16 %v4152
      %v4185 = vunpack.c.l.b16 %v4153
      %v4186 = vunpack.c.l.b16 %v4154
      %v4187 = vunpack.c.l.b16 %v4155
      %v4188 = vunpack.c.l.b16 %v4156
      %v4189 = vpack.c.b16 %v4174, %v4173
      %v4190 = vpack.c.b16 %v4176, %v4175
      %v4191 = vpack.c.b16 %v4178, %v4177
      %v4192 = vpack.c.b16 %v4180, %v4179
      %v4193 = vpack.c.b16 %v4182, %v4181
      %v4194 = vpack.c.b16 %v4184, %v4183
      %v4195 = vpack.c.b16 %v4186, %v4185
      %v4196 = vpack.c.b16 %v4188, %v4187
      %4205 = vmatpush.bf16.msra.mxu0 %v4196
      %4206 = vmatpush.bf16.msra.mxu0 %v4195
      %4207 = vmatpush.bf16.msra.mxu0 %v4194
      %4208 = vmatpush.bf16.msra.mxu0 %v4193
      %4209 = vmatpush.bf16.msra.mxu0 %v4192
      %4210 = vmatpush.bf16.msra.mxu0 %v4191
      %4211 = vmatpush.bf16.msra.mxu0 %v4190
      %4212 = vmatpush.bf16.msra.mxu0 %v4189
      %4213 = vmatmul.bf16.gmra.mxu0 %v3374
      %v4214 = vpop.f32.mrf.mxu0
      %v4215 = vadd.f32 0.0, %v4214
      %v4216 = vpop.f32.mrf.mxu0
      %v4217 = vadd.f32 0.0, %v4216
      %4218 = vmatmul.bf16.gmra.mxu0 %v3375
      %v4219 = vpop.f32.mrf.mxu0
      %v4220 = vadd.f32 0.0, %v4219
      %v4221 = vpop.f32.mrf.mxu0
      %v4222 = vadd.f32 0.0, %v4221
      %4223 = vmatmul.bf16.gmra.mxu0 %v3376
      %v4224 = vpop.f32.mrf.mxu0
      %v4225 = vadd.f32 0.0, %v4224
      %v4226 = vpop.f32.mrf.mxu0
      %v4227 = vadd.f32 0.0, %v4226
      %4228 = vmatmul.bf16.gmra.mxu0 %v3377
      %v4229 = vpop.f32.mrf.mxu0
      %v4230 = vadd.f32 0.0, %v4229
      %v4231 = vpop.f32.mrf.mxu0
      %v4232 = vadd.f32 0.0, %v4231
      %4233 = vmatmul.bf16.gmra.mxu0 %v3378
      %v4234 = vpop.f32.mrf.mxu0
      %v4235 = vadd.f32 0.0, %v4234
      %v4236 = vpop.f32.mrf.mxu0
      %v4237 = vadd.f32 0.0, %v4236
      %4238 = vmatmul.bf16.gmra.mxu0 %v3379
      %v4239 = vpop.f32.mrf.mxu0
      %v4240 = vadd.f32 0.0, %v4239
      %v4241 = vpop.f32.mrf.mxu0
      %v4242 = vadd.f32 0.0, %v4241
      %4243 = vmatmul.bf16.gmra.mxu0 %v3380
      %v4244 = vpop.f32.mrf.mxu0
      %v4245 = vadd.f32 0.0, %v4244
      %v4246 = vpop.f32.mrf.mxu0
      %v4247 = vadd.f32 0.0, %v4246
      %4248 = vmatmul.bf16.gmra.mxu0 %v3381
      %v4249 = vpop.f32.mrf.mxu0
      %v4250 = vadd.f32 0.0, %v4249
      %v4251 = vpop.f32.mrf.mxu0
      %v4252 = vadd.f32 0.0, %v4251
      %4253 = vmatmul.bf16.gmra.mxu0 %v3382
      %v4254 = vpop.f32.mrf.mxu0
      %v4255 = vadd.f32 0.0, %v4254
      %v4256 = vpop.f32.mrf.mxu0
      %v4257 = vadd.f32 0.0, %v4256
      %4258 = vmatmul.bf16.gmra.mxu0 %v3383
      %v4259 = vpop.f32.mrf.mxu0
      %v4260 = vadd.f32 0.0, %v4259
      %v4261 = vpop.f32.mrf.mxu0
      %v4262 = vadd.f32 0.0, %v4261
      %4263 = vmatmul.bf16.gmra.mxu0 %v3384
      %v4264 = vpop.f32.mrf.mxu0
      %v4265 = vadd.f32 0.0, %v4264
      %v4266 = vpop.f32.mrf.mxu0
      %v4267 = vadd.f32 0.0, %v4266
      %4268 = vmatmul.bf16.gmra.mxu0 %v3385
      %v4269 = vpop.f32.mrf.mxu0
      %v4270 = vadd.f32 0.0, %v4269
      %v4271 = vpop.f32.mrf.mxu0
      %v4272 = vadd.f32 0.0, %v4271
      %4273 = vmatmul.bf16.gmra.mxu0 %v3386
      %v4274 = vpop.f32.mrf.mxu0
      %v4275 = vadd.f32 0.0, %v4274
      %v4276 = vpop.f32.mrf.mxu0
      %v4277 = vadd.f32 0.0, %v4276
      %4278 = vmatmul.bf16.gmra.mxu0 %v3387
      %v4279 = vpop.f32.mrf.mxu0
      %v4280 = vadd.f32 0.0, %v4279
      %v4281 = vpop.f32.mrf.mxu0
      %v4282 = vadd.f32 0.0, %v4281
      %4283 = vmatmul.bf16.gmra.mxu0 %v3388
      %v4284 = vpop.f32.mrf.mxu0
      %v4285 = vadd.f32 0.0, %v4284
      %v4286 = vpop.f32.mrf.mxu0
      %v4287 = vadd.f32 0.0, %v4286
      %4288 = vmatmul.bf16.gmra.mxu0 %v3389
      %v4289 = vpop.f32.mrf.mxu0
      %v4290 = vadd.f32 0.0, %v4289
      %v4291 = vpop.f32.mrf.mxu0
      %v4292 = vadd.f32 0.0, %v4291
      %4293 = vmatmul.bf16.gmra.mxu0 %v3390
      %v4294 = vpop.f32.mrf.mxu0
      %v4295 = vadd.f32 0.0, %v4294
      %v4296 = vpop.f32.mrf.mxu0
      %v4297 = vadd.f32 0.0, %v4296
      %4298 = vmatmul.bf16.gmra.mxu0 %v3391
      %v4299 = vpop.f32.mrf.mxu0
      %v4300 = vadd.f32 0.0, %v4299
      %v4301 = vpop.f32.mrf.mxu0
      %v4302 = vadd.f32 0.0, %v4301
      %4303 = vmatmul.bf16.gmra.mxu0 %v3392
      %v4304 = vpop.f32.mrf.mxu0
      %v4305 = vadd.f32 0.0, %v4304
      %v4306 = vpop.f32.mrf.mxu0
      %v4307 = vadd.f32 0.0, %v4306
      %4308 = vmatmul.bf16.gmra.mxu0 %v3393
      %v4309 = vpop.f32.mrf.mxu0
      %v4310 = vadd.f32 0.0, %v4309
      %v4311 = vpop.f32.mrf.mxu0
      %v4312 = vadd.f32 0.0, %v4311
      %4313 = vmatmul.bf16.gmra.mxu0 %v3394
      %v4314 = vpop.f32.mrf.mxu0
      %v4315 = vadd.f32 0.0, %v4314
      %v4316 = vpop.f32.mrf.mxu0
      %v4317 = vadd.f32 0.0, %v4316
      %4318 = vmatmul.bf16.gmra.mxu0 %v3395
      %v4319 = vpop.f32.mrf.mxu0
      %v4320 = vadd.f32 0.0, %v4319
      %v4321 = vpop.f32.mrf.mxu0
      %v4322 = vadd.f32 0.0, %v4321
      %4323 = vmatmul.bf16.gmra.mxu0 %v3396
      %v4324 = vpop.f32.mrf.mxu0
      %v4325 = vadd.f32 0.0, %v4324
      %v4326 = vpop.f32.mrf.mxu0
      %v4327 = vadd.f32 0.0, %v4326
      %4328 = vmatmul.bf16.gmra.mxu0 %v3397
      %v4329 = vpop.f32.mrf.mxu0
      %v4330 = vadd.f32 0.0, %v4329
      %v4331 = vpop.f32.mrf.mxu0
      %v4332 = vadd.f32 0.0, %v4331
      %4333 = vdwg.mxu0
      %v4350 = vunpack.c.l.b16 %v3310
      %v4351 = vunpack.c.l.b16 %v3311
      %v4352 = vunpack.c.l.b16 %v3312
      %v4353 = vunpack.c.l.b16 %v3313
      %v4354 = vunpack.c.l.b16 %v3314
      %v4355 = vunpack.c.l.b16 %v3315
      %v4356 = vunpack.c.l.b16 %v3316
      %v4357 = vunpack.c.l.b16 %v3317
      %v4358 = vunpack.c.l.b16 %v3318
      %v4359 = vunpack.c.l.b16 %v3319
      %v4360 = vunpack.c.l.b16 %v3320
      %v4361 = vunpack.c.l.b16 %v3321
      %v4362 = vunpack.c.l.b16 %v3322
      %v4363 = vunpack.c.l.b16 %v3323
      %v4364 = vunpack.c.l.b16 %v3324
      %v4365 = vunpack.c.l.b16 %v3325
      %v4366 = vpack.c.b16 %v4351, %v4350
      %v4367 = vpack.c.b16 %v4353, %v4352
      %v4368 = vpack.c.b16 %v4355, %v4354
      %v4369 = vpack.c.b16 %v4357, %v4356
      %v4370 = vpack.c.b16 %v4359, %v4358
      %v4371 = vpack.c.b16 %v4361, %v4360
      %v4372 = vpack.c.b16 %v4363, %v4362
      %v4373 = vpack.c.b16 %v4365, %v4364
      %4382 = vmatpush.bf16.msra.mxu0 %v4373
      %4383 = vmatpush.bf16.msra.mxu0 %v4372
      %4384 = vmatpush.bf16.msra.mxu0 %v4371
      %4385 = vmatpush.bf16.msra.mxu0 %v4370
      %4386 = vmatpush.bf16.msra.mxu0 %v4369
      %4387 = vmatpush.bf16.msra.mxu0 %v4368
      %4388 = vmatpush.bf16.msra.mxu0 %v4367
      %4389 = vmatpush.bf16.msra.mxu0 %v4366
      %4390 = vmatmul.bf16.gmra.mxu0 %v3252
      %v4391 = vpop.f32.mrf.mxu0
      %v4392 = vadd.f32 %v4215, %v4391
      %v4393 = vpop.f32.mrf.mxu0
      %v4394 = vadd.f32 %v4217, %v4393
      %4395 = vmatmul.bf16.gmra.mxu0 %v3253
      %v4396 = vpop.f32.mrf.mxu0
      %v4397 = vadd.f32 %v4220, %v4396
      %v4398 = vpop.f32.mrf.mxu0
      %v4399 = vadd.f32 %v4222, %v4398
      %4400 = vmatmul.bf16.gmra.mxu0 %v3254
      %v4401 = vpop.f32.mrf.mxu0
      %v4402 = vadd.f32 %v4225, %v4401
      %v4403 = vpop.f32.mrf.mxu0
      %v4404 = vadd.f32 %v4227, %v4403
      %4405 = vmatmul.bf16.gmra.mxu0 %v3255
      %v4406 = vpop.f32.mrf.mxu0
      %v4407 = vadd.f32 %v4230, %v4406
      %v4408 = vpop.f32.mrf.mxu0
      %v4409 = vadd.f32 %v4232, %v4408
      %4410 = vmatmul.bf16.gmra.mxu0 %v3256
      %v4411 = vpop.f32.mrf.mxu0
      %v4412 = vadd.f32 %v4235, %v4411
      %v4413 = vpop.f32.mrf.mxu0
      %v4414 = vadd.f32 %v4237, %v4413
      %4415 = vmatmul.bf16.gmra.mxu0 %v3257
      %v4416 = vpop.f32.mrf.mxu0
      %v4417 = vadd.f32 %v4240, %v4416
      %v4418 = vpop.f32.mrf.mxu0
      %v4419 = vadd.f32 %v4242, %v4418
      %4420 = vmatmul.bf16.gmra.mxu0 %v3258
      %v4421 = vpop.f32.mrf.mxu0
      %v4422 = vadd.f32 %v4245, %v4421
      %v4423 = vpop.f32.mrf.mxu0
      %v4424 = vadd.f32 %v4247, %v4423
      %4425 = vmatmul.bf16.gmra.mxu0 %v3259
      %v4426 = vpop.f32.mrf.mxu0
      %v4427 = vadd.f32 %v4250, %v4426
      %v4428 = vpop.f32.mrf.mxu0
      %v4429 = vadd.f32 %v4252, %v4428
      %4430 = vmatmul.bf16.gmra.mxu0 %v3260
      %v4431 = vpop.f32.mrf.mxu0
      %v4432 = vadd.f32 %v4255, %v4431
      %v4433 = vpop.f32.mrf.mxu0
      %v4434 = vadd.f32 %v4257, %v4433
      %4435 = vmatmul.bf16.gmra.mxu0 %v3261
      %v4436 = vpop.f32.mrf.mxu0
      %v4437 = vadd.f32 %v4260, %v4436
      %v4438 = vpop.f32.mrf.mxu0
      %v4439 = vadd.f32 %v4262, %v4438
      %4440 = vmatmul.bf16.gmra.mxu0 %v3262
      %v4441 = vpop.f32.mrf.mxu0
      %v4442 = vadd.f32 %v4265, %v4441
      %v4443 = vpop.f32.mrf.mxu0
      %v4444 = vadd.f32 %v4267, %v4443
      %4445 = vmatmul.bf16.gmra.mxu0 %v3263
      %v4446 = vpop.f32.mrf.mxu0
      %v4447 = vadd.f32 %v4270, %v4446
      %v4448 = vpop.f32.mrf.mxu0
      %v4449 = vadd.f32 %v4272, %v4448
      %4450 = vmatmul.bf16.gmra.mxu0 %v3264
      %v4451 = vpop.f32.mrf.mxu0
      %v4452 = vadd.f32 %v4275, %v4451
      %v4453 = vpop.f32.mrf.mxu0
      %v4454 = vadd.f32 %v4277, %v4453
      %4455 = vmatmul.bf16.gmra.mxu0 %v3265
      %v4456 = vpop.f32.mrf.mxu0
      %v4457 = vadd.f32 %v4280, %v4456
      %v4458 = vpop.f32.mrf.mxu0
      %v4459 = vadd.f32 %v4282, %v4458
      %4460 = vmatmul.bf16.gmra.mxu0 %v3266
      %v4461 = vpop.f32.mrf.mxu0
      %v4462 = vadd.f32 %v4285, %v4461
      %v4463 = vpop.f32.mrf.mxu0
      %v4464 = vadd.f32 %v4287, %v4463
      %4465 = vmatmul.bf16.gmra.mxu0 %v3267
      %v4466 = vpop.f32.mrf.mxu0
      %v4467 = vadd.f32 %v4290, %v4466
      %v4468 = vpop.f32.mrf.mxu0
      %v4469 = vadd.f32 %v4292, %v4468
      %4470 = vmatmul.bf16.gmra.mxu0 %v3268
      %v4471 = vpop.f32.mrf.mxu0
      %v4472 = vadd.f32 %v4295, %v4471
      %v4473 = vpop.f32.mrf.mxu0
      %v4474 = vadd.f32 %v4297, %v4473
      %4475 = vmatmul.bf16.gmra.mxu0 %v3269
      %v4476 = vpop.f32.mrf.mxu0
      %v4477 = vadd.f32 %v4300, %v4476
      %v4478 = vpop.f32.mrf.mxu0
      %v4479 = vadd.f32 %v4302, %v4478
      %4480 = vmatmul.bf16.gmra.mxu0 %v3270
      %v4481 = vpop.f32.mrf.mxu0
      %v4482 = vadd.f32 %v4305, %v4481
      %v4483 = vpop.f32.mrf.mxu0
      %v4484 = vadd.f32 %v4307, %v4483
      %4485 = vmatmul.bf16.gmra.mxu0 %v3271
      %v4486 = vpop.f32.mrf.mxu0
      %v4487 = vadd.f32 %v4310, %v4486
      %v4488 = vpop.f32.mrf.mxu0
      %v4489 = vadd.f32 %v4312, %v4488
      %4490 = vmatmul.bf16.gmra.mxu0 %v3272
      %v4491 = vpop.f32.mrf.mxu0
      %v4492 = vadd.f32 %v4315, %v4491
      %v4493 = vpop.f32.mrf.mxu0
      %v4494 = vadd.f32 %v4317, %v4493
      %4495 = vmatmul.bf16.gmra.mxu0 %v3273
      %v4496 = vpop.f32.mrf.mxu0
      %v4497 = vadd.f32 %v4320, %v4496
      %v4498 = vpop.f32.mrf.mxu0
      %v4499 = vadd.f32 %v4322, %v4498
      %4500 = vmatmul.bf16.gmra.mxu0 %v3274
      %v4501 = vpop.f32.mrf.mxu0
      %v4502 = vadd.f32 %v4325, %v4501
      %v4503 = vpop.f32.mrf.mxu0
      %v4504 = vadd.f32 %v4327, %v4503
      %4505 = vmatmul.bf16.gmra.mxu0 %v3275
      %v4506 = vpop.f32.mrf.mxu0
      %v4507 = vadd.f32 %v4330, %v4506
      %v4508 = vpop.f32.mrf.mxu0
      %v4509 = vadd.f32 %v4332, %v4508
      %4510 = vdwg.mxu0
      %v4511 = vld [vmem:[%s3189] sm:$0xff]
      %v4512 = vld [vmem:[%s3189 + $0x8] sm:$0xff]
      %v4513 = vld [vmem:[%s3189 + $0x10] sm:$0xff]
      %v4514 = vld [vmem:[%s3189 + $0x18] sm:$0xff]
      %v4515 = vld [vmem:[%s3189 + $0x20] sm:$0xff]
      %v4516 = vld [vmem:[%s3189 + $0x28] sm:$0xff]
      %v4517 = vld [vmem:[%s3189 + $0x30] sm:$0xff]
      %v4518 = vld [vmem:[%s3189 + $0x38] sm:$0xff]
      %v4519 = vld [vmem:[%s3189 + $0x40] sm:$0xff]
      %v4520 = vld [vmem:[%s3189 + $0x48] sm:$0xff]
      %v4521 = vld [vmem:[%s3189 + $0x50] sm:$0xff]
      %v4522 = vld [vmem:[%s3189 + $0x58] sm:$0xff]
      %v4523 = vld [vmem:[%s3189 + $0x60] sm:$0xff]
      %v4524 = vld [vmem:[%s3189 + $0x68] sm:$0xff]
      %v4525 = vld [vmem:[%s3189 + $0x70] sm:$0xff]
      %v4526 = vld [vmem:[%s3189 + $0x78] sm:$0xff]
      %v4527 = vld [vmem:[%s3189 + $0x80] sm:$0xff]
      %v4528 = vld [vmem:[%s3189 + $0x88] sm:$0xff]
      %v4529 = vld [vmem:[%s3189 + $0x90] sm:$0xff]
      %v4530 = vld [vmem:[%s3189 + $0x98] sm:$0xff]
      %v4531 = vld [vmem:[%s3189 + $0xa0] sm:$0xff]
      %v4532 = vld [vmem:[%s3189 + $0xa8] sm:$0xff]
      %v4533 = vld [vmem:[%s3189 + $0xb0] sm:$0xff]
      %v4534 = vld [vmem:[%s3189 + $0xb8] sm:$0xff]
      %v4535 = vld [vmem:[%s3189 + $0xc0] sm:$0xff]
      %v4536 = vld [vmem:[%s3189 + $0xc8] sm:$0xff]
      %v4537 = vld [vmem:[%s3189 + $0xd0] sm:$0xff]
      %v4538 = vld [vmem:[%s3189 + $0xd8] sm:$0xff]
      %v4539 = vld [vmem:[%s3189 + $0xe0] sm:$0xff]
      %v4540 = vld [vmem:[%s3189 + $0xe8] sm:$0xff]
      %v4541 = vld [vmem:[%s3189 + $0xf0] sm:$0xff]
      %v4542 = vld [vmem:[%s3189 + $0xf8] sm:$0xff]
      %v4543 = vld [vmem:[%s3189 + $0x100] sm:$0xff]
      %v4544 = vld [vmem:[%s3189 + $0x108] sm:$0xff]
      %v4545 = vld [vmem:[%s3189 + $0x110] sm:$0xff]
      %v4546 = vld [vmem:[%s3189 + $0x118] sm:$0xff]
      %v4547 = vld [vmem:[%s3189 + $0x120] sm:$0xff]
      %v4548 = vld [vmem:[%s3189 + $0x128] sm:$0xff]
      %v4549 = vld [vmem:[%s3189 + $0x130] sm:$0xff]
      %v4550 = vld [vmem:[%s3189 + $0x138] sm:$0xff]
      %v4551 = vld [vmem:[%s3189 + $0x140] sm:$0xff]
      %v4552 = vld [vmem:[%s3189 + $0x148] sm:$0xff]
      %v4553 = vld [vmem:[%s3189 + $0x150] sm:$0xff]
      %v4554 = vld [vmem:[%s3189 + $0x158] sm:$0xff]
      %v4555 = vld [vmem:[%s3189 + $0x160] sm:$0xff]
      %v4556 = vld [vmem:[%s3189 + $0x168] sm:$0xff]
      %v4557 = vld [vmem:[%s3189 + $0x170] sm:$0xff]
      %v4558 = vld [vmem:[%s3189 + $0x178] sm:$0xff]
      %v4559 = vpack.c.bf16 %v4512, %v4511
      %v4560 = vpack.c.bf16 %v4514, %v4513
      %v4561 = vpack.c.bf16 %v4516, %v4515
      %v4562 = vpack.c.bf16 %v4518, %v4517
      %v4563 = vpack.c.bf16 %v4520, %v4519
      %v4564 = vpack.c.bf16 %v4522, %v4521
      %v4565 = vpack.c.bf16 %v4524, %v4523
      %v4566 = vpack.c.bf16 %v4526, %v4525
      %v4567 = vpack.c.bf16 %v4528, %v4527
      %v4568 = vpack.c.bf16 %v4530, %v4529
      %v4569 = vpack.c.bf16 %v4532, %v4531
      %v4570 = vpack.c.bf16 %v4534, %v4533
      %v4571 = vpack.c.bf16 %v4536, %v4535
      %v4572 = vpack.c.bf16 %v4538, %v4537
      %v4573 = vpack.c.bf16 %v4540, %v4539
      %v4574 = vpack.c.bf16 %v4542, %v4541
      %v4575 = vpack.c.bf16 %v4544, %v4543
      %v4576 = vpack.c.bf16 %v4546, %v4545
      %v4577 = vpack.c.bf16 %v4548, %v4547
      %v4578 = vpack.c.bf16 %v4550, %v4549
      %v4579 = vpack.c.bf16 %v4552, %v4551
      %v4580 = vpack.c.bf16 %v4554, %v4553
      %v4581 = vpack.c.bf16 %v4556, %v4555
      %v4582 = vpack.c.bf16 %v4558, %v4557
      %s4583 = scalar_lea.vmem %s2, 384
      %v4584 = vld [vmem:[%s4583] sm:$0xf]
      %v4585 = vld [vmem:[%s4583 + $0x4] sm:$0xf]
      %v4586 = vld [vmem:[%s4583 + $0x8] sm:$0xf]
      %v4587 = vld [vmem:[%s4583 + $0xc] sm:$0xf]
      %v4588 = vld [vmem:[%s4583 + $0x10] sm:$0xf]
      %v4589 = vld [vmem:[%s4583 + $0x14] sm:$0xf]
      %v4590 = vld [vmem:[%s4583 + $0x18] sm:$0xf]
      %v4591 = vld [vmem:[%s4583 + $0x1c] sm:$0xf]
      %v4592 = vld [vmem:[%s4583 + $0x20] sm:$0xf]
      %v4593 = vld [vmem:[%s4583 + $0x24] sm:$0xf]
      %v4594 = vld [vmem:[%s4583 + $0x28] sm:$0xf]
      %v4595 = vld [vmem:[%s4583 + $0x2c] sm:$0xf]
      %v4596 = vld [vmem:[%s4583 + $0x30] sm:$0xf]
      %v4597 = vld [vmem:[%s4583 + $0x34] sm:$0xf]
      %v4598 = vld [vmem:[%s4583 + $0x38] sm:$0xf]
      %v4599 = vld [vmem:[%s4583 + $0x3c] sm:$0xf]
      %v4616 = vunpack.c.l.b16 %v4584
      %v4617 = vunpack.c.l.b16 %v4585
      %v4618 = vunpack.c.l.b16 %v4586
      %v4619 = vunpack.c.l.b16 %v4587
      %v4620 = vunpack.c.l.b16 %v4588
      %v4621 = vunpack.c.l.b16 %v4589
      %v4622 = vunpack.c.l.b16 %v4590
      %v4623 = vunpack.c.l.b16 %v4591
      %v4624 = vunpack.c.l.b16 %v4592
      %v4625 = vunpack.c.l.b16 %v4593
      %v4626 = vunpack.c.l.b16 %v4594
      %v4627 = vunpack.c.l.b16 %v4595
      %v4628 = vunpack.c.l.b16 %v4596
      %v4629 = vunpack.c.l.b16 %v4597
      %v4630 = vunpack.c.l.b16 %v4598
      %v4631 = vunpack.c.l.b16 %v4599
      %v4632 = vpack.c.b16 %v4617, %v4616
      %v4633 = vpack.c.b16 %v4619, %v4618
      %v4634 = vpack.c.b16 %v4621, %v4620
      %v4635 = vpack.c.b16 %v4623, %v4622
      %v4636 = vpack.c.b16 %v4625, %v4624
      %v4637 = vpack.c.b16 %v4627, %v4626
      %v4638 = vpack.c.b16 %v4629, %v4628
      %v4639 = vpack.c.b16 %v4631, %v4630
      %4648 = vmatpush.bf16.msra.mxu0 %v4639
      %4649 = vmatpush.bf16.msra.mxu0 %v4638
      %4650 = vmatpush.bf16.msra.mxu0 %v4637
      %4651 = vmatpush.bf16.msra.mxu0 %v4636
      %4652 = vmatpush.bf16.msra.mxu0 %v4635
      %4653 = vmatpush.bf16.msra.mxu0 %v4634
      %4654 = vmatpush.bf16.msra.mxu0 %v4633
      %4655 = vmatpush.bf16.msra.mxu0 %v4632
      %4656 = vmatmul.bf16.gmra.mxu0 %v4559
      %v4657 = vpop.f32.mrf.mxu0
      %v4658 = vadd.f32 0.0, %v4657
      %v4659 = vpop.f32.mrf.mxu0
      %v4660 = vadd.f32 0.0, %v4659
      %4661 = vmatmul.bf16.gmra.mxu0 %v4560
      %v4662 = vpop.f32.mrf.mxu0
      %v4663 = vadd.f32 0.0, %v4662
      %v4664 = vpop.f32.mrf.mxu0
      %v4665 = vadd.f32 0.0, %v4664
      %4666 = vmatmul.bf16.gmra.mxu0 %v4561
      %v4667 = vpop.f32.mrf.mxu0
      %v4668 = vadd.f32 0.0, %v4667
      %v4669 = vpop.f32.mrf.mxu0
      %v4670 = vadd.f32 0.0, %v4669
      %4671 = vmatmul.bf16.gmra.mxu0 %v4562
      %v4672 = vpop.f32.mrf.mxu0
      %v4673 = vadd.f32 0.0, %v4672
      %v4674 = vpop.f32.mrf.mxu0
      %v4675 = vadd.f32 0.0, %v4674
      %4676 = vmatmul.bf16.gmra.mxu0 %v4563
      %v4677 = vpop.f32.mrf.mxu0
      %v4678 = vadd.f32 0.0, %v4677
      %v4679 = vpop.f32.mrf.mxu0
      %v4680 = vadd.f32 0.0, %v4679
      %4681 = vmatmul.bf16.gmra.mxu0 %v4564
      %v4682 = vpop.f32.mrf.mxu0
      %v4683 = vadd.f32 0.0, %v4682
      %v4684 = vpop.f32.mrf.mxu0
      %v4685 = vadd.f32 0.0, %v4684
      %4686 = vmatmul.bf16.gmra.mxu0 %v4565
      %v4687 = vpop.f32.mrf.mxu0
      %v4688 = vadd.f32 0.0, %v4687
      %v4689 = vpop.f32.mrf.mxu0
      %v4690 = vadd.f32 0.0, %v4689
      %4691 = vmatmul.bf16.gmra.mxu0 %v4566
      %v4692 = vpop.f32.mrf.mxu0
      %v4693 = vadd.f32 0.0, %v4692
      %v4694 = vpop.f32.mrf.mxu0
      %v4695 = vadd.f32 0.0, %v4694
      %4696 = vmatmul.bf16.gmra.mxu0 %v4567
      %v4697 = vpop.f32.mrf.mxu0
      %v4698 = vadd.f32 0.0, %v4697
      %v4699 = vpop.f32.mrf.mxu0
      %v4700 = vadd.f32 0.0, %v4699
      %4701 = vmatmul.bf16.gmra.mxu0 %v4568
      %v4702 = vpop.f32.mrf.mxu0
      %v4703 = vadd.f32 0.0, %v4702
      %v4704 = vpop.f32.mrf.mxu0
      %v4705 = vadd.f32 0.0, %v4704
      %4706 = vmatmul.bf16.gmra.mxu0 %v4569
      %v4707 = vpop.f32.mrf.mxu0
      %v4708 = vadd.f32 0.0, %v4707
      %v4709 = vpop.f32.mrf.mxu0
      %v4710 = vadd.f32 0.0, %v4709
      %4711 = vmatmul.bf16.gmra.mxu0 %v4570
      %v4712 = vpop.f32.mrf.mxu0
      %v4713 = vadd.f32 0.0, %v4712
      %v4714 = vpop.f32.mrf.mxu0
      %v4715 = vadd.f32 0.0, %v4714
      %4716 = vmatmul.bf16.gmra.mxu0 %v4571
      %v4717 = vpop.f32.mrf.mxu0
      %v4718 = vadd.f32 0.0, %v4717
      %v4719 = vpop.f32.mrf.mxu0
      %v4720 = vadd.f32 0.0, %v4719
      %4721 = vmatmul.bf16.gmra.mxu0 %v4572
      %v4722 = vpop.f32.mrf.mxu0
      %v4723 = vadd.f32 0.0, %v4722
      %v4724 = vpop.f32.mrf.mxu0
      %v4725 = vadd.f32 0.0, %v4724
      %4726 = vmatmul.bf16.gmra.mxu0 %v4573
      %v4727 = vpop.f32.mrf.mxu0
      %v4728 = vadd.f32 0.0, %v4727
      %v4729 = vpop.f32.mrf.mxu0
      %v4730 = vadd.f32 0.0, %v4729
      %4731 = vmatmul.bf16.gmra.mxu0 %v4574
      %v4732 = vpop.f32.mrf.mxu0
      %v4733 = vadd.f32 0.0, %v4732
      %v4734 = vpop.f32.mrf.mxu0
      %v4735 = vadd.f32 0.0, %v4734
      %4736 = vmatmul.bf16.gmra.mxu0 %v4575
      %v4737 = vpop.f32.mrf.mxu0
      %v4738 = vadd.f32 0.0, %v4737
      %v4739 = vpop.f32.mrf.mxu0
      %v4740 = vadd.f32 0.0, %v4739
      %4741 = vmatmul.bf16.gmra.mxu0 %v4576
      %v4742 = vpop.f32.mrf.mxu0
      %v4743 = vadd.f32 0.0, %v4742
      %v4744 = vpop.f32.mrf.mxu0
      %v4745 = vadd.f32 0.0, %v4744
      %4746 = vmatmul.bf16.gmra.mxu0 %v4577
      %v4747 = vpop.f32.mrf.mxu0
      %v4748 = vadd.f32 0.0, %v4747
      %v4749 = vpop.f32.mrf.mxu0
      %v4750 = vadd.f32 0.0, %v4749
      %4751 = vmatmul.bf16.gmra.mxu0 %v4578
      %v4752 = vpop.f32.mrf.mxu0
      %v4753 = vadd.f32 0.0, %v4752
      %v4754 = vpop.f32.mrf.mxu0
      %v4755 = vadd.f32 0.0, %v4754
      %4756 = vmatmul.bf16.gmra.mxu0 %v4579
      %v4757 = vpop.f32.mrf.mxu0
      %v4758 = vadd.f32 0.0, %v4757
      %v4759 = vpop.f32.mrf.mxu0
      %v4760 = vadd.f32 0.0, %v4759
      %4761 = vmatmul.bf16.gmra.mxu0 %v4580
      %v4762 = vpop.f32.mrf.mxu0
      %v4763 = vadd.f32 0.0, %v4762
      %v4764 = vpop.f32.mrf.mxu0
      %v4765 = vadd.f32 0.0, %v4764
      %4766 = vmatmul.bf16.gmra.mxu0 %v4581
      %v4767 = vpop.f32.mrf.mxu0
      %v4768 = vadd.f32 0.0, %v4767
      %v4769 = vpop.f32.mrf.mxu0
      %v4770 = vadd.f32 0.0, %v4769
      %4771 = vmatmul.bf16.gmra.mxu0 %v4582
      %v4772 = vpop.f32.mrf.mxu0
      %v4773 = vadd.f32 0.0, %v4772
      %v4774 = vpop.f32.mrf.mxu0
      %v4775 = vadd.f32 0.0, %v4774
      %4776 = vdwg.mxu0
      %v4777 = vadd.f32 %v3650, %v4658
      %v4778 = vadd.f32 %v3652, %v4660
      %v4779 = vadd.f32 %v3655, %v4663
      %v4780 = vadd.f32 %v3657, %v4665
      %v4781 = vadd.f32 %v3660, %v4668
      %v4782 = vadd.f32 %v3662, %v4670
      %v4783 = vadd.f32 %v3665, %v4673
      %v4784 = vadd.f32 %v3667, %v4675
      %v4785 = vadd.f32 %v3670, %v4678
      %v4786 = vadd.f32 %v3672, %v4680
      %v4787 = vadd.f32 %v3675, %v4683
      %v4788 = vadd.f32 %v3677, %v4685
      %v4789 = vadd.f32 %v3680, %v4688
      %v4790 = vadd.f32 %v3682, %v4690
      %v4791 = vadd.f32 %v3685, %v4693
      %v4792 = vadd.f32 %v3687, %v4695
      %v4793 = vadd.f32 %v3690, %v4698
      %v4794 = vadd.f32 %v3692, %v4700
      %v4795 = vadd.f32 %v3695, %v4703
      %v4796 = vadd.f32 %v3697, %v4705
      %v4797 = vadd.f32 %v3700, %v4708
      %v4798 = vadd.f32 %v3702, %v4710
      %v4799 = vadd.f32 %v3705, %v4713
      %v4800 = vadd.f32 %v3707, %v4715
      %v4801 = vadd.f32 %v3710, %v4718
      %v4802 = vadd.f32 %v3712, %v4720
      %v4803 = vadd.f32 %v3715, %v4723
      %v4804 = vadd.f32 %v3717, %v4725
      %v4805 = vadd.f32 %v3720, %v4728
      %v4806 = vadd.f32 %v3722, %v4730
      %v4807 = vadd.f32 %v3725, %v4733
      %v4808 = vadd.f32 %v3727, %v4735
      %v4809 = vadd.f32 %v3730, %v4738
      %v4810 = vadd.f32 %v3732, %v4740
      %v4811 = vadd.f32 %v3735, %v4743
      %v4812 = vadd.f32 %v3737, %v4745
      %v4813 = vadd.f32 %v3740, %v4748
      %v4814 = vadd.f32 %v3742, %v4750
      %v4815 = vadd.f32 %v3745, %v4753
      %v4816 = vadd.f32 %v3747, %v4755
      %v4817 = vadd.f32 %v3750, %v4758
      %v4818 = vadd.f32 %v3752, %v4760
      %v4819 = vadd.f32 %v3755, %v4763
      %v4820 = vadd.f32 %v3757, %v4765
      %v4821 = vadd.f32 %v3760, %v4768
      %v4822 = vadd.f32 %v3762, %v4770
      %v4823 = vadd.f32 %v3765, %v4773
      %v4824 = vadd.f32 %v3767, %v4775
      %s4825 = scalar_lea.vmem %s2, 448
      %v4826 = vld [vmem:[%s4825] sm:$0xf]
      %v4827 = vld [vmem:[%s4825 + $0x4] sm:$0xf]
      %v4828 = vld [vmem:[%s4825 + $0x8] sm:$0xf]
      %v4829 = vld [vmem:[%s4825 + $0xc] sm:$0xf]
      %v4830 = vld [vmem:[%s4825 + $0x10] sm:$0xf]
      %v4831 = vld [vmem:[%s4825 + $0x14] sm:$0xf]
      %v4832 = vld [vmem:[%s4825 + $0x18] sm:$0xf]
      %v4833 = vld [vmem:[%s4825 + $0x1c] sm:$0xf]
      %v4834 = vld [vmem:[%s4825 + $0x20] sm:$0xf]
      %v4835 = vld [vmem:[%s4825 + $0x24] sm:$0xf]
      %v4836 = vld [vmem:[%s4825 + $0x28] sm:$0xf]
      %v4837 = vld [vmem:[%s4825 + $0x2c] sm:$0xf]
      %v4838 = vld [vmem:[%s4825 + $0x30] sm:$0xf]
      %v4839 = vld [vmem:[%s4825 + $0x34] sm:$0xf]
      %v4840 = vld [vmem:[%s4825 + $0x38] sm:$0xf]
      %v4841 = vld [vmem:[%s4825 + $0x3c] sm:$0xf]
      %v4858 = vunpack.c.l.b16 %v4826
      %v4859 = vunpack.c.l.b16 %v4827
      %v4860 = vunpack.c.l.b16 %v4828
      %v4861 = vunpack.c.l.b16 %v4829
      %v4862 = vunpack.c.l.b16 %v4830
      %v4863 = vunpack.c.l.b16 %v4831
      %v4864 = vunpack.c.l.b16 %v4832
      %v4865 = vunpack.c.l.b16 %v4833
      %v4866 = vunpack.c.l.b16 %v4834
      %v4867 = vunpack.c.l.b16 %v4835
      %v4868 = vunpack.c.l.b16 %v4836
      %v4869 = vunpack.c.l.b16 %v4837
      %v4870 = vunpack.c.l.b16 %v4838
      %v4871 = vunpack.c.l.b16 %v4839
      %v4872 = vunpack.c.l.b16 %v4840
      %v4873 = vunpack.c.l.b16 %v4841
      %v4874 = vpack.c.b16 %v4859, %v4858
      %v4875 = vpack.c.b16 %v4861, %v4860
      %v4876 = vpack.c.b16 %v4863, %v4862
      %v4877 = vpack.c.b16 %v4865, %v4864
      %v4878 = vpack.c.b16 %v4867, %v4866
      %v4879 = vpack.c.b16 %v4869, %v4868
      %v4880 = vpack.c.b16 %v4871, %v4870
      %v4881 = vpack.c.b16 %v4873, %v4872
      %4890 = vmatpush.bf16.msra.mxu0 %v4881
      %4891 = vmatpush.bf16.msra.mxu0 %v4880
      %4892 = vmatpush.bf16.msra.mxu0 %v4879
      %4893 = vmatpush.bf16.msra.mxu0 %v4878
      %4894 = vmatpush.bf16.msra.mxu0 %v4877
      %4895 = vmatpush.bf16.msra.mxu0 %v4876
      %4896 = vmatpush.bf16.msra.mxu0 %v4875
      %4897 = vmatpush.bf16.msra.mxu0 %v4874
      %4898 = vmatmul.bf16.gmra.mxu0 %v4559
      %v4899 = vpop.f32.mrf.mxu0
      %v4900 = vadd.f32 0.0, %v4899
      %v4901 = vpop.f32.mrf.mxu0
      %v4902 = vadd.f32 0.0, %v4901
      %4903 = vmatmul.bf16.gmra.mxu0 %v4560
      %v4904 = vpop.f32.mrf.mxu0
      %v4905 = vadd.f32 0.0, %v4904
      %v4906 = vpop.f32.mrf.mxu0
      %v4907 = vadd.f32 0.0, %v4906
      %4908 = vmatmul.bf16.gmra.mxu0 %v4561
      %v4909 = vpop.f32.mrf.mxu0
      %v4910 = vadd.f32 0.0, %v4909
      %v4911 = vpop.f32.mrf.mxu0
      %v4912 = vadd.f32 0.0, %v4911
      %4913 = vmatmul.bf16.gmra.mxu0 %v4562
      %v4914 = vpop.f32.mrf.mxu0
      %v4915 = vadd.f32 0.0, %v4914
      %v4916 = vpop.f32.mrf.mxu0
      %v4917 = vadd.f32 0.0, %v4916
      %4918 = vmatmul.bf16.gmra.mxu0 %v4563
      %v4919 = vpop.f32.mrf.mxu0
      %v4920 = vadd.f32 0.0, %v4919
      %v4921 = vpop.f32.mrf.mxu0
      %v4922 = vadd.f32 0.0, %v4921
      %4923 = vmatmul.bf16.gmra.mxu0 %v4564
      %v4924 = vpop.f32.mrf.mxu0
      %v4925 = vadd.f32 0.0, %v4924
      %v4926 = vpop.f32.mrf.mxu0
      %v4927 = vadd.f32 0.0, %v4926
      %4928 = vmatmul.bf16.gmra.mxu0 %v4565
      %v4929 = vpop.f32.mrf.mxu0
      %v4930 = vadd.f32 0.0, %v4929
      %v4931 = vpop.f32.mrf.mxu0
      %v4932 = vadd.f32 0.0, %v4931
      %4933 = vmatmul.bf16.gmra.mxu0 %v4566
      %v4934 = vpop.f32.mrf.mxu0
      %v4935 = vadd.f32 0.0, %v4934
      %v4936 = vpop.f32.mrf.mxu0
      %v4937 = vadd.f32 0.0, %v4936
      %4938 = vmatmul.bf16.gmra.mxu0 %v4567
      %v4939 = vpop.f32.mrf.mxu0
      %v4940 = vadd.f32 0.0, %v4939
      %v4941 = vpop.f32.mrf.mxu0
      %v4942 = vadd.f32 0.0, %v4941
      %4943 = vmatmul.bf16.gmra.mxu0 %v4568
      %v4944 = vpop.f32.mrf.mxu0
      %v4945 = vadd.f32 0.0, %v4944
      %v4946 = vpop.f32.mrf.mxu0
      %v4947 = vadd.f32 0.0, %v4946
      %4948 = vmatmul.bf16.gmra.mxu0 %v4569
      %v4949 = vpop.f32.mrf.mxu0
      %v4950 = vadd.f32 0.0, %v4949
      %v4951 = vpop.f32.mrf.mxu0
      %v4952 = vadd.f32 0.0, %v4951
      %4953 = vmatmul.bf16.gmra.mxu0 %v4570
      %v4954 = vpop.f32.mrf.mxu0
      %v4955 = vadd.f32 0.0, %v4954
      %v4956 = vpop.f32.mrf.mxu0
      %v4957 = vadd.f32 0.0, %v4956
      %4958 = vmatmul.bf16.gmra.mxu0 %v4571
      %v4959 = vpop.f32.mrf.mxu0
      %v4960 = vadd.f32 0.0, %v4959
      %v4961 = vpop.f32.mrf.mxu0
      %v4962 = vadd.f32 0.0, %v4961
      %4963 = vmatmul.bf16.gmra.mxu0 %v4572
      %v4964 = vpop.f32.mrf.mxu0
      %v4965 = vadd.f32 0.0, %v4964
      %v4966 = vpop.f32.mrf.mxu0
      %v4967 = vadd.f32 0.0, %v4966
      %4968 = vmatmul.bf16.gmra.mxu0 %v4573
      %v4969 = vpop.f32.mrf.mxu0
      %v4970 = vadd.f32 0.0, %v4969
      %v4971 = vpop.f32.mrf.mxu0
      %v4972 = vadd.f32 0.0, %v4971
      %4973 = vmatmul.bf16.gmra.mxu0 %v4574
      %v4974 = vpop.f32.mrf.mxu0
      %v4975 = vadd.f32 0.0, %v4974
      %v4976 = vpop.f32.mrf.mxu0
      %v4977 = vadd.f32 0.0, %v4976
      %4978 = vmatmul.bf16.gmra.mxu0 %v4575
      %v4979 = vpop.f32.mrf.mxu0
      %v4980 = vadd.f32 0.0, %v4979
      %v4981 = vpop.f32.mrf.mxu0
      %v4982 = vadd.f32 0.0, %v4981
      %4983 = vmatmul.bf16.gmra.mxu0 %v4576
      %v4984 = vpop.f32.mrf.mxu0
      %v4985 = vadd.f32 0.0, %v4984
      %v4986 = vpop.f32.mrf.mxu0
      %v4987 = vadd.f32 0.0, %v4986
      %4988 = vmatmul.bf16.gmra.mxu0 %v4577
      %v4989 = vpop.f32.mrf.mxu0
      %v4990 = vadd.f32 0.0, %v4989
      %v4991 = vpop.f32.mrf.mxu0
      %v4992 = vadd.f32 0.0, %v4991
      %4993 = vmatmul.bf16.gmra.mxu0 %v4578
      %v4994 = vpop.f32.mrf.mxu0
      %v4995 = vadd.f32 0.0, %v4994
      %v4996 = vpop.f32.mrf.mxu0
      %v4997 = vadd.f32 0.0, %v4996
      %4998 = vmatmul.bf16.gmra.mxu0 %v4579
      %v4999 = vpop.f32.mrf.mxu0
      %v5000 = vadd.f32 0.0, %v4999
      %v5001 = vpop.f32.mrf.mxu0
      %v5002 = vadd.f32 0.0, %v5001
      %5003 = vmatmul.bf16.gmra.mxu0 %v4580
      %v5004 = vpop.f32.mrf.mxu0
      %v5005 = vadd.f32 0.0, %v5004
      %v5006 = vpop.f32.mrf.mxu0
      %v5007 = vadd.f32 0.0, %v5006
      %5008 = vmatmul.bf16.gmra.mxu0 %v4581
      %v5009 = vpop.f32.mrf.mxu0
      %v5010 = vadd.f32 0.0, %v5009
      %v5011 = vpop.f32.mrf.mxu0
      %v5012 = vadd.f32 0.0, %v5011
      %5013 = vmatmul.bf16.gmra.mxu0 %v4582
      %v5014 = vpop.f32.mrf.mxu0
      %v5015 = vadd.f32 0.0, %v5014
      %v5016 = vpop.f32.mrf.mxu0
      %v5017 = vadd.f32 0.0, %v5016
      %5018 = vdwg.mxu0
      %v5019 = vadd.f32 %v4021, %v4900
      %v5020 = vadd.f32 %v4023, %v4902
      %v5021 = vadd.f32 %v4026, %v4905
      %v5022 = vadd.f32 %v4028, %v4907
      %v5023 = vadd.f32 %v4031, %v4910
      %v5024 = vadd.f32 %v4033, %v4912
      %v5025 = vadd.f32 %v4036, %v4915
      %v5026 = vadd.f32 %v4038, %v4917
      %v5027 = vadd.f32 %v4041, %v4920
      %v5028 = vadd.f32 %v4043, %v4922
      %v5029 = vadd.f32 %v4046, %v4925
      %v5030 = vadd.f32 %v4048, %v4927
      %v5031 = vadd.f32 %v4051, %v4930
      %v5032 = vadd.f32 %v4053, %v4932
      %v5033 = vadd.f32 %v4056, %v4935
      %v5034 = vadd.f32 %v4058, %v4937
      %v5035 = vadd.f32 %v4061, %v4940
      %v5036 = vadd.f32 %v4063, %v4942
      %v5037 = vadd.f32 %v4066, %v4945
      %v5038 = vadd.f32 %v4068, %v4947
      %v5039 = vadd.f32 %v4071, %v4950
      %v5040 = vadd.f32 %v4073, %v4952
      %v5041 = vadd.f32 %v4076, %v4955
      %v5042 = vadd.f32 %v4078, %v4957
      %v5043 = vadd.f32 %v4081, %v4960
      %v5044 = vadd.f32 %v4083, %v4962
      %v5045 = vadd.f32 %v4086, %v4965
      %v5046 = vadd.f32 %v4088, %v4967
      %v5047 = vadd.f32 %v4091, %v4970
      %v5048 = vadd.f32 %v4093, %v4972
      %v5049 = vadd.f32 %v4096, %v4975
      %v5050 = vadd.f32 %v4098, %v4977
      %v5051 = vadd.f32 %v4101, %v4980
      %v5052 = vadd.f32 %v4103, %v4982
      %v5053 = vadd.f32 %v4106, %v4985
      %v5054 = vadd.f32 %v4108, %v4987
      %v5055 = vadd.f32 %v4111, %v4990
      %v5056 = vadd.f32 %v4113, %v4992
      %v5057 = vadd.f32 %v4116, %v4995
      %v5058 = vadd.f32 %v4118, %v4997
      %v5059 = vadd.f32 %v4121, %v5000
      %v5060 = vadd.f32 %v4123, %v5002
      %v5061 = vadd.f32 %v4126, %v5005
      %v5062 = vadd.f32 %v4128, %v5007
      %v5063 = vadd.f32 %v4131, %v5010
      %v5064 = vadd.f32 %v4133, %v5012
      %v5065 = vadd.f32 %v4136, %v5015
      %v5066 = vadd.f32 %v4138, %v5017
      %s5067 = scalar_lea.vmem %s2, 512
      %v5068 = vld [vmem:[%s5067] sm:$0xf]
      %v5069 = vld [vmem:[%s5067 + $0x4] sm:$0xf]
      %v5070 = vld [vmem:[%s5067 + $0x8] sm:$0xf]
      %v5071 = vld [vmem:[%s5067 + $0xc] sm:$0xf]
      %v5072 = vld [vmem:[%s5067 + $0x10] sm:$0xf]
      %v5073 = vld [vmem:[%s5067 + $0x14] sm:$0xf]
      %v5074 = vld [vmem:[%s5067 + $0x18] sm:$0xf]
      %v5075 = vld [vmem:[%s5067 + $0x1c] sm:$0xf]
      %v5076 = vld [vmem:[%s5067 + $0x20] sm:$0xf]
      %v5077 = vld [vmem:[%s5067 + $0x24] sm:$0xf]
      %v5078 = vld [vmem:[%s5067 + $0x28] sm:$0xf]
      %v5079 = vld [vmem:[%s5067 + $0x2c] sm:$0xf]
      %v5080 = vld [vmem:[%s5067 + $0x30] sm:$0xf]
      %v5081 = vld [vmem:[%s5067 + $0x34] sm:$0xf]
      %v5082 = vld [vmem:[%s5067 + $0x38] sm:$0xf]
      %v5083 = vld [vmem:[%s5067 + $0x3c] sm:$0xf]
      %v5100 = vunpack.c.l.b16 %v5068
      %v5101 = vunpack.c.l.b16 %v5069
      %v5102 = vunpack.c.l.b16 %v5070
      %v5103 = vunpack.c.l.b16 %v5071
      %v5104 = vunpack.c.l.b16 %v5072
      %v5105 = vunpack.c.l.b16 %v5073
      %v5106 = vunpack.c.l.b16 %v5074
      %v5107 = vunpack.c.l.b16 %v5075
      %v5108 = vunpack.c.l.b16 %v5076
      %v5109 = vunpack.c.l.b16 %v5077
      %v5110 = vunpack.c.l.b16 %v5078
      %v5111 = vunpack.c.l.b16 %v5079
      %v5112 = vunpack.c.l.b16 %v5080
      %v5113 = vunpack.c.l.b16 %v5081
      %v5114 = vunpack.c.l.b16 %v5082
      %v5115 = vunpack.c.l.b16 %v5083
      %v5116 = vpack.c.b16 %v5101, %v5100
      %v5117 = vpack.c.b16 %v5103, %v5102
      %v5118 = vpack.c.b16 %v5105, %v5104
      %v5119 = vpack.c.b16 %v5107, %v5106
      %v5120 = vpack.c.b16 %v5109, %v5108
      %v5121 = vpack.c.b16 %v5111, %v5110
      %v5122 = vpack.c.b16 %v5113, %v5112
      %v5123 = vpack.c.b16 %v5115, %v5114
      %5132 = vmatpush.bf16.msra.mxu0 %v5123
      %5133 = vmatpush.bf16.msra.mxu0 %v5122
      %5134 = vmatpush.bf16.msra.mxu0 %v5121
      %5135 = vmatpush.bf16.msra.mxu0 %v5120
      %5136 = vmatpush.bf16.msra.mxu0 %v5119
      %5137 = vmatpush.bf16.msra.mxu0 %v5118
      %5138 = vmatpush.bf16.msra.mxu0 %v5117
      %5139 = vmatpush.bf16.msra.mxu0 %v5116
      %5140 = vmatmul.bf16.gmra.mxu0 %v4559
      %v5141 = vpop.f32.mrf.mxu0
      %v5142 = vadd.f32 0.0, %v5141
      %v5143 = vpop.f32.mrf.mxu0
      %v5144 = vadd.f32 0.0, %v5143
      %5145 = vmatmul.bf16.gmra.mxu0 %v4560
      %v5146 = vpop.f32.mrf.mxu0
      %v5147 = vadd.f32 0.0, %v5146
      %v5148 = vpop.f32.mrf.mxu0
      %v5149 = vadd.f32 0.0, %v5148
      %5150 = vmatmul.bf16.gmra.mxu0 %v4561
      %v5151 = vpop.f32.mrf.mxu0
      %v5152 = vadd.f32 0.0, %v5151
      %v5153 = vpop.f32.mrf.mxu0
      %v5154 = vadd.f32 0.0, %v5153
      %5155 = vmatmul.bf16.gmra.mxu0 %v4562
      %v5156 = vpop.f32.mrf.mxu0
      %v5157 = vadd.f32 0.0, %v5156
      %v5158 = vpop.f32.mrf.mxu0
      %v5159 = vadd.f32 0.0, %v5158
      %5160 = vmatmul.bf16.gmra.mxu0 %v4563
      %v5161 = vpop.f32.mrf.mxu0
      %v5162 = vadd.f32 0.0, %v5161
      %v5163 = vpop.f32.mrf.mxu0
      %v5164 = vadd.f32 0.0, %v5163
      %5165 = vmatmul.bf16.gmra.mxu0 %v4564
      %v5166 = vpop.f32.mrf.mxu0
      %v5167 = vadd.f32 0.0, %v5166
      %v5168 = vpop.f32.mrf.mxu0
      %v5169 = vadd.f32 0.0, %v5168
      %5170 = vmatmul.bf16.gmra.mxu0 %v4565
      %v5171 = vpop.f32.mrf.mxu0
      %v5172 = vadd.f32 0.0, %v5171
      %v5173 = vpop.f32.mrf.mxu0
      %v5174 = vadd.f32 0.0, %v5173
      %5175 = vmatmul.bf16.gmra.mxu0 %v4566
      %v5176 = vpop.f32.mrf.mxu0
      %v5177 = vadd.f32 0.0, %v5176
      %v5178 = vpop.f32.mrf.mxu0
      %v5179 = vadd.f32 0.0, %v5178
      %5180 = vmatmul.bf16.gmra.mxu0 %v4567
      %v5181 = vpop.f32.mrf.mxu0
      %v5182 = vadd.f32 0.0, %v5181
      %v5183 = vpop.f32.mrf.mxu0
      %v5184 = vadd.f32 0.0, %v5183
      %5185 = vmatmul.bf16.gmra.mxu0 %v4568
      %v5186 = vpop.f32.mrf.mxu0
      %v5187 = vadd.f32 0.0, %v5186
      %v5188 = vpop.f32.mrf.mxu0
      %v5189 = vadd.f32 0.0, %v5188
      %5190 = vmatmul.bf16.gmra.mxu0 %v4569
      %v5191 = vpop.f32.mrf.mxu0
      %v5192 = vadd.f32 0.0, %v5191
      %v5193 = vpop.f32.mrf.mxu0
      %v5194 = vadd.f32 0.0, %v5193
      %5195 = vmatmul.bf16.gmra.mxu0 %v4570
      %v5196 = vpop.f32.mrf.mxu0
      %v5197 = vadd.f32 0.0, %v5196
      %v5198 = vpop.f32.mrf.mxu0
      %v5199 = vadd.f32 0.0, %v5198
      %5200 = vmatmul.bf16.gmra.mxu0 %v4571
      %v5201 = vpop.f32.mrf.mxu0
      %v5202 = vadd.f32 0.0, %v5201
      %v5203 = vpop.f32.mrf.mxu0
      %v5204 = vadd.f32 0.0, %v5203
      %5205 = vmatmul.bf16.gmra.mxu0 %v4572
      %v5206 = vpop.f32.mrf.mxu0
      %v5207 = vadd.f32 0.0, %v5206
      %v5208 = vpop.f32.mrf.mxu0
      %v5209 = vadd.f32 0.0, %v5208
      %5210 = vmatmul.bf16.gmra.mxu0 %v4573
      %v5211 = vpop.f32.mrf.mxu0
      %v5212 = vadd.f32 0.0, %v5211
      %v5213 = vpop.f32.mrf.mxu0
      %v5214 = vadd.f32 0.0, %v5213
      %5215 = vmatmul.bf16.gmra.mxu0 %v4574
      %v5216 = vpop.f32.mrf.mxu0
      %v5217 = vadd.f32 0.0, %v5216
      %v5218 = vpop.f32.mrf.mxu0
      %v5219 = vadd.f32 0.0, %v5218
      %5220 = vmatmul.bf16.gmra.mxu0 %v4575
      %v5221 = vpop.f32.mrf.mxu0
      %v5222 = vadd.f32 0.0, %v5221
      %v5223 = vpop.f32.mrf.mxu0
      %v5224 = vadd.f32 0.0, %v5223
      %5225 = vmatmul.bf16.gmra.mxu0 %v4576
      %v5226 = vpop.f32.mrf.mxu0
      %v5227 = vadd.f32 0.0, %v5226
      %v5228 = vpop.f32.mrf.mxu0
      %v5229 = vadd.f32 0.0, %v5228
      %5230 = vmatmul.bf16.gmra.mxu0 %v4577
      %v5231 = vpop.f32.mrf.mxu0
      %v5232 = vadd.f32 0.0, %v5231
      %v5233 = vpop.f32.mrf.mxu0
      %v5234 = vadd.f32 0.0, %v5233
      %5235 = vmatmul.bf16.gmra.mxu0 %v4578
      %v5236 = vpop.f32.mrf.mxu0
      %v5237 = vadd.f32 0.0, %v5236
      %v5238 = vpop.f32.mrf.mxu0
      %v5239 = vadd.f32 0.0, %v5238
      %5240 = vmatmul.bf16.gmra.mxu0 %v4579
      %v5241 = vpop.f32.mrf.mxu0
      %v5242 = vadd.f32 0.0, %v5241
      %v5243 = vpop.f32.mrf.mxu0
      %v5244 = vadd.f32 0.0, %v5243
      %5245 = vmatmul.bf16.gmra.mxu0 %v4580
      %v5246 = vpop.f32.mrf.mxu0
      %v5247 = vadd.f32 0.0, %v5246
      %v5248 = vpop.f32.mrf.mxu0
      %v5249 = vadd.f32 0.0, %v5248
      %5250 = vmatmul.bf16.gmra.mxu0 %v4581
      %v5251 = vpop.f32.mrf.mxu0
      %v5252 = vadd.f32 0.0, %v5251
      %v5253 = vpop.f32.mrf.mxu0
      %v5254 = vadd.f32 0.0, %v5253
      %5255 = vmatmul.bf16.gmra.mxu0 %v4582
      %v5256 = vpop.f32.mrf.mxu0
      %v5257 = vadd.f32 0.0, %v5256
      %v5258 = vpop.f32.mrf.mxu0
      %v5259 = vadd.f32 0.0, %v5258
      %5260 = vdwg.mxu0
      %v5261 = vadd.f32 %v4392, %v5142
      %v5262 = vadd.f32 %v4394, %v5144
      %v5263 = vadd.f32 %v4397, %v5147
      %v5264 = vadd.f32 %v4399, %v5149
      %v5265 = vadd.f32 %v4402, %v5152
      %v5266 = vadd.f32 %v4404, %v5154
      %v5267 = vadd.f32 %v4407, %v5157
      %v5268 = vadd.f32 %v4409, %v5159
      %v5269 = vadd.f32 %v4412, %v5162
      %v5270 = vadd.f32 %v4414, %v5164
      %v5271 = vadd.f32 %v4417, %v5167
      %v5272 = vadd.f32 %v4419, %v5169
      %v5273 = vadd.f32 %v4422, %v5172
      %v5274 = vadd.f32 %v4424, %v5174
      %v5275 = vadd.f32 %v4427, %v5177
      %v5276 = vadd.f32 %v4429, %v5179
      %v5277 = vadd.f32 %v4432, %v5182
      %v5278 = vadd.f32 %v4434, %v5184
      %v5279 = vadd.f32 %v4437, %v5187
      %v5280 = vadd.f32 %v4439, %v5189
      %v5281 = vadd.f32 %v4442, %v5192
      %v5282 = vadd.f32 %v4444, %v5194
      %v5283 = vadd.f32 %v4447, %v5197
      %v5284 = vadd.f32 %v4449, %v5199
      %v5285 = vadd.f32 %v4452, %v5202
      %v5286 = vadd.f32 %v4454, %v5204
      %v5287 = vadd.f32 %v4457, %v5207
      %v5288 = vadd.f32 %v4459, %v5209
      %v5289 = vadd.f32 %v4462, %v5212
      %v5290 = vadd.f32 %v4464, %v5214
      %v5291 = vadd.f32 %v4467, %v5217
      %v5292 = vadd.f32 %v4469, %v5219
      %v5293 = vadd.f32 %v4472, %v5222
      %v5294 = vadd.f32 %v4474, %v5224
      %v5295 = vadd.f32 %v4477, %v5227
      %v5296 = vadd.f32 %v4479, %v5229
      %v5297 = vadd.f32 %v4482, %v5232
      %v5298 = vadd.f32 %v4484, %v5234
      %v5299 = vadd.f32 %v4487, %v5237
      %v5300 = vadd.f32 %v4489, %v5239
      %v5301 = vadd.f32 %v4492, %v5242
      %v5302 = vadd.f32 %v4494, %v5244
      %v5303 = vadd.f32 %v4497, %v5247
      %v5304 = vadd.f32 %v4499, %v5249
      %v5305 = vadd.f32 %v4502, %v5252
      %v5306 = vadd.f32 %v4504, %v5254
      %v5307 = vadd.f32 %v4507, %v5257
      %v5308 = vadd.f32 %v4509, %v5259
      %v5309 = vrot.slane %v4777, 7
      %v5310 = vrot.slane %v4778, 7
      %v5311 = vrot.slane %v4779, 7
      %v5312 = vrot.slane %v4780, 7
      %v5313 = vrot.slane %v4781, 7
      %v5314 = vrot.slane %v4782, 7
      %v5315 = vrot.slane %v4783, 7
      %v5316 = vrot.slane %v4784, 7
      %v5317 = vrot.slane %v4785, 7
      %v5318 = vrot.slane %v4786, 7
      %v5319 = vrot.slane %v4787, 7
      %v5320 = vrot.slane %v4788, 7
      %v5321 = vrot.slane %v4789, 7
      %v5322 = vrot.slane %v4790, 7
      %v5323 = vrot.slane %v4791, 7
      %v5324 = vrot.slane %v4792, 7
      %v5325 = vrot.slane %v4793, 7
      %v5326 = vrot.slane %v4794, 7
      %v5327 = vrot.slane %v4795, 7
      %v5328 = vrot.slane %v4796, 7
      %v5329 = vrot.slane %v4797, 7
      %v5330 = vrot.slane %v4798, 7
      %v5331 = vrot.slane %v4799, 7
      %v5332 = vrot.slane %v4800, 7
      %v5333 = vrot.slane %v4801, 7
      %v5334 = vrot.slane %v4802, 7
      %v5335 = vrot.slane %v4803, 7
      %v5336 = vrot.slane %v4804, 7
      %v5337 = vrot.slane %v4805, 7
      %v5338 = vrot.slane %v4806, 7
      %v5339 = vrot.slane %v4807, 7
      %v5340 = vrot.slane %v4808, 7
      %v5341 = vrot.slane %v4809, 7
      %v5342 = vrot.slane %v4810, 7
      %v5343 = vrot.slane %v4811, 7
      %v5344 = vrot.slane %v4812, 7
      %v5345 = vrot.slane %v4813, 7
      %v5346 = vrot.slane %v4814, 7
      %v5347 = vrot.slane %v4815, 7
      %v5348 = vrot.slane %v4816, 7
      %v5349 = vrot.slane %v4817, 7
      %v5350 = vrot.slane %v4818, 7
      %v5351 = vrot.slane %v4819, 7
      %v5352 = vrot.slane %v4820, 7
      %v5353 = vrot.slane %v4821, 7
      %v5354 = vrot.slane %v4822, 7
      %v5355 = vrot.slane %v4823, 7
      %v5356 = vrot.slane %v4824, 7
      %v5357 = vsel %vm2505, %v5355, %v5356
      %v5358 = vsel %vm2505, %v5354, %v5355
      %v5359 = vsel %vm2505, %v5353, %v5354
      %v5360 = vsel %vm2505, %v5352, %v5353
      %v5361 = vsel %vm2505, %v5351, %v5352
      %v5362 = vsel %vm2505, %v5350, %v5351
      %v5363 = vsel %vm2505, %v5349, %v5350
      %v5364 = vsel %vm2505, %v5348, %v5349
      %v5365 = vsel %vm2505, %v5347, %v5348
      %v5366 = vsel %vm2505, %v5346, %v5347
      %v5367 = vsel %vm2505, %v5345, %v5346
      %v5368 = vsel %vm2505, %v5344, %v5345
      %v5369 = vsel %vm2505, %v5343, %v5344
      %v5370 = vsel %vm2505, %v5342, %v5343
      %v5371 = vsel %vm2505, %v5341, %v5342
      %v5372 = vsel %vm2505, %v5340, %v5341
      %v5373 = vsel %vm2505, %v5339, %v5340
      %v5374 = vsel %vm2505, %v5338, %v5339
      %v5375 = vsel %vm2505, %v5337, %v5338
      %v5376 = vsel %vm2505, %v5336, %v5337
      %v5377 = vsel %vm2505, %v5335, %v5336
      %v5378 = vsel %vm2505, %v5334, %v5335
      %v5379 = vsel %vm2505, %v5333, %v5334
      %v5380 = vsel %vm2505, %v5332, %v5333
      %v5381 = vsel %vm2505, %v5331, %v5332
      %v5382 = vsel %vm2505, %v5330, %v5331
      %v5383 = vsel %vm2505, %v5329, %v5330
      %v5384 = vsel %vm2505, %v5328, %v5329
      %v5385 = vsel %vm2505, %v5327, %v5328
      %v5386 = vsel %vm2505, %v5326, %v5327
      %v5387 = vsel %vm2505, %v5325, %v5326
      %v5388 = vsel %vm2505, %v5324, %v5325
      %v5389 = vsel %vm2505, %v5323, %v5324
      %v5390 = vsel %vm2505, %v5322, %v5323
      %v5391 = vsel %vm2505, %v5321, %v5322
      %v5392 = vsel %vm2505, %v5320, %v5321
      %v5393 = vsel %vm2505, %v5319, %v5320
      %v5394 = vsel %vm2505, %v5318, %v5319
      %v5395 = vsel %vm2505, %v5317, %v5318
      %v5396 = vsel %vm2505, %v5316, %v5317
      %v5397 = vsel %vm2505, %v5315, %v5316
      %v5398 = vsel %vm2505, %v5314, %v5315
      %v5399 = vsel %vm2505, %v5313, %v5314
      %v5400 = vsel %vm2505, %v5312, %v5313
      %v5401 = vsel %vm2505, %v5311, %v5312
      %v5402 = vsel %vm2505, %v5310, %v5311
      %v5403 = vsel %vm2505, %v5309, %v5310
      %v5404 = vsel %vm2505, %v5356, %v5309
      %v5405 = vadd.f32 %v5404, %v5019
      %v5406 = vadd.f32 %v5403, %v5020
      %v5407 = vadd.f32 %v5402, %v5021
      %v5408 = vadd.f32 %v5401, %v5022
      %v5409 = vadd.f32 %v5400, %v5023
      %v5410 = vadd.f32 %v5399, %v5024
      %v5411 = vadd.f32 %v5398, %v5025
      %v5412 = vadd.f32 %v5397, %v5026
      %v5413 = vadd.f32 %v5396, %v5027
      %v5414 = vadd.f32 %v5395, %v5028
      %v5415 = vadd.f32 %v5394, %v5029
      %v5416 = vadd.f32 %v5393, %v5030
      %v5417 = vadd.f32 %v5392, %v5031
      %v5418 = vadd.f32 %v5391, %v5032
      %v5419 = vadd.f32 %v5390, %v5033
      %v5420 = vadd.f32 %v5389, %v5034
      %v5421 = vadd.f32 %v5388, %v5035
      %v5422 = vadd.f32 %v5387, %v5036
      %v5423 = vadd.f32 %v5386, %v5037
      %v5424 = vadd.f32 %v5385, %v5038
      %v5425 = vadd.f32 %v5384, %v5039
      %v5426 = vadd.f32 %v5383, %v5040
      %v5427 = vadd.f32 %v5382, %v5041
      %v5428 = vadd.f32 %v5381, %v5042
      %v5429 = vadd.f32 %v5380, %v5043
      %v5430 = vadd.f32 %v5379, %v5044
      %v5431 = vadd.f32 %v5378, %v5045
      %v5432 = vadd.f32 %v5377, %v5046
      %v5433 = vadd.f32 %v5376, %v5047
      %v5434 = vadd.f32 %v5375, %v5048
      %v5435 = vadd.f32 %v5374, %v5049
      %v5436 = vadd.f32 %v5373, %v5050
      %v5437 = vadd.f32 %v5372, %v5051
      %v5438 = vadd.f32 %v5371, %v5052
      %v5439 = vadd.f32 %v5370, %v5053
      %v5440 = vadd.f32 %v5369, %v5054
      %v5441 = vadd.f32 %v5368, %v5055
      %v5442 = vadd.f32 %v5367, %v5056
      %v5443 = vadd.f32 %v5366, %v5057
      %v5444 = vadd.f32 %v5365, %v5058
      %v5445 = vadd.f32 %v5364, %v5059
      %v5446 = vadd.f32 %v5363, %v5060
      %v5447 = vadd.f32 %v5362, %v5061
      %v5448 = vadd.f32 %v5361, %v5062
      %v5449 = vadd.f32 %v5360, %v5063
      %v5450 = vadd.f32 %v5359, %v5064
      %v5451 = vadd.f32 %v5358, %v5065
      %v5452 = vadd.f32 %v5357, %v5066
      %v5453 = vrot.slane %v5261, 1
      %v5454 = vrot.slane %v5262, 1
      %v5455 = vrot.slane %v5263, 1
      %v5456 = vrot.slane %v5264, 1
      %v5457 = vrot.slane %v5265, 1
      %v5458 = vrot.slane %v5266, 1
      %v5459 = vrot.slane %v5267, 1
      %v5460 = vrot.slane %v5268, 1
      %v5461 = vrot.slane %v5269, 1
      %v5462 = vrot.slane %v5270, 1
      %v5463 = vrot.slane %v5271, 1
      %v5464 = vrot.slane %v5272, 1
      %v5465 = vrot.slane %v5273, 1
      %v5466 = vrot.slane %v5274, 1
      %v5467 = vrot.slane %v5275, 1
      %v5468 = vrot.slane %v5276, 1
      %v5469 = vrot.slane %v5277, 1
      %v5470 = vrot.slane %v5278, 1
      %v5471 = vrot.slane %v5279, 1
      %v5472 = vrot.slane %v5280, 1
      %v5473 = vrot.slane %v5281, 1
      %v5474 = vrot.slane %v5282, 1
      %v5475 = vrot.slane %v5283, 1
      %v5476 = vrot.slane %v5284, 1
      %v5477 = vrot.slane %v5285, 1
      %v5478 = vrot.slane %v5286, 1
      %v5479 = vrot.slane %v5287, 1
      %v5480 = vrot.slane %v5288, 1
      %v5481 = vrot.slane %v5289, 1
      %v5482 = vrot.slane %v5290, 1
      %v5483 = vrot.slane %v5291, 1
      %v5484 = vrot.slane %v5292, 1
      %v5485 = vrot.slane %v5293, 1
      %v5486 = vrot.slane %v5294, 1
      %v5487 = vrot.slane %v5295, 1
      %v5488 = vrot.slane %v5296, 1
      %v5489 = vrot.slane %v5297, 1
      %v5490 = vrot.slane %v5298, 1
      %v5491 = vrot.slane %v5299, 1
      %v5492 = vrot.slane %v5300, 1
      %v5493 = vrot.slane %v5301, 1
      %v5494 = vrot.slane %v5302, 1
      %v5495 = vrot.slane %v5303, 1
      %v5496 = vrot.slane %v5304, 1
      %v5497 = vrot.slane %v5305, 1
      %v5498 = vrot.slane %v5306, 1
      %v5499 = vrot.slane %v5307, 1
      %v5500 = vrot.slane %v5308, 1
      %v5501 = vsel %vm2650, %v5499, %v5500
      %v5502 = vsel %vm2650, %v5498, %v5499
      %v5503 = vsel %vm2650, %v5497, %v5498
      %v5504 = vsel %vm2650, %v5496, %v5497
      %v5505 = vsel %vm2650, %v5495, %v5496
      %v5506 = vsel %vm2650, %v5494, %v5495
      %v5507 = vsel %vm2650, %v5493, %v5494
      %v5508 = vsel %vm2650, %v5492, %v5493
      %v5509 = vsel %vm2650, %v5491, %v5492
      %v5510 = vsel %vm2650, %v5490, %v5491
      %v5511 = vsel %vm2650, %v5489, %v5490
      %v5512 = vsel %vm2650, %v5488, %v5489
      %v5513 = vsel %vm2650, %v5487, %v5488
      %v5514 = vsel %vm2650, %v5486, %v5487
      %v5515 = vsel %vm2650, %v5485, %v5486
      %v5516 = vsel %vm2650, %v5484, %v5485
      %v5517 = vsel %vm2650, %v5483, %v5484
      %v5518 = vsel %vm2650, %v5482, %v5483
      %v5519 = vsel %vm2650, %v5481, %v5482
      %v5520 = vsel %vm2650, %v5480, %v5481
      %v5521 = vsel %vm2650, %v5479, %v5480
      %v5522 = vsel %vm2650, %v5478, %v5479
      %v5523 = vsel %vm2650, %v5477, %v5478
      %v5524 = vsel %vm2650, %v5476, %v5477
      %v5525 = vsel %vm2650, %v5475, %v5476
      %v5526 = vsel %vm2650, %v5474, %v5475
      %v5527 = vsel %vm2650, %v5473, %v5474
      %v5528 = vsel %vm2650, %v5472, %v5473
      %v5529 = vsel %vm2650, %v5471, %v5472
      %v5530 = vsel %vm2650, %v5470, %v5471
      %v5531 = vsel %vm2650, %v5469, %v5470
      %v5532 = vsel %vm2650, %v5468, %v5469
      %v5533 = vsel %vm2650, %v5467, %v5468
      %v5534 = vsel %vm2650, %v5466, %v5467
      %v5535 = vsel %vm2650, %v5465, %v5466
      %v5536 = vsel %vm2650, %v5464, %v5465
      %v5537 = vsel %vm2650, %v5463, %v5464
      %v5538 = vsel %vm2650, %v5462, %v5463
      %v5539 = vsel %vm2650, %v5461, %v5462
      %v5540 = vsel %vm2650, %v5460, %v5461
      %v5541 = vsel %vm2650, %v5459, %v5460
      %v5542 = vsel %vm2650, %v5458, %v5459
      %v5543 = vsel %vm2650, %v5457, %v5458
      %v5544 = vsel %vm2650, %v5456, %v5457
      %v5545 = vsel %vm2650, %v5455, %v5456
      %v5546 = vsel %vm2650, %v5454, %v5455
      %v5547 = vsel %vm2650, %v5453, %v5454
      %v5548 = vsel %vm2650, %v5500, %v5453
      %v5549 = vadd.f32 %v5405, %v5547
      %v5550 = vadd.f32 %v5406, %v5546
      %v5551 = vadd.f32 %v5407, %v5545
      %v5552 = vadd.f32 %v5408, %v5544
      %v5553 = vadd.f32 %v5409, %v5543
      %v5554 = vadd.f32 %v5410, %v5542
      %v5555 = vadd.f32 %v5411, %v5541
      %v5556 = vadd.f32 %v5412, %v5540
      %v5557 = vadd.f32 %v5413, %v5539
      %v5558 = vadd.f32 %v5414, %v5538
      %v5559 = vadd.f32 %v5415, %v5537
      %v5560 = vadd.f32 %v5416, %v5536
      %v5561 = vadd.f32 %v5417, %v5535
      %v5562 = vadd.f32 %v5418, %v5534
      %v5563 = vadd.f32 %v5419, %v5533
      %v5564 = vadd.f32 %v5420, %v5532
      %v5565 = vadd.f32 %v5421, %v5531
      %v5566 = vadd.f32 %v5422, %v5530
      %v5567 = vadd.f32 %v5423, %v5529
      %v5568 = vadd.f32 %v5424, %v5528
      %v5569 = vadd.f32 %v5425, %v5527
      %v5570 = vadd.f32 %v5426, %v5526
      %v5571 = vadd.f32 %v5427, %v5525
      %v5572 = vadd.f32 %v5428, %v5524
      %v5573 = vadd.f32 %v5429, %v5523
      %v5574 = vadd.f32 %v5430, %v5522
      %v5575 = vadd.f32 %v5431, %v5521
      %v5576 = vadd.f32 %v5432, %v5520
      %v5577 = vadd.f32 %v5433, %v5519
      %v5578 = vadd.f32 %v5434, %v5518
      %v5579 = vadd.f32 %v5435, %v5517
      %v5580 = vadd.f32 %v5436, %v5516
      %v5581 = vadd.f32 %v5437, %v5515
      %v5582 = vadd.f32 %v5438, %v5514
      %v5583 = vadd.f32 %v5439, %v5513
      %v5584 = vadd.f32 %v5440, %v5512
      %v5585 = vadd.f32 %v5441, %v5511
      %v5586 = vadd.f32 %v5442, %v5510
      %v5587 = vadd.f32 %v5443, %v5509
      %v5588 = vadd.f32 %v5444, %v5508
      %v5589 = vadd.f32 %v5445, %v5507
      %v5590 = vadd.f32 %v5446, %v5506
      %v5591 = vadd.f32 %v5447, %v5505
      %v5592 = vadd.f32 %v5448, %v5504
      %v5593 = vadd.f32 %v5449, %v5503
      %v5594 = vadd.f32 %v5450, %v5502
      %v5595 = vadd.f32 %v5451, %v5501
      %v5596 = vadd.f32 %v5452, %v5548
      %v5597 = vmul.f32 %v5549, %v187
      %v5598 = vmul.f32 %v5550, %v188
      %v5599 = vmul.f32 %v5551, %v189
      %v5600 = vmul.f32 %v5552, %v187
      %v5601 = vmul.f32 %v5553, %v188
      %v5602 = vmul.f32 %v5554, %v189
      %v5603 = vmul.f32 %v5555, %v187
      %v5604 = vmul.f32 %v5556, %v188
      %v5605 = vmul.f32 %v5557, %v189
      %v5606 = vmul.f32 %v5558, %v187
      %v5607 = vmul.f32 %v5559, %v188
      %v5608 = vmul.f32 %v5560, %v189
      %v5609 = vmul.f32 %v5561, %v187
      %v5610 = vmul.f32 %v5562, %v188
      %v5611 = vmul.f32 %v5563, %v189
      %v5612 = vmul.f32 %v5564, %v187
      %v5613 = vmul.f32 %v5565, %v188
      %v5614 = vmul.f32 %v5566, %v189
      %v5615 = vmul.f32 %v5567, %v187
      %v5616 = vmul.f32 %v5568, %v188
      %v5617 = vmul.f32 %v5569, %v189
      %v5618 = vmul.f32 %v5570, %v187
      %v5619 = vmul.f32 %v5571, %v188
      %v5620 = vmul.f32 %v5572, %v189
      %v5621 = vmul.f32 %v5573, %v187
      %v5622 = vmul.f32 %v5574, %v188
      %v5623 = vmul.f32 %v5575, %v189
      %v5624 = vmul.f32 %v5576, %v187
      %v5625 = vmul.f32 %v5577, %v188
      %v5626 = vmul.f32 %v5578, %v189
      %v5627 = vmul.f32 %v5579, %v187
      %v5628 = vmul.f32 %v5580, %v188
      %v5629 = vmul.f32 %v5581, %v189
      %v5630 = vmul.f32 %v5582, %v187
      %v5631 = vmul.f32 %v5583, %v188
      %v5632 = vmul.f32 %v5584, %v189
      %v5633 = vmul.f32 %v5585, %v187
      %v5634 = vmul.f32 %v5586, %v188
      %v5635 = vmul.f32 %v5587, %v189
      %v5636 = vmul.f32 %v5588, %v187
      %v5637 = vmul.f32 %v5589, %v188
      %v5638 = vmul.f32 %v5590, %v189
      %v5639 = vmul.f32 %v5591, %v187
      %v5640 = vmul.f32 %v5592, %v188
      %v5641 = vmul.f32 %v5593, %v189
      %v5642 = vmul.f32 %v5594, %v187
      %v5643 = vmul.f32 %v5595, %v188
      %v5644 = vmul.f32 %v5596, %v189
      %v5645 = vadd.f32 %v5597, %v5598
      %v5646 = vadd.f32 %v5645, %v5599
      %v5647 = vadd.f32 %v5646, %v5600
      %v5648 = vadd.f32 %v5647, %v5601
      %v5649 = vadd.f32 %v5648, %v5602
      %v5650 = vadd.f32 %v5649, %v5603
      %v5651 = vadd.f32 %v5650, %v5604
      %v5652 = vadd.f32 %v5651, %v5605
      %v5653 = vadd.f32 %v5652, %v5606
      %v5654 = vadd.f32 %v5653, %v5607
      %v5655 = vadd.f32 %v5654, %v5608
      %v5656 = vadd.f32 %v5655, %v5609
      %v5657 = vadd.f32 %v5656, %v5610
      %v5658 = vadd.f32 %v5657, %v5611
      %v5659 = vadd.f32 %v5658, %v5612
      %v5660 = vadd.f32 %v5659, %v5613
      %v5661 = vadd.f32 %v5660, %v5614
      %v5662 = vadd.f32 %v5661, %v5615
      %v5663 = vadd.f32 %v5662, %v5616
      %v5664 = vadd.f32 %v5663, %v5617
      %v5665 = vadd.f32 %v5664, %v5618
      %v5666 = vadd.f32 %v5665, %v5619
      %v5667 = vadd.f32 %v5666, %v5620
      %v5668 = vadd.f32 %v5667, %v5621
      %v5669 = vadd.f32 %v5668, %v5622
      %v5670 = vadd.f32 %v5669, %v5623
      %v5671 = vadd.f32 %v5670, %v5624
      %v5672 = vadd.f32 %v5671, %v5625
      %v5673 = vadd.f32 %v5672, %v5626
      %v5674 = vadd.f32 %v5673, %v5627
      %v5675 = vadd.f32 %v5674, %v5628
      %v5676 = vadd.f32 %v5675, %v5629
      %v5677 = vadd.f32 %v5676, %v5630
      %v5678 = vadd.f32 %v5677, %v5631
      %v5679 = vadd.f32 %v5678, %v5632
      %v5680 = vadd.f32 %v5679, %v5633
      %v5681 = vadd.f32 %v5680, %v5634
      %v5682 = vadd.f32 %v5681, %v5635
      %v5683 = vadd.f32 %v5682, %v5636
      %v5684 = vadd.f32 %v5683, %v5637
      %v5685 = vadd.f32 %v5684, %v5638
      %v5686 = vadd.f32 %v5685, %v5639
      %v5687 = vadd.f32 %v5686, %v5640
      %v5688 = vadd.f32 %v5687, %v5641
      %v5689 = vadd.f32 %v5688, %v5642
      %v5690 = vadd.f32 %v5689, %v5643
      %v5691 = vadd.f32 %v5690, %v5644
      %v5692 = vrot.slane %v5691, 4
      %v5693 = vadd.f32 %v5691, %v5692
      %v5694 = vrot.slane %v5693, 2
      %v5695 = vadd.f32 %v5693, %v5694
      %v5696 = vrot.slane %v5695, 1
      %v5697 = vadd.f32 %v5695, %v5696
      %v5698 = vmul.f32 %v5597, %v5549
      %v5699 = vmul.f32 %v5598, %v5550
      %v5700 = vmul.f32 %v5599, %v5551
      %v5701 = vmul.f32 %v5600, %v5552
      %v5702 = vmul.f32 %v5601, %v5553
      %v5703 = vmul.f32 %v5602, %v5554
      %v5704 = vmul.f32 %v5603, %v5555
      %v5705 = vmul.f32 %v5604, %v5556
      %v5706 = vmul.f32 %v5605, %v5557
      %v5707 = vmul.f32 %v5606, %v5558
      %v5708 = vmul.f32 %v5607, %v5559
      %v5709 = vmul.f32 %v5608, %v5560
      %v5710 = vmul.f32 %v5609, %v5561
      %v5711 = vmul.f32 %v5610, %v5562
      %v5712 = vmul.f32 %v5611, %v5563
      %v5713 = vmul.f32 %v5612, %v5564
      %v5714 = vmul.f32 %v5613, %v5565
      %v5715 = vmul.f32 %v5614, %v5566
      %v5716 = vmul.f32 %v5615, %v5567
      %v5717 = vmul.f32 %v5616, %v5568
      %v5718 = vmul.f32 %v5617, %v5569
      %v5719 = vmul.f32 %v5618, %v5570
      %v5720 = vmul.f32 %v5619, %v5571
      %v5721 = vmul.f32 %v5620, %v5572
      %v5722 = vmul.f32 %v5621, %v5573
      %v5723 = vmul.f32 %v5622, %v5574
      %v5724 = vmul.f32 %v5623, %v5575
      %v5725 = vmul.f32 %v5624, %v5576
      %v5726 = vmul.f32 %v5625, %v5577
      %v5727 = vmul.f32 %v5626, %v5578
      %v5728 = vmul.f32 %v5627, %v5579
      %v5729 = vmul.f32 %v5628, %v5580
      %v5730 = vmul.f32 %v5629, %v5581
      %v5731 = vmul.f32 %v5630, %v5582
      %v5732 = vmul.f32 %v5631, %v5583
      %v5733 = vmul.f32 %v5632, %v5584
      %v5734 = vmul.f32 %v5633, %v5585
      %v5735 = vmul.f32 %v5634, %v5586
      %v5736 = vmul.f32 %v5635, %v5587
      %v5737 = vmul.f32 %v5636, %v5588
      %v5738 = vmul.f32 %v5637, %v5589
      %v5739 = vmul.f32 %v5638, %v5590
      %v5740 = vmul.f32 %v5639, %v5591
      %v5741 = vmul.f32 %v5640, %v5592
      %v5742 = vmul.f32 %v5641, %v5593
      %v5743 = vmul.f32 %v5642, %v5594
      %v5744 = vmul.f32 %v5643, %v5595
      %v5745 = vmul.f32 %v5644, %v5596
      %v5746 = vadd.f32 %v5698, %v5699
      %v5747 = vadd.f32 %v5746, %v5700
      %v5748 = vadd.f32 %v5747, %v5701
      %v5749 = vadd.f32 %v5748, %v5702
      %v5750 = vadd.f32 %v5749, %v5703
      %v5751 = vadd.f32 %v5750, %v5704
      %v5752 = vadd.f32 %v5751, %v5705
      %v5753 = vadd.f32 %v5752, %v5706
      %v5754 = vadd.f32 %v5753, %v5707
      %v5755 = vadd.f32 %v5754, %v5708
      %v5756 = vadd.f32 %v5755, %v5709
      %v5757 = vadd.f32 %v5756, %v5710
      %v5758 = vadd.f32 %v5757, %v5711
      %v5759 = vadd.f32 %v5758, %v5712
      %v5760 = vadd.f32 %v5759, %v5713
      %v5761 = vadd.f32 %v5760, %v5714
      %v5762 = vadd.f32 %v5761, %v5715
      %v5763 = vadd.f32 %v5762, %v5716
      %v5764 = vadd.f32 %v5763, %v5717
      %v5765 = vadd.f32 %v5764, %v5718
      %v5766 = vadd.f32 %v5765, %v5719
      %v5767 = vadd.f32 %v5766, %v5720
      %v5768 = vadd.f32 %v5767, %v5721
      %v5769 = vadd.f32 %v5768, %v5722
      %v5770 = vadd.f32 %v5769, %v5723
      %v5771 = vadd.f32 %v5770, %v5724
      %v5772 = vadd.f32 %v5771, %v5725
      %v5773 = vadd.f32 %v5772, %v5726
      %v5774 = vadd.f32 %v5773, %v5727
      %v5775 = vadd.f32 %v5774, %v5728
      %v5776 = vadd.f32 %v5775, %v5729
      %v5777 = vadd.f32 %v5776, %v5730
      %v5778 = vadd.f32 %v5777, %v5731
      %v5779 = vadd.f32 %v5778, %v5732
      %v5780 = vadd.f32 %v5779, %v5733
      %v5781 = vadd.f32 %v5780, %v5734
      %v5782 = vadd.f32 %v5781, %v5735
      %v5783 = vadd.f32 %v5782, %v5736
      %v5784 = vadd.f32 %v5783, %v5737
      %v5785 = vadd.f32 %v5784, %v5738
      %v5786 = vadd.f32 %v5785, %v5739
      %v5787 = vadd.f32 %v5786, %v5740
      %v5788 = vadd.f32 %v5787, %v5741
      %v5789 = vadd.f32 %v5788, %v5742
      %v5790 = vadd.f32 %v5789, %v5743
      %v5791 = vadd.f32 %v5790, %v5744
      %v5792 = vadd.f32 %v5791, %v5745
      %v5793 = vrot.slane %v5792, 4
      %v5794 = vadd.f32 %v5792, %v5793
      %v5795 = vrot.slane %v5794, 2
      %v5796 = vadd.f32 %v5794, %v5795
      %v5797 = vrot.slane %v5796, 1
      %v5798 = vadd.f32 %v5796, %v5797
      %v5799 = vmul.f32 %v5697, 0.00390625
      %v5800 = vmul.f32 %v5798, 0.00390625
      %v5801 = vmul.f32 %v5799, %v5799
      %v5802 = vsub.f32 %v5800, %v5801
      %v5803 = vsub.f32 %v5549, %v5799
      %v5804 = vsub.f32 %v5550, %v5799
      %v5805 = vsub.f32 %v5551, %v5799
      %v5806 = vsub.f32 %v5552, %v5799
      %v5807 = vsub.f32 %v5553, %v5799
      %v5808 = vsub.f32 %v5554, %v5799
      %v5809 = vsub.f32 %v5555, %v5799
      %v5810 = vsub.f32 %v5556, %v5799
      %v5811 = vsub.f32 %v5557, %v5799
      %v5812 = vsub.f32 %v5558, %v5799
      %v5813 = vsub.f32 %v5559, %v5799
      %v5814 = vsub.f32 %v5560, %v5799
      %v5815 = vsub.f32 %v5561, %v5799
      %v5816 = vsub.f32 %v5562, %v5799
      %v5817 = vsub.f32 %v5563, %v5799
      %v5818 = vsub.f32 %v5564, %v5799
      %v5819 = vsub.f32 %v5565, %v5799
      %v5820 = vsub.f32 %v5566, %v5799
      %v5821 = vsub.f32 %v5567, %v5799
      %v5822 = vsub.f32 %v5568, %v5799
      %v5823 = vsub.f32 %v5569, %v5799
      %v5824 = vsub.f32 %v5570, %v5799
      %v5825 = vsub.f32 %v5571, %v5799
      %v5826 = vsub.f32 %v5572, %v5799
      %v5827 = vsub.f32 %v5573, %v5799
      %v5828 = vsub.f32 %v5574, %v5799
      %v5829 = vsub.f32 %v5575, %v5799
      %v5830 = vsub.f32 %v5576, %v5799
      %v5831 = vsub.f32 %v5577, %v5799
      %v5832 = vsub.f32 %v5578, %v5799
      %v5833 = vsub.f32 %v5579, %v5799
      %v5834 = vsub.f32 %v5580, %v5799
      %v5835 = vsub.f32 %v5581, %v5799
      %v5836 = vsub.f32 %v5582, %v5799
      %v5837 = vsub.f32 %v5583, %v5799
      %v5838 = vsub.f32 %v5584, %v5799
      %v5839 = vsub.f32 %v5585, %v5799
      %v5840 = vsub.f32 %v5586, %v5799
      %v5841 = vsub.f32 %v5587, %v5799
      %v5842 = vsub.f32 %v5588, %v5799
      %v5843 = vsub.f32 %v5589, %v5799
      %v5844 = vsub.f32 %v5590, %v5799
      %v5845 = vsub.f32 %v5591, %v5799
      %v5846 = vsub.f32 %v5592, %v5799
      %v5847 = vsub.f32 %v5593, %v5799
      %v5848 = vsub.f32 %v5594, %v5799
      %v5849 = vsub.f32 %v5595, %v5799
      %v5850 = vsub.f32 %v5596, %v5799
      %v5851 = vadd.f32 %v5802, 1e-05
      %v5852 = vrsqrt.pop %v5851
      %v5853 = vmul.f32 %v5852, %v5851
      %v5854 = vmul.f32 %v5853, %v5852
      %v5855 = vmul.f32 0.5, %v5854
      %v5856 = vsub.f32 1.5, %v5855
      %v5857 = vmul.f32 %v5852, %v5856
      %vm5858 = vweird.f32 %v5851
      %vm5859 = vweird.f32 %v5852
      %vm5860 = vmor %vm5858, %vm5859
      %v5861 = vsel %vm5860, %v5852, %v5857
      %v5862 = vmul.f32 %v5803, %v5861
      %v5863 = vmul.f32 %v5804, %v5861
      %v5864 = vmul.f32 %v5805, %v5861
      %v5865 = vmul.f32 %v5806, %v5861
      %v5866 = vmul.f32 %v5807, %v5861
      %v5867 = vmul.f32 %v5808, %v5861
      %v5868 = vmul.f32 %v5809, %v5861
      %v5869 = vmul.f32 %v5810, %v5861
      %v5870 = vmul.f32 %v5811, %v5861
      %v5871 = vmul.f32 %v5812, %v5861
      %v5872 = vmul.f32 %v5813, %v5861
      %v5873 = vmul.f32 %v5814, %v5861
      %v5874 = vmul.f32 %v5815, %v5861
      %v5875 = vmul.f32 %v5816, %v5861
      %v5876 = vmul.f32 %v5817, %v5861
      %v5877 = vmul.f32 %v5818, %v5861
      %v5878 = vmul.f32 %v5819, %v5861
      %v5879 = vmul.f32 %v5820, %v5861
      %v5880 = vmul.f32 %v5821, %v5861
      %v5881 = vmul.f32 %v5822, %v5861
      %v5882 = vmul.f32 %v5823, %v5861
      %v5883 = vmul.f32 %v5824, %v5861
      %v5884 = vmul.f32 %v5825, %v5861
      %v5885 = vmul.f32 %v5826, %v5861
      %v5886 = vmul.f32 %v5827, %v5861
      %v5887 = vmul.f32 %v5828, %v5861
      %v5888 = vmul.f32 %v5829, %v5861
      %v5889 = vmul.f32 %v5830, %v5861
      %v5890 = vmul.f32 %v5831, %v5861
      %v5891 = vmul.f32 %v5832, %v5861
      %v5892 = vmul.f32 %v5833, %v5861
      %v5893 = vmul.f32 %v5834, %v5861
      %v5894 = vmul.f32 %v5835, %v5861
      %v5895 = vmul.f32 %v5836, %v5861
      %v5896 = vmul.f32 %v5837, %v5861
      %v5897 = vmul.f32 %v5838, %v5861
      %v5898 = vmul.f32 %v5839, %v5861
      %v5899 = vmul.f32 %v5840, %v5861
      %v5900 = vmul.f32 %v5841, %v5861
      %v5901 = vmul.f32 %v5842, %v5861
      %v5902 = vmul.f32 %v5843, %v5861
      %v5903 = vmul.f32 %v5844, %v5861
      %v5904 = vmul.f32 %v5845, %v5861
      %v5905 = vmul.f32 %v5846, %v5861
      %v5906 = vmul.f32 %v5847, %v5861
      %v5907 = vmul.f32 %v5848, %v5861
      %v5908 = vmul.f32 %v5849, %v5861
      %v5909 = vmul.f32 %v5850, %v5861
      %v5910 = vld [vmem:[%s272] sm:$0xff]
      %v5911 = vld [vmem:[%s272 + $0x8] sm:$0xff]
      %v5912 = vld [vmem:[%s272 + $0x10] sm:$0xff]
      %v5913 = vld [vmem:[%s272 + $0x18] sm:$0xff]
      %v5914 = vld [vmem:[%s272 + $0x20] sm:$0xff]
      %v5915 = vld [vmem:[%s272 + $0x28] sm:$0xff]
      %v5916 = vld [vmem:[%s272 + $0x30] sm:$0xff]
      %v5917 = vld [vmem:[%s272 + $0x38] sm:$0xff]
      %v5918 = vld [vmem:[%s272 + $0x40] sm:$0xff]
      %v5919 = vld [vmem:[%s272 + $0x48] sm:$0xff]
      %v5920 = vld [vmem:[%s272 + $0x50] sm:$0xff]
      %v5921 = vld [vmem:[%s272 + $0x58] sm:$0xff]
      %v5922 = vld [vmem:[%s272 + $0x60] sm:$0xff]
      %v5923 = vld [vmem:[%s272 + $0x68] sm:$0xff]
      %v5924 = vld [vmem:[%s272 + $0x70] sm:$0xff]
      %v5925 = vld [vmem:[%s272 + $0x78] sm:$0xff]
      %v5926 = vld [vmem:[%s272 + $0x80] sm:$0xff]
      %v5927 = vld [vmem:[%s272 + $0x88] sm:$0xff]
      %v5928 = vld [vmem:[%s272 + $0x90] sm:$0xff]
      %v5929 = vld [vmem:[%s272 + $0x98] sm:$0xff]
      %v5930 = vld [vmem:[%s272 + $0xa0] sm:$0xff]
      %v5931 = vld [vmem:[%s272 + $0xa8] sm:$0xff]
      %v5932 = vld [vmem:[%s272 + $0xb0] sm:$0xff]
      %v5933 = vld [vmem:[%s272 + $0xb8] sm:$0xff]
      %v5934 = vld [vmem:[%s272 + $0xc0] sm:$0xff]
      %v5935 = vld [vmem:[%s272 + $0xc8] sm:$0xff]
      %v5936 = vld [vmem:[%s272 + $0xd0] sm:$0xff]
      %v5937 = vld [vmem:[%s272 + $0xd8] sm:$0xff]
      %v5938 = vld [vmem:[%s272 + $0xe0] sm:$0xff]
      %v5939 = vld [vmem:[%s272 + $0xe8] sm:$0xff]
      %v5940 = vld [vmem:[%s272 + $0xf0] sm:$0xff]
      %v5941 = vld [vmem:[%s272 + $0xf8] sm:$0xff]
      %v5942 = vld [vmem:[%s272 + $0x100] sm:$0xff]
      %v5943 = vld [vmem:[%s272 + $0x108] sm:$0xff]
      %v5944 = vld [vmem:[%s272 + $0x110] sm:$0xff]
      %v5945 = vld [vmem:[%s272 + $0x118] sm:$0xff]
      %v5946 = vld [vmem:[%s272 + $0x120] sm:$0xff]
      %v5947 = vld [vmem:[%s272 + $0x128] sm:$0xff]
      %v5948 = vld [vmem:[%s272 + $0x130] sm:$0xff]
      %v5949 = vld [vmem:[%s272 + $0x138] sm:$0xff]
      %v5950 = vld [vmem:[%s272 + $0x140] sm:$0xff]
      %v5951 = vld [vmem:[%s272 + $0x148] sm:$0xff]
      %v5952 = vld [vmem:[%s272 + $0x150] sm:$0xff]
      %v5953 = vld [vmem:[%s272 + $0x158] sm:$0xff]
      %v5954 = vld [vmem:[%s272 + $0x160] sm:$0xff]
      %v5955 = vld [vmem:[%s272 + $0x168] sm:$0xff]
      %v5956 = vld [vmem:[%s272 + $0x170] sm:$0xff]
      %v5957 = vld [vmem:[%s272 + $0x178] sm:$0xff]
      %v5958 = vadd.f32 %v5910, %v5862
      %v5959 = vadd.f32 %v5911, %v5863
      %v5960 = vadd.f32 %v5912, %v5864
      %v5961 = vadd.f32 %v5913, %v5865
      %v5962 = vadd.f32 %v5914, %v5866
      %v5963 = vadd.f32 %v5915, %v5867
      %v5964 = vadd.f32 %v5916, %v5868
      %v5965 = vadd.f32 %v5917, %v5869
      %v5966 = vadd.f32 %v5918, %v5870
      %v5967 = vadd.f32 %v5919, %v5871
      %v5968 = vadd.f32 %v5920, %v5872
      %v5969 = vadd.f32 %v5921, %v5873
      %v5970 = vadd.f32 %v5922, %v5874
      %v5971 = vadd.f32 %v5923, %v5875
      %v5972 = vadd.f32 %v5924, %v5876
      %v5973 = vadd.f32 %v5925, %v5877
      %v5974 = vadd.f32 %v5926, %v5878
      %v5975 = vadd.f32 %v5927, %v5879
      %v5976 = vadd.f32 %v5928, %v5880
      %v5977 = vadd.f32 %v5929, %v5881
      %v5978 = vadd.f32 %v5930, %v5882
      %v5979 = vadd.f32 %v5931, %v5883
      %v5980 = vadd.f32 %v5932, %v5884
      %v5981 = vadd.f32 %v5933, %v5885
      %v5982 = vadd.f32 %v5934, %v5886
      %v5983 = vadd.f32 %v5935, %v5887
      %v5984 = vadd.f32 %v5936, %v5888
      %v5985 = vadd.f32 %v5937, %v5889
      %v5986 = vadd.f32 %v5938, %v5890
      %v5987 = vadd.f32 %v5939, %v5891
      %v5988 = vadd.f32 %v5940, %v5892
      %v5989 = vadd.f32 %v5941, %v5893
      %v5990 = vadd.f32 %v5942, %v5894
      %v5991 = vadd.f32 %v5943, %v5895
      %v5992 = vadd.f32 %v5944, %v5896
      %v5993 = vadd.f32 %v5945, %v5897
      %v5994 = vadd.f32 %v5946, %v5898
      %v5995 = vadd.f32 %v5947, %v5899
      %v5996 = vadd.f32 %v5948, %v5900
      %v5997 = vadd.f32 %v5949, %v5901
      %v5998 = vadd.f32 %v5950, %v5902
      %v5999 = vadd.f32 %v5951, %v5903
      %v6000 = vadd.f32 %v5952, %v5904
      %v6001 = vadd.f32 %v5953, %v5905
      %v6002 = vadd.f32 %v5954, %v5906
      %v6003 = vadd.f32 %v5955, %v5907
      %v6004 = vadd.f32 %v5956, %v5908
      %v6005 = vadd.f32 %v5957, %v5909
      %v6006 = vpack.c.bf16 %v5958, %v5958
      %v6007 = vpack.c.bf16 %v5959, %v5959
      %v6008 = vpack.c.bf16 %v5960, %v5960
      %v6009 = vpack.c.bf16 %v5961, %v5961
      %v6010 = vpack.c.bf16 %v5962, %v5962
      %v6011 = vpack.c.bf16 %v5963, %v5963
      %v6012 = vpack.c.bf16 %v5964, %v5964
      %v6013 = vpack.c.bf16 %v5965, %v5965
      %v6014 = vpack.c.bf16 %v5966, %v5966
      %v6015 = vpack.c.bf16 %v5967, %v5967
      %v6016 = vpack.c.bf16 %v5968, %v5968
      %v6017 = vpack.c.bf16 %v5969, %v5969
      %v6018 = vpack.c.bf16 %v5970, %v5970
      %v6019 = vpack.c.bf16 %v5971, %v5971
      %v6020 = vpack.c.bf16 %v5972, %v5972
      %v6021 = vpack.c.bf16 %v5973, %v5973
      %v6022 = vpack.c.bf16 %v5974, %v5974
      %v6023 = vpack.c.bf16 %v5975, %v5975
      %v6024 = vpack.c.bf16 %v5976, %v5976
      %v6025 = vpack.c.bf16 %v5977, %v5977
      %v6026 = vpack.c.bf16 %v5978, %v5978
      %v6027 = vpack.c.bf16 %v5979, %v5979
      %v6028 = vpack.c.bf16 %v5980, %v5980
      %v6029 = vpack.c.bf16 %v5981, %v5981
      %v6030 = vpack.c.bf16 %v5982, %v5982
      %v6031 = vpack.c.bf16 %v5983, %v5983
      %v6032 = vpack.c.bf16 %v5984, %v5984
      %v6033 = vpack.c.bf16 %v5985, %v5985
      %v6034 = vpack.c.bf16 %v5986, %v5986
      %v6035 = vpack.c.bf16 %v5987, %v5987
      %v6036 = vpack.c.bf16 %v5988, %v5988
      %v6037 = vpack.c.bf16 %v5989, %v5989
      %v6038 = vpack.c.bf16 %v5990, %v5990
      %v6039 = vpack.c.bf16 %v5991, %v5991
      %v6040 = vpack.c.bf16 %v5992, %v5992
      %v6041 = vpack.c.bf16 %v5993, %v5993
      %v6042 = vpack.c.bf16 %v5994, %v5994
      %v6043 = vpack.c.bf16 %v5995, %v5995
      %v6044 = vpack.c.bf16 %v5996, %v5996
      %v6045 = vpack.c.bf16 %v5997, %v5997
      %v6046 = vpack.c.bf16 %v5998, %v5998
      %v6047 = vpack.c.bf16 %v5999, %v5999
      %v6048 = vpack.c.bf16 %v6000, %v6000
      %v6049 = vpack.c.bf16 %v6001, %v6001
      %v6050 = vpack.c.bf16 %v6002, %v6002
      %v6051 = vpack.c.bf16 %v6003, %v6003
      %v6052 = vpack.c.bf16 %v6004, %v6004
      %v6053 = vpack.c.bf16 %v6005, %v6005
      %6054 = vst [vmem:[%s170] sm:$0xf] %v6006
      %6055 = vst [vmem:[%s170 + $0x4] sm:$0xf] %v6007
      %6056 = vst [vmem:[%s170 + $0x8] sm:$0xf] %v6008
      %6057 = vst [vmem:[%s170 + $0xc] sm:$0xf] %v6009
      %6058 = vst [vmem:[%s170 + $0x10] sm:$0xf] %v6010
      %6059 = vst [vmem:[%s170 + $0x14] sm:$0xf] %v6011
      %6060 = vst [vmem:[%s170 + $0x18] sm:$0xf] %v6012
      %6061 = vst [vmem:[%s170 + $0x1c] sm:$0xf] %v6013
      %6062 = vst [vmem:[%s170 + $0x20] sm:$0xf] %v6014
      %6063 = vst [vmem:[%s170 + $0x24] sm:$0xf] %v6015
      %6064 = vst [vmem:[%s170 + $0x28] sm:$0xf] %v6016
      %6065 = vst [vmem:[%s170 + $0x2c] sm:$0xf] %v6017
      %6066 = vst [vmem:[%s170 + $0x30] sm:$0xf] %v6018
      %6067 = vst [vmem:[%s170 + $0x34] sm:$0xf] %v6019
      %6068 = vst [vmem:[%s170 + $0x38] sm:$0xf] %v6020
      %6069 = vst [vmem:[%s170 + $0x3c] sm:$0xf] %v6021
      %6070 = vst [vmem:[%s170 + $0x40] sm:$0xf] %v6022
      %6071 = vst [vmem:[%s170 + $0x44] sm:$0xf] %v6023
      %6072 = vst [vmem:[%s170 + $0x48] sm:$0xf] %v6024
      %6073 = vst [vmem:[%s170 + $0x4c] sm:$0xf] %v6025
      %6074 = vst [vmem:[%s170 + $0x50] sm:$0xf] %v6026
      %6075 = vst [vmem:[%s170 + $0x54] sm:$0xf] %v6027
      %6076 = vst [vmem:[%s170 + $0x58] sm:$0xf] %v6028
      %6077 = vst [vmem:[%s170 + $0x5c] sm:$0xf] %v6029
      %6078 = vst [vmem:[%s170 + $0x60] sm:$0xf] %v6030
      %6079 = vst [vmem:[%s170 + $0x64] sm:$0xf] %v6031
      %6080 = vst [vmem:[%s170 + $0x68] sm:$0xf] %v6032
      %6081 = vst [vmem:[%s170 + $0x6c] sm:$0xf] %v6033
      %6082 = vst [vmem:[%s170 + $0x70] sm:$0xf] %v6034
      %6083 = vst [vmem:[%s170 + $0x74] sm:$0xf] %v6035
      %6084 = vst [vmem:[%s170 + $0x78] sm:$0xf] %v6036
      %6085 = vst [vmem:[%s170 + $0x7c] sm:$0xf] %v6037
      %6086 = vst [vmem:[%s170 + $0x80] sm:$0xf] %v6038
      %6087 = vst [vmem:[%s170 + $0x84] sm:$0xf] %v6039
      %6088 = vst [vmem:[%s170 + $0x88] sm:$0xf] %v6040
      %6089 = vst [vmem:[%s170 + $0x8c] sm:$0xf] %v6041
      %6090 = vst [vmem:[%s170 + $0x90] sm:$0xf] %v6042
      %6091 = vst [vmem:[%s170 + $0x94] sm:$0xf] %v6043
      %6092 = vst [vmem:[%s170 + $0x98] sm:$0xf] %v6044
      %6093 = vst [vmem:[%s170 + $0x9c] sm:$0xf] %v6045
      %6094 = vst [vmem:[%s170 + $0xa0] sm:$0xf] %v6046
      %6095 = vst [vmem:[%s170 + $0xa4] sm:$0xf] %v6047
      %6096 = vst [vmem:[%s170 + $0xa8] sm:$0xf] %v6048
      %6097 = vst [vmem:[%s170 + $0xac] sm:$0xf] %v6049
      %6098 = vst [vmem:[%s170 + $0xb0] sm:$0xf] %v6050
      %6099 = vst [vmem:[%s170 + $0xb4] sm:$0xf] %v6051
      %6100 = vst [vmem:[%s170 + $0xb8] sm:$0xf] %v6052
      %6101 = vst [vmem:[%s170 + $0xbc] sm:$0xf] %v6053
      %p6102 = scmp.lt.s32.totalorder %s14, 1
      %s6103 = scalar_select %p6102, %s14, 1
      %s6104 = smul.addr %s6103, 48
      %s6105 = smul.addr %s6104, 4
      %s6106 = scalar_lea.vmem %s3, %s6105
      // Predicated region
      $region33: #{residual_block.1} parent=31 // pred_check
        %p6107 = pneg %p100
      $region34: #{residual_block.1} parent=31 // pred_check_branch
        %6109 = sbr.rel (%p6107) target = $region36
      $region35: #{residual_block.1} parent=31 // pred_region
        _
      $region36: #{residual_block.1} parent=31 // pred_fallthru
        _
    $region32: #{residual_block.1} parent=5 // pred_fallthru
      _
    %p6110 = scmp.le.s32.totalorder 2, %s9
    // Predicated region
    $region37: #{residual_block.1} parent=5 // pred_check
      %p6111 = pneg %p6110
    $region38: #{residual_block.1} parent=5 // pred_check_branch
      %6113 = sbr.rel (%p6111) target = $region40
    $region39: #{residual_block.1} parent=5 // pred_region
      %s6114 = ssub.s32 %s9, 2
      // Predicated region
      $region41: #{residual_block.1} parent=39 // pred_check
        %p6115 = pneg %p106
      $region42: #{residual_block.1} parent=39 // pred_check_branch
        %6117 = sbr.rel (%p6115) target = $region44
      $region43: #{residual_block.1} parent=39 // pred_region
        %p6118 = scmp.lt.s32.totalorder %s15, 1
        %s6119 = scalar_select %p6118, %s15, 1
        %s6120 = smul.addr %s6119, 48
        %s6121 = smul.addr %s6120, 4
        %s6122 = scalar_lea.vmem %s3, %s6121
      $region44: #{residual_block.1} parent=39 // pred_fallthru
        _
    $region40: #{residual_block.1} parent=5 // pred_fallthru
      _
  $region6: #{residual_block.1} parent=0 // loop_footer
    %s13 = sadd.s32 1, %s9
  $region7: #{residual_block.1} parent=0 // loop_footer_branch
    %8 = sbr.rel target = $region3
  $region8: #{residual_block.1} parent=0 // loop_exit
    _

</llo_original>
